<compile_context>
chip_gen: v7x
topology: tpu7x:2x2x1
jax: 0.10.0
libtpu: 0.0.40
codegen_flags: <defaults>
</compile_context>

<pallas_src>
import functools
import math

import numpy as np
import jax
import jax.numpy as jnp
from jax.experimental import pallas as pl
from jax.experimental.pallas import tpu as pltpu

PAD_ID = 0
LN_EPS = 1e-5
NEG_INF = -1e9


# ----------------------------------------------------------------------------
# Pallas kernel: one full decoder layer (self-attn + cross-attn + FFN)
# for one batch element.
# ----------------------------------------------------------------------------
def decoder_layer_kernel(
    # activations / pad vectors
    x_ref, enc_ref, tpad_ref, spad_ref, npad_ref,
    # masked self attention
    wq_s_ref, bq_s_ref, wk_s_ref, bk_s_ref, wv_s_ref, bv_s_ref,
    r_slf_ref, wo_s_ref, bo_s_ref, ln1g_ref, ln1b_ref,
    # encoder-decoder attention
    wq_c_ref, bq_c_ref, wk_c_ref, bk_c_ref, wv_c_ref, bv_c_ref,
    r_enc_ref, wo_c_ref, bo_c_ref, ln2g_ref, ln2b_ref,
    # shared relative-position biases
    rw_ref, rr_ref,
    # position-wise feed forward
    w1_ref, b1_ref, w2_ref, b2_ref, ln3g_ref, ln3b_ref,
    # output
    out_ref,
    *, n_head, d_head, q_len, k_len,
):
    scale = 1.0 / math.sqrt(float(d_head))

    x = x_ref[0]                                       # (Lq, D) f32
    d_model = x.shape[-1]
    enc_bf = enc_ref[0]                                # (Lk, D) bf16
    npad = jnp.broadcast_to(npad_ref[0], (q_len, d_model))     # hoisted once

    # ---- additive attention masks, built in-kernel (review item 3) ----------
    row = jax.lax.broadcasted_iota(jnp.int32, (q_len, q_len), 0)
    col = jax.lax.broadcasted_iota(jnp.int32, (q_len, q_len), 1)
    causal = (col > row).astype(jnp.float32)
    sbias = (causal + jnp.broadcast_to(tpad_ref[0], (q_len, q_len))) * NEG_INF
    xbias = jnp.broadcast_to(spad_ref[0], (q_len, k_len)) * NEG_INF

    def layer_norm(v, g_ref, b_ref):
        m = jnp.mean(v, axis=-1, keepdims=True)
        c = v - m
        var = jnp.mean(c * c, axis=-1, keepdims=True)
        return c * jax.lax.rsqrt(var + LN_EPS) * g_ref[...] + b_ref[...]

    def rel_attention(q_rm, k_fm, v_rm, kv_len, r_ref, wo_ref, bias):
        """Transformer-XL multi-head attention, output projection fused per head.

        q_rm: (Lq, H*dh) f32 row-major queries   (per-head slice = lanes)
        k_fm: (H*dh, kv) f32 feature-major keys  (per-head slice = sublanes)
        v_rm: (kv, H*dh) f32 row-major values
        r_ref: (H, dh, P_pad) bf16 relative table, row m <-> rel = m-(q_len-1),
               lane-padded to a multiple of 128.
        Returns sum_h ctx_h @ Wo_h  ==  concat_h(ctx_h) @ Wo  (no concat).
        """
        # r_w_bias / r_r_bias adds hoisted out of the head loop (review item 5)
        q_rw = (q_rm + rw_ref[...]).astype(jnp.bfloat16)          # (Lq, H*dh)
        q_rr = (q_rm + rr_ref[...]).astype(jnp.bfloat16)
        k_bf = k_fm.astype(jnp.bfloat16)
        v_bf = v_rm.astype(jnp.bfloat16)

        acc = jnp.zeros((q_len, d_model), jnp.float32)
        # TODO(synk): for large n_head switch to lax.fori_loop over heads with
        # pl.ds(pl.multiple_of(h * d_head, 8), d_head) slices.
        for h in range(n_head):                        # small, static head count
            lo = h * d_head
            # content term  (q + r_w_bias) . k
            ac = jnp.dot(q_rw[:, lo:lo + d_head], k_bf[lo:lo + d_head, :],
                         preferred_element_type=jnp.float32)       # (Lq, kv)
            # position term (q + r_r_bias) . R, then the relative shift as ONE
            # strided XLU roll + one static slice (review item 1):
            #   want bd[i, j] = bd_full[i, j + (q_len - 1) - i]
            bd_full = jnp.dot(q_rr[:, lo:lo + d_head], r_ref[h],
                              preferred_element_type=jnp.float32)  # (Lq, P_pad)
            rolled = pltpu.roll(bd_full, 0, 1, stride=1, stride_axis=0)
            bd = rolled[:, q_len - 1:q_len - 1 + kv_len]           # (Lq, kv)
            s = (ac + bd) * scale + bias
            s = s - jnp.max(s, axis=-1, keepdims=True)
            e = jnp.exp(s)
            p = e * pl.reciprocal(jnp.sum(e, axis=-1, keepdims=True), approx=True)
            ctx = jnp.dot(p.astype(jnp.bfloat16), v_bf[:, lo:lo + d_head],
                          preferred_element_type=jnp.float32)      # (Lq, dh)
            # fold straight into the output projection (review item 4)
            acc = acc + jnp.dot(ctx.astype(jnp.bfloat16),
                                wo_ref[lo:lo + d_head, :],
                                preferred_element_type=jnp.float32)
        return acc

    # ---- masked self attention (causal + key-pad) ---------------------------
    x_bf = x.astype(jnp.bfloat16)                      # cast BEFORE transposing
    x_t = x_bf.T                                       # (D, Lq) bf16
    q_s = jnp.dot(x_bf, wq_s_ref[...], preferred_element_type=jnp.float32) + bq_s_ref[...]
    k_s = jnp.dot(wk_s_ref[...], x_t, preferred_element_type=jnp.float32) + bk_s_ref[...]
    v_s = jnp.dot(x_bf, wv_s_ref[...], preferred_element_type=jnp.float32) + bv_s_ref[...]
    attn = rel_attention(q_s, k_s, v_s, q_len, r_slf_ref, wo_s_ref, sbias) + bo_s_ref[...]
    y = layer_norm(attn + x, ln1g_ref, ln1b_ref) * npad            # post-LN

    # ---- encoder-decoder attention ------------------------------------------
    y_bf = y.astype(jnp.bfloat16)
    enc_t = enc_bf.T                                   # (D, Lk) bf16
    q_c = jnp.dot(y_bf, wq_c_ref[...], preferred_element_type=jnp.float32) + bq_c_ref[...]
    k_c = jnp.dot(wk_c_ref[...], enc_t, preferred_element_type=jnp.float32) + bk_c_ref[...]
    v_c = jnp.dot(enc_bf, wv_c_ref[...], preferred_element_type=jnp.float32) + bv_c_ref[...]
    attn_c = rel_attention(q_c, k_c, v_c, k_len, r_enc_ref, wo_c_ref, xbias) + bo_c_ref[...]
    z = layer_norm(attn_c + y, ln2g_ref, ln2b_ref) * npad

    # ---- position-wise feed forward ------------------------------------------
    h1 = jnp.dot(z.astype(jnp.bfloat16), w1_ref[...],
                 preferred_element_type=jnp.float32) + b1_ref[...]
    h1 = jnp.maximum(h1, 0.0)
    h2 = jnp.dot(h1.astype(jnp.bfloat16), w2_ref[...],
                 preferred_element_type=jnp.float32) + b2_ref[...]
    out_ref[0] = layer_norm(h2 + z, ln3g_ref, ln3b_ref) * npad


# ----------------------------------------------------------------------------
# Wrapper: one decoder layer over the full batch (grid over batch, "parallel")
# ----------------------------------------------------------------------------
def run_decoder_layer(x, enc_bf, tgt_kpad, src_kpad, non_pad, p, r_slf, r_enc,
                      *, n_head, d_head):
    B, Lq, D = x.shape
    Lk = enc_bf.shape[1]

    kernel = functools.partial(decoder_layer_kernel, n_head=n_head,
                               d_head=d_head, q_len=Lq, k_len=Lk)

    def resident(a):
        # constant block index + single buffer: the weight is DMA'd once and
        # stays resident in VMEM across the whole batch grid (review item 2).
        nd = a.ndim
        return pl.BlockSpec(a.shape, lambda b, _n=nd: (0,) * _n,
                            pipeline_mode=pl.Buffered(1))

    weights = [
        p["wq_s"], p["bq_s"], p["wk_s"], p["bk_s"], p["wv_s"], p["bv_s"],
        r_slf, p["wo_s"], p["bo_s"], p["ln1g"], p["ln1b"],
        p["wq_c"], p["bq_c"], p["wk_c"], p["bk_c"], p["wv_c"], p["bv_c"],
        r_enc, p["wo_c"], p["bo_c"], p["ln2g"], p["ln2b"],
        p["rw"], p["rr"],
        p["w1"], p["b1"], p["w2"], p["b2"], p["ln3g"], p["ln3b"],
    ]

    in_specs = [
        pl.BlockSpec((1, Lq, D), lambda b: (b, 0, 0)),     # x (f32)
        pl.BlockSpec((1, Lk, D), lambda b: (b, 0, 0)),     # enc_out (bf16)
        pl.BlockSpec((1, 1, Lq), lambda b: (b, 0, 0)),     # tgt key-pad (f32)
        pl.BlockSpec((1, 1, Lk), lambda b: (b, 0, 0)),     # src key-pad (f32)
        pl.BlockSpec((1, Lq, 1), lambda b: (b, 0, 0)),     # non-pad (f32)
    ] + [resident(w) for w in weights]

    # VMEM budget: single-buffered weights + double-buffered activation blocks
    # + slack, capped at 40 MiB so the same plan also fits v7x (64 MiB physical)
    # while being fine on v5e/v6e (128 MiB).  (review items 2 & 8)
    weight_bytes = sum(int(w.size) * w.dtype.itemsize for w in weights)
    blk_bytes = (2 * Lq * D * 4) + (Lk * D * 2) + 4 * (2 * Lq + Lk)
    vmem_limit = int(min(max(weight_bytes + 2 * blk_bytes + (8 << 20), 16 << 20),
                         40 << 20))

    # TODO(synk): when B is small/odd on v7x (2 TCs) add a second "parallel"
    # grid axis over Lq tiles (flash-style) so both cores get work, and use
    # D / d_inner multiples of 128 in production for lane-dense stores.
    return pl.pallas_call(
        kernel,
        out_shape=jax.ShapeDtypeStruct((B, Lq, D), jnp.float32),
        grid=(B,),
        in_specs=in_specs,
        out_specs=pl.BlockSpec((1, Lq, D), lambda b: (b, 0, 0)),
        compiler_params=pltpu.CompilerParams(
            dimension_semantics=("parallel",),
            vmem_limit_bytes=vmem_limit,
        ),
    )(x, enc_bf, tgt_kpad, src_kpad, non_pad, *weights)


# ----------------------------------------------------------------------------
# Glue: embeddings, pad vectors, relative-position tables, parameter init
# ----------------------------------------------------------------------------
def sinusoid_table(pos, d_model):
    # TODO(synk): exact PositionalEmbedding source not provided; Transformer-XL
    # style cat([sin, cos], -1) sinusoid is assumed.
    inv_freq = 1.0 / (10000.0 ** (jnp.arange(0.0, d_model, 2.0) / d_model))
    ang = pos[:, None] * inv_freq[None, :]
    return jnp.concatenate([jnp.sin(ang), jnp.cos(ang)], axis=-1)


def make_rel_table(w_r, n_head, d_head, q_len, k_len):
    # Relative offsets rel = key_pos - query_pos stored ascending, so table row
    # m corresponds to rel = m - (q_len - 1) (same position set as the
    # reference's arange(k_len-1, -q_len, -1)).  The lane axis is zero-padded
    # to a multiple of 128 so the in-kernel bd matmul is lane-dense and the
    # strided roll operates on a native (8,128) tile (review items 1 & 7).
    # TODO(synk): MixMultiHeadAttention source not provided; the standard
    # Transformer-XL relative-shift convention is assumed.
    rel = jnp.arange(-(q_len - 1), k_len, dtype=jnp.float32)          # (P,)
    r = sinusoid_table(rel, w_r.shape[0]) @ w_r                       # (P, H*dh)
    r = r.reshape(-1, n_head, d_head).transpose(1, 2, 0)              # (H, dh, P)
    p_len = r.shape[-1]
    p_pad = max(128, ((p_len + 127) // 128) * 128)
    r = jnp.pad(r, ((0, 0), (0, 0), (0, p_pad - p_len)))
    return r.astype(jnp.bfloat16)


def build_pad_inputs(tgt_seq, src_seq):
    tgt_kpad = (tgt_seq == PAD_ID).astype(jnp.float32)[:, None, :]    # (B,1,Lq)
    src_kpad = (src_seq == PAD_ID).astype(jnp.float32)[:, None, :]    # (B,1,Lk)
    non_pad = (tgt_seq != PAD_ID).astype(jnp.float32)[..., None]      # (B,Lq,1)
    return tgt_kpad, src_kpad, non_pad


def init_layer_params(key, d_model, d_inner, n_head, d_head):
    HD = n_head * d_head
    ks = jax.random.split(key, 14)
    w = lambda k, s: (0.05 * jax.random.normal(k, s)).astype(jnp.float32)
    bf = jnp.bfloat16
    return {
        # masked self attention: Q,V row-major, K feature-major (= W^T), bf16
        "wq_s": w(ks[0], (d_model, HD)).astype(bf),
        "bq_s": jnp.zeros((1, HD), jnp.float32),
        "wk_s": w(ks[1], (d_model, HD)).T.astype(bf),     # (HD, d_model)
        "bk_s": jnp.zeros((HD, 1), jnp.float32),
        "wv_s": w(ks[2], (d_model, HD)).astype(bf),
        "bv_s": jnp.zeros((1, HD), jnp.float32),
        "wr_s": w(ks[3], (d_model, HD)),                  # rel-pos proj (host side)
        "wo_s": w(ks[4], (HD, d_model)).astype(bf),
        "bo_s": jnp.zeros((1, d_model), jnp.float32),
        "ln1g": jnp.ones((1, d_model), jnp.float32),
        "ln1b": jnp.zeros((1, d_model), jnp.float32),
        # encoder-decoder attention
        "wq_c": w(ks[5], (d_model, HD)).astype(bf),
        "bq_c": jnp.zeros((1, HD), jnp.float32),
        "wk_c": w(ks[6], (d_model, HD)).T.astype(bf),
        "bk_c": jnp.zeros((HD, 1), jnp.float32),
        "wv_c": w(ks[7], (d_model, HD)).astype(bf),
        "bv_c": jnp.zeros((1, HD), jnp.float32),
        "wr_c": w(ks[8], (d_model, HD)),
        "wo_c": w(ks[9], (HD, d_model)).astype(bf),
        "bo_c": jnp.zeros((1, d_model), jnp.float32),
        "ln2g": jnp.ones((1, d_model), jnp.float32),
        "ln2b": jnp.zeros((1, d_model), jnp.float32),
        # shared r_w_bias / r_r_bias ~ N(0, 0.1), flattened to (1, H*dh)
        "rw": (0.1 * jax.random.normal(ks[10], (n_head, d_head))
               ).reshape(1, HD).astype(jnp.float32),
        "rr": (0.1 * jax.random.normal(ks[11], (n_head, d_head))
               ).reshape(1, HD).astype(jnp.float32),
        # position-wise feed forward
        "w1": w(ks[12], (d_model, d_inner)).astype(bf),
        "b1": jnp.zeros((1, d_inner), jnp.float32),
        "w2": w(ks[13], (d_inner, d_model)).astype(bf),
        "b2": jnp.zeros((1, d_model), jnp.float32),
        "ln3g": jnp.ones((1, d_model), jnp.float32),
        "ln3b": jnp.zeros((1, d_model), jnp.float32),
    }


def rel_decoder_forward(tgt_seq, src_seq, enc_out, emb_table, layers,
                        *, n_head, d_head):
    # NOTE: the reference's `da` argument is never forwarded to the layers by
    # RelDecoder, so it is omitted.  Dropout is identity (eval mode).
    B, Lq = tgt_seq.shape
    Lk = src_seq.shape[1]
    D = emb_table.shape[1]

    tgt_kpad, src_kpad, non_pad = build_pad_inputs(tgt_seq, src_seq)
    dec_inp = jnp.take(emb_table, tgt_seq, axis=0) + sinusoid_table(
        jnp.arange(Lq, dtype=jnp.float32), D)[None]
    dec_inp = dec_inp.astype(jnp.float32)
    enc_bf = enc_out.astype(jnp.bfloat16)     # bf16 MXU operand, half the DMA

    # TODO(synk): fuse this layer loop into a single pallas_call with
    # grid=(B, n_layer) (layer axis "arbitrary"), layer-indexed weight
    # BlockSpecs and a VMEM-resident activation carry, removing the per-layer
    # activation re-DMA and overlapping next-layer weight fetch with compute.
    for p in layers:
        r_slf = make_rel_table(p["wr_s"], n_head, d_head, Lq, Lq)
        r_enc = make_rel_table(p["wr_c"], n_head, d_head, Lq, Lk)
        dec_inp = run_decoder_layer(dec_inp, enc_bf, tgt_kpad, src_kpad,
                                    non_pad, p, r_slf, r_enc,
                                    n_head=n_head, d_head=d_head)
    return dec_inp


# ----------------------------------------------------------------------------
# Pure-JAX reference (f32, exact softmax) for a wiring-level sanity check
# ----------------------------------------------------------------------------
def layer_ref(x, enc_bf, tpad, spad, npad, p, r_slf, r_enc, *, n_head, d_head):
    B, Lq, D = x.shape
    Lk = enc_bf.shape[1]
    H, dh = n_head, d_head
    f = lambda a: a.astype(jnp.float32)
    enc = f(enc_bf)

    col = jnp.arange(Lq)[None, :]
    row = jnp.arange(Lq)[:, None]
    causal = (col > row).astype(jnp.float32)[None]
    sbias = (causal + tpad) * NEG_INF
    xbias = jnp.broadcast_to(spad, (B, Lq, Lk)) * NEG_INF

    def ln(v, g, b):
        m = jnp.mean(v, -1, keepdims=True)
        c = v - m
        return c * jax.lax.rsqrt(jnp.mean(c * c, -1, keepdims=True) + LN_EPS) * g + b

    def mha(xq, xkv, r_tab, bias, wq, bq, wk, bk, wv, bv, wo, bo):
        kv = xkv.shape[1]
        q = (xq @ f(wq) + bq).reshape(B, Lq, H, dh)
        k = (xkv @ f(wk).T + bk[:, 0][None, None, :]).reshape(B, kv, H, dh)
        v = (xkv @ f(wv) + bv).reshape(B, kv, H, dh)
        rw = p["rw"].reshape(1, 1, H, dh)
        rr = p["rr"].reshape(1, 1, H, dh)
        ac = jnp.einsum("bqhd,bkhd->bhqk", q + rw, k)
        P = Lq - 1 + kv
        bd_full = jnp.einsum("bqhd,hdm->bhqm", q + rr, f(r_tab)[:, :, :P])
        idx = jnp.arange(kv)[None, :] - jnp.arange(Lq)[:, None] + (Lq - 1)
        idx = jnp.broadcast_to(idx[None, None], (B, H, Lq, kv))
        bd = jnp.take_along_axis(bd_full, idx, axis=-1)
        s = (ac + bd) / math.sqrt(dh) + bias[:, None]
        pr = jax.nn.softmax(s, axis=-1)
        ctx = jnp.einsum("bhqk,bkhd->bqhd", pr, v).reshape(B, Lq, H * dh)
        return ctx @ f(wo) + bo

    y = ln(mha(x, x, r_slf, sbias, p["wq_s"], p["bq_s"], p["wk_s"], p["bk_s"],
               p["wv_s"], p["bv_s"], p["wo_s"], p["bo_s"]) + x,
           p["ln1g"], p["ln1b"]) * npad
    z = ln(mha(y, enc, r_enc, xbias, p["wq_c"], p["bq_c"], p["wk_c"], p["bk_c"],
               p["wv_c"], p["bv_c"], p["wo_c"], p["bo_c"]) + y,
           p["ln2g"], p["ln2b"]) * npad
    h1 = jnp.maximum(z @ f(p["w1"]) + p["b1"], 0.0)
    o = h1 @ f(p["w2"]) + p["b2"]
    return ln(o + z, p["ln3g"], p["ln3b"]) * npad


def rel_decoder_reference(tgt_seq, src_seq, enc_out, emb_table, layers,
                          *, n_head, d_head):
    B, Lq = tgt_seq.shape
    Lk = src_seq.shape[1]
    D = emb_table.shape[1]
    tgt_kpad, src_kpad, non_pad = build_pad_inputs(tgt_seq, src_seq)
    out = (jnp.take(emb_table, tgt_seq, axis=0) + sinusoid_table(
        jnp.arange(Lq, dtype=jnp.float32), D)[None]).astype(jnp.float32)
    enc_bf = enc_out.astype(jnp.bfloat16)     # same bf16-rounded enc as kernel
    for p in layers:
        r_slf = make_rel_table(p["wr_s"], n_head, d_head, Lq, Lq)
        r_enc = make_rel_table(p["wr_c"], n_head, d_head, Lq, Lk)
        out = layer_ref(out, enc_bf, tgt_kpad, src_kpad, non_pad, p,
                        r_slf, r_enc, n_head=n_head, d_head=d_head)
    return out


# ----------------------------------------------------------------------------
if __name__ == "__main__":
    B, Lq, Lk = 2, 8, 12
    vocab = 50
    d_model, d_head, n_head, d_inner, n_layer = 32, 16, 2, 64, 2

    key = jax.random.PRNGKey(0)
    k_tgt, k_src, k_emb, k_enc, *k_layers = jax.random.split(key, 4 + n_layer)

    tgt_seq = jax.random.randint(k_tgt, (B, Lq), 1, vocab)
    tgt_seq = tgt_seq.at[1, 6:].set(PAD_ID)           # some target padding
    src_seq = jax.random.randint(k_src, (B, Lk), 1, vocab)
    src_seq = src_seq.at[0, 10:].set(PAD_ID)          # some source padding

    emb_table = (0.02 * jax.random.normal(k_emb, (vocab, d_model))).astype(jnp.float32)
    emb_table = emb_table.at[PAD_ID].set(0.0)         # padding_idx = 0

    enc_out = (0.1 * jax.random.normal(k_enc, (B, Lk, d_model))).astype(jnp.float32)

    layers = [init_layer_params(k_layers[i], d_model, d_inner, n_head, d_head)
              for i in range(n_layer)]

    dec_out = rel_decoder_forward(tgt_seq, src_seq, enc_out, emb_table, layers,
                                  n_head=n_head, d_head=d_head)
    jax.block_until_ready(dec_out)
    assert dec_out.shape == (B, Lq, d_model)
    assert bool(jnp.all(jnp.isfinite(dec_out)))

    # wiring-level sanity check vs. a pure-JAX f32 reference (same bf16-rounded
    # weights / enc; only activation rounding + approx reciprocal differ).
    ref = rel_decoder_reference(tgt_seq, src_seq, enc_out, emb_table, layers,
                                n_head=n_head, d_head=d_head)
    np.testing.assert_allclose(np.asarray(dec_out), np.asarray(ref),
                               rtol=2e-2, atol=5e-2)

    print("KERNEL_OK")
</pallas_src>

<mosaic_0001>
module attributes {stable_mosaic.version = 11 : i64} {
  func.func @decoder_layer_kernel(%arg0: i32, %arg1: memref<1x8x32xf32, #tpu.memory_space<vmem>>, %arg2: memref<1x12x32xbf16, #tpu.memory_space<vmem>>, %arg3: memref<1x1x8xf32, #tpu.memory_space<vmem>>, %arg4: memref<1x1x12xf32, #tpu.memory_space<vmem>>, %arg5: memref<1x8x1xf32, #tpu.memory_space<vmem>>, %arg6: memref<32x32xbf16, #tpu.memory_space<vmem>>, %arg7: memref<1x32xf32, #tpu.memory_space<vmem>>, %arg8: memref<32x32xbf16, #tpu.memory_space<vmem>>, %arg9: memref<32x1xf32, #tpu.memory_space<vmem>>, %arg10: memref<32x32xbf16, #tpu.memory_space<vmem>>, %arg11: memref<1x32xf32, #tpu.memory_space<vmem>>, %arg12: memref<2x16x128xbf16, #tpu.memory_space<vmem>>, %arg13: memref<32x32xbf16, #tpu.memory_space<vmem>>, %arg14: memref<1x32xf32, #tpu.memory_space<vmem>>, %arg15: memref<1x32xf32, #tpu.memory_space<vmem>>, %arg16: memref<1x32xf32, #tpu.memory_space<vmem>>, %arg17: memref<32x32xbf16, #tpu.memory_space<vmem>>, %arg18: memref<1x32xf32, #tpu.memory_space<vmem>>, %arg19: memref<32x32xbf16, #tpu.memory_space<vmem>>, %arg20: memref<32x1xf32, #tpu.memory_space<vmem>>, %arg21: memref<32x32xbf16, #tpu.memory_space<vmem>>, %arg22: memref<1x32xf32, #tpu.memory_space<vmem>>, %arg23: memref<2x16x128xbf16, #tpu.memory_space<vmem>>, %arg24: memref<32x32xbf16, #tpu.memory_space<vmem>>, %arg25: memref<1x32xf32, #tpu.memory_space<vmem>>, %arg26: memref<1x32xf32, #tpu.memory_space<vmem>>, %arg27: memref<1x32xf32, #tpu.memory_space<vmem>>, %arg28: memref<1x32xf32, #tpu.memory_space<vmem>>, %arg29: memref<1x32xf32, #tpu.memory_space<vmem>>, %arg30: memref<32x64xbf16, #tpu.memory_space<vmem>>, %arg31: memref<1x64xf32, #tpu.memory_space<vmem>>, %arg32: memref<64x32xbf16, #tpu.memory_space<vmem>>, %arg33: memref<1x32xf32, #tpu.memory_space<vmem>>, %arg34: memref<1x32xf32, #tpu.memory_space<vmem>>, %arg35: memref<1x32xf32, #tpu.memory_space<vmem>>, %arg36: memref<1x8x32xf32, #tpu.memory_space<vmem>>) attributes {dimension_semantics = [#tpu.dimension_semantics<parallel>], iteration_bounds = array<i64: 2>, scalar_prefetch = 0 : i64, scratch_operands = 0 : i64, tpu.core_type = #tpu.core_type<tc>, window_params = [{transform_indices = @transform_0, window_bounds = array<i64: 1, 8, 32>}, {transform_indices = @transform_1, window_bounds = array<i64: 1, 12, 32>}, {transform_indices = @transform_2, window_bounds = array<i64: 1, 1, 8>}, {transform_indices = @transform_3, window_bounds = array<i64: 1, 1, 12>}, {transform_indices = @transform_4, window_bounds = array<i64: 1, 8, 1>}, {pipeline_mode = #tpu.pipeline_mode<synchronous>, transform_indices = @transform_5, window_bounds = array<i64: 32, 32>}, {pipeline_mode = #tpu.pipeline_mode<synchronous>, transform_indices = @transform_6, window_bounds = array<i64: 1, 32>}, {pipeline_mode = #tpu.pipeline_mode<synchronous>, transform_indices = @transform_7, window_bounds = array<i64: 32, 32>}, {pipeline_mode = #tpu.pipeline_mode<synchronous>, transform_indices = @transform_8, window_bounds = array<i64: 32, 1>}, {pipeline_mode = #tpu.pipeline_mode<synchronous>, transform_indices = @transform_9, window_bounds = array<i64: 32, 32>}, {pipeline_mode = #tpu.pipeline_mode<synchronous>, transform_indices = @transform_10, window_bounds = array<i64: 1, 32>}, {pipeline_mode = #tpu.pipeline_mode<synchronous>, transform_indices = @transform_11, window_bounds = array<i64: 2, 16, 128>}, {pipeline_mode = #tpu.pipeline_mode<synchronous>, transform_indices = @transform_12, window_bounds = array<i64: 32, 32>}, {pipeline_mode = #tpu.pipeline_mode<synchronous>, transform_indices = @transform_13, window_bounds = array<i64: 1, 32>}, {pipeline_mode = #tpu.pipeline_mode<synchronous>, transform_indices = @transform_14, window_bounds = array<i64: 1, 32>}, {pipeline_mode = #tpu.pipeline_mode<synchronous>, transform_indices = @transform_15, window_bounds = array<i64: 1, 32>}, {pipeline_mode = #tpu.pipeline_mode<synchronous>, transform_indices = @transform_16, window_bounds = array<i64: 32, 32>}, {pipeline_mode = #tpu.pipeline_mode<synchronous>, transform_indices = @transform_17, window_bounds = array<i64: 1, 32>}, {pipeline_mode = #tpu.pipeline_mode<synchronous>, transform_indices = @transform_18, window_bounds = array<i64: 32, 32>}, {pipeline_mode = #tpu.pipeline_mode<synchronous>, transform_indices = @transform_19, window_bounds = array<i64: 32, 1>}, {pipeline_mode = #tpu.pipeline_mode<synchronous>, transform_indices = @transform_20, window_bounds = array<i64: 32, 32>}, {pipeline_mode = #tpu.pipeline_mode<synchronous>, transform_indices = @transform_21, window_bounds = array<i64: 1, 32>}, {pipeline_mode = #tpu.pipeline_mode<synchronous>, transform_indices = @transform_22, window_bounds = array<i64: 2, 16, 128>}, {pipeline_mode = #tpu.pipeline_mode<synchronous>, transform_indices = @transform_23, window_bounds = array<i64: 32, 32>}, {pipeline_mode = #tpu.pipeline_mode<synchronous>, transform_indices = @transform_24, window_bounds = array<i64: 1, 32>}, {pipeline_mode = #tpu.pipeline_mode<synchronous>, transform_indices = @transform_25, window_bounds = array<i64: 1, 32>}, {pipeline_mode = #tpu.pipeline_mode<synchronous>, transform_indices = @transform_26, window_bounds = array<i64: 1, 32>}, {pipeline_mode = #tpu.pipeline_mode<synchronous>, transform_indices = @transform_27, window_bounds = array<i64: 1, 32>}, {pipeline_mode = #tpu.pipeline_mode<synchronous>, transform_indices = @transform_28, window_bounds = array<i64: 1, 32>}, {pipeline_mode = #tpu.pipeline_mode<synchronous>, transform_indices = @transform_29, window_bounds = array<i64: 32, 64>}, {pipeline_mode = #tpu.pipeline_mode<synchronous>, transform_indices = @transform_30, window_bounds = array<i64: 1, 64>}, {pipeline_mode = #tpu.pipeline_mode<synchronous>, transform_indices = @transform_31, window_bounds = array<i64: 64, 32>}, {pipeline_mode = #tpu.pipeline_mode<synchronous>, transform_indices = @transform_32, window_bounds = array<i64: 1, 32>}, {pipeline_mode = #tpu.pipeline_mode<synchronous>, transform_indices = @transform_33, window_bounds = array<i64: 1, 32>}, {pipeline_mode = #tpu.pipeline_mode<synchronous>, transform_indices = @transform_34, window_bounds = array<i64: 1, 32>}, {transform_indices = @transform_35, window_bounds = array<i64: 1, 8, 32>}]} {
    %c0 = arith.constant 0 : index
    %c0_0 = arith.constant 0 : index
    %c0_1 = arith.constant 0 : index
    %0 = vector.load %arg1[%c0, %c0_0, %c0_1] : memref<1x8x32xf32, #tpu.memory_space<vmem>>, vector<1x8x32xf32>
    %1 = vector.shape_cast %0 : vector<1x8x32xf32> to vector<8x32xf32>
    %c0_2 = arith.constant 0 : index
    %c0_3 = arith.constant 0 : index
    %c0_4 = arith.constant 0 : index
    %2 = vector.load %arg2[%c0_2, %c0_3, %c0_4] : memref<1x12x32xbf16, #tpu.memory_space<vmem>>, vector<1x12x32xbf16>
    %3 = vector.shape_cast %2 : vector<1x12x32xbf16> to vector<12x32xbf16>
    %c0_5 = arith.constant 0 : index
    %c0_6 = arith.constant 0 : index
    %c0_7 = arith.constant 0 : index
    %4 = vector.load %arg5[%c0_5, %c0_6, %c0_7] : memref<1x8x1xf32, #tpu.memory_space<vmem>>, vector<1x8x1xf32>
    %5 = vector.shape_cast %4 : vector<1x8x1xf32> to vector<8x1xf32>
    %6 = vector.shape_cast %5 : vector<8x1xf32> to vector<8x1xf32>
    %7 = vector.broadcast %6 : vector<8x1xf32> to vector<8x32xf32>
    %8 = tpu.iota {dimensions = array<i32: 0>} : vector<8x8xi32>
    %9 = tpu.iota {dimensions = array<i32: 1>} : vector<8x8xi32>
    %10 = arith.cmpi sgt, %9, %8 : vector<8x8xi32>
    %11 = arith.extui %10 : vector<8x8xi1> to vector<8x8xi32>
    %12 = arith.sitofp %11 : vector<8x8xi32> to vector<8x8xf32>
    %c0_8 = arith.constant 0 : index
    %c0_9 = arith.constant 0 : index
    %c0_10 = arith.constant 0 : index
    %13 = vector.load %arg3[%c0_8, %c0_9, %c0_10] : memref<1x1x8xf32, #tpu.memory_space<vmem>>, vector<1x1x8xf32>
    %14 = vector.shape_cast %13 : vector<1x1x8xf32> to vector<1x8xf32>
    %15 = vector.shape_cast %14 : vector<1x8xf32> to vector<1x8xf32>
    %16 = vector.broadcast %15 : vector<1x8xf32> to vector<8x8xf32>
    %17 = arith.addf %12, %16 : vector<8x8xf32>
    %cst = arith.constant -1.000000e+09 : f32
    %18 = vector.broadcast %cst : f32 to vector<8x8xf32>
    %19 = arith.mulf %17, %18 : vector<8x8xf32>
    %c0_11 = arith.constant 0 : index
    %c0_12 = arith.constant 0 : index
    %c0_13 = arith.constant 0 : index
    %20 = vector.load %arg4[%c0_11, %c0_12, %c0_13] : memref<1x1x12xf32, #tpu.memory_space<vmem>>, vector<1x1x12xf32>
    %21 = vector.shape_cast %20 : vector<1x1x12xf32> to vector<1x12xf32>
    %22 = vector.shape_cast %21 : vector<1x12xf32> to vector<1x12xf32>
    %23 = vector.broadcast %22 : vector<1x12xf32> to vector<8x12xf32>
    %cst_14 = arith.constant -1.000000e+09 : f32
    %24 = vector.broadcast %cst_14 : f32 to vector<8x12xf32>
    %25 = arith.mulf %23, %24 : vector<8x12xf32>
    %26 = arith.truncf %1 : vector<8x32xf32> to vector<8x32xbf16>
    %27 = tpu.transpose %26, [1, 0] : vector<8x32xbf16> -> vector<32x8xbf16>
    %c0_15 = arith.constant 0 : index
    %c0_16 = arith.constant 0 : index
    %28 = vector.load %arg6[%c0_15, %c0_16] : memref<32x32xbf16, #tpu.memory_space<vmem>>, vector<32x32xbf16>
    %cst_17 = arith.constant dense<0.000000e+00> : vector<8x32xf32>
    %29 = tpu.matmul %26, %28, %cst_17 {dimension_numbers = #tpu.dot_dimension_numbers<[1], [0], [0], [1], [0, 0, 1, 1], [], []>} : vector<8x32xbf16>, vector<32x32xbf16>, vector<8x32xf32> -> vector<8x32xf32>
    %c0_18 = arith.constant 0 : index
    %c0_19 = arith.constant 0 : index
    %30 = vector.load %arg7[%c0_18, %c0_19] : memref<1x32xf32, #tpu.memory_space<vmem>>, vector<1x32xf32>
    %31 = vector.broadcast %30 : vector<1x32xf32> to vector<8x32xf32>
    %32 = arith.addf %29, %31 : vector<8x32xf32>
    %c0_20 = arith.constant 0 : index
    %c0_21 = arith.constant 0 : index
    %33 = vector.load %arg8[%c0_20, %c0_21] : memref<32x32xbf16, #tpu.memory_space<vmem>>, vector<32x32xbf16>
    %cst_22 = arith.constant dense<0.000000e+00> : vector<32x8xf32>
    %34 = tpu.matmul %33, %27, %cst_22 {dimension_numbers = #tpu.dot_dimension_numbers<[1], [0], [0], [1], [0, 0, 1, 1], [], []>} : vector<32x32xbf16>, vector<32x8xbf16>, vector<32x8xf32> -> vector<32x8xf32>
    %c0_23 = arith.constant 0 : index
    %c0_24 = arith.constant 0 : index
    %35 = vector.load %arg9[%c0_23, %c0_24] : memref<32x1xf32, #tpu.memory_space<vmem>>, vector<32x1xf32>
    %36 = vector.broadcast %35 : vector<32x1xf32> to vector<32x8xf32>
    %37 = arith.addf %34, %36 : vector<32x8xf32>
    %c0_25 = arith.constant 0 : index
    %c0_26 = arith.constant 0 : index
    %38 = vector.load %arg10[%c0_25, %c0_26] : memref<32x32xbf16, #tpu.memory_space<vmem>>, vector<32x32xbf16>
    %cst_27 = arith.constant dense<0.000000e+00> : vector<8x32xf32>
    %39 = tpu.matmul %26, %38, %cst_27 {dimension_numbers = #tpu.dot_dimension_numbers<[1], [0], [0], [1], [0, 0, 1, 1], [], []>} : vector<8x32xbf16>, vector<32x32xbf16>, vector<8x32xf32> -> vector<8x32xf32>
    %c0_28 = arith.constant 0 : index
    %c0_29 = arith.constant 0 : index
    %40 = vector.load %arg11[%c0_28, %c0_29] : memref<1x32xf32, #tpu.memory_space<vmem>>, vector<1x32xf32>
    %41 = vector.broadcast %40 : vector<1x32xf32> to vector<8x32xf32>
    %42 = arith.addf %39, %41 : vector<8x32xf32>
    %c0_30 = arith.constant 0 : index
    %c0_31 = arith.constant 0 : index
    %43 = vector.load %arg28[%c0_30, %c0_31] : memref<1x32xf32, #tpu.memory_space<vmem>>, vector<1x32xf32>
    %44 = vector.broadcast %43 : vector<1x32xf32> to vector<8x32xf32>
    %45 = arith.addf %32, %44 : vector<8x32xf32>
    %46 = arith.truncf %45 : vector<8x32xf32> to vector<8x32xbf16>
    %c0_32 = arith.constant 0 : index
    %c0_33 = arith.constant 0 : index
    %47 = vector.load %arg29[%c0_32, %c0_33] : memref<1x32xf32, #tpu.memory_space<vmem>>, vector<1x32xf32>
    %48 = vector.broadcast %47 : vector<1x32xf32> to vector<8x32xf32>
    %49 = arith.addf %32, %48 : vector<8x32xf32>
    %50 = arith.truncf %49 : vector<8x32xf32> to vector<8x32xbf16>
    %51 = arith.truncf %37 : vector<32x8xf32> to vector<32x8xbf16>
    %52 = arith.truncf %42 : vector<8x32xf32> to vector<8x32xbf16>
    %cst_34 = arith.constant 0.000000e+00 : f32
    %53 = vector.broadcast %cst_34 : f32 to vector<8x32xf32>
    %54 = vector.extract_strided_slice %46 {offsets = [0, 0], sizes = [8, 16], strides = [1, 1]} : vector<8x32xbf16> to vector<8x16xbf16>
    %55 = vector.extract_strided_slice %51 {offsets = [0, 0], sizes = [16, 8], strides = [1, 1]} : vector<32x8xbf16> to vector<16x8xbf16>
    %cst_35 = arith.constant dense<0.000000e+00> : vector<8x8xf32>
    %56 = tpu.matmul %54, %55, %cst_35 {dimension_numbers = #tpu.dot_dimension_numbers<[1], [0], [0], [1], [0, 0, 1, 1], [], []>} : vector<8x16xbf16>, vector<16x8xbf16>, vector<8x8xf32> -> vector<8x8xf32>
    %57 = vector.extract_strided_slice %50 {offsets = [0, 0], sizes = [8, 16], strides = [1, 1]} : vector<8x32xbf16> to vector<8x16xbf16>
    %c0_36 = arith.constant 0 : index
    %c0_37 = arith.constant 0 : index
    %c0_38 = arith.constant 0 : index
    %58 = vector.load %arg12[%c0_36, %c0_37, %c0_38] : memref<2x16x128xbf16, #tpu.memory_space<vmem>>, vector<1x16x128xbf16>
    %59 = vector.shape_cast %58 : vector<1x16x128xbf16> to vector<16x128xbf16>
    %cst_39 = arith.constant dense<0.000000e+00> : vector<8x128xf32>
    %60 = tpu.matmul %57, %59, %cst_39 {dimension_numbers = #tpu.dot_dimension_numbers<[1], [0], [0], [1], [0, 0, 1, 1], [], []>} : vector<8x16xbf16>, vector<16x128xbf16>, vector<8x128xf32> -> vector<8x128xf32>
    %c0_i32 = arith.constant 0 : i32
    %61 = tpu.dynamic_rotate %60 by %c0_i32 dim 1 {stride = 1 : si32, stride_dimension = 0 : si32} : vector<8x128xf32>, i32 -> vector<8x128xf32>
    %62 = vector.extract_strided_slice %61 {offsets = [0, 7], sizes = [8, 8], strides = [1, 1]} : vector<8x128xf32> to vector<8x8xf32>
    %63 = arith.addf %56, %62 : vector<8x8xf32>
    %cst_40 = arith.constant 2.500000e-01 : f32
    %64 = vector.broadcast %cst_40 : f32 to vector<8x8xf32>
    %65 = arith.mulf %63, %64 : vector<8x8xf32>
    %66 = arith.addf %65, %19 : vector<8x8xf32>
    %cst_41 = arith.constant dense<0xFF800000> : vector<8xf32>
    %67 = vector.multi_reduction <maximumf>, %66, %cst_41 [1] : vector<8x8xf32> to vector<8xf32>
    %68 = vector.shape_cast %67 : vector<8xf32> to vector<8x1xf32>
    %69 = vector.broadcast %68 : vector<8x1xf32> to vector<8x8xf32>
    %70 = arith.subf %66, %69 : vector<8x8xf32>
    %71 = math.exp %70 : vector<8x8xf32>
    %cst_42 = arith.constant dense<0.000000e+00> : vector<8xf32>
    %72 = vector.multi_reduction <add>, %71, %cst_42 [1] : vector<8x8xf32> to vector<8xf32>
    %73 = vector.shape_cast %72 : vector<8xf32> to vector<8x1xf32>
    %74 = tpu.reciprocal %73 {approx = true} : vector<8x1xf32> -> vector<8x1xf32>
    %75 = vector.broadcast %74 : vector<8x1xf32> to vector<8x8xf32>
    %76 = arith.mulf %71, %75 : vector<8x8xf32>
    %77 = arith.truncf %76 : vector<8x8xf32> to vector<8x8xbf16>
    %78 = vector.extract_strided_slice %52 {offsets = [0, 0], sizes = [8, 16], strides = [1, 1]} : vector<8x32xbf16> to vector<8x16xbf16>
    %cst_43 = arith.constant dense<0.000000e+00> : vector<8x16xf32>
    %79 = tpu.matmul %77, %78, %cst_43 {dimension_numbers = #tpu.dot_dimension_numbers<[1], [0], [0], [1], [0, 0, 1, 1], [], []>} : vector<8x8xbf16>, vector<8x16xbf16>, vector<8x16xf32> -> vector<8x16xf32>
    %80 = arith.truncf %79 : vector<8x16xf32> to vector<8x16xbf16>
    %c0_44 = arith.constant 0 : index
    %c0_45 = arith.constant 0 : index
    %81 = vector.load %arg13[%c0_44, %c0_45] : memref<32x32xbf16, #tpu.memory_space<vmem>>, vector<16x32xbf16>
    %cst_46 = arith.constant dense<0.000000e+00> : vector<8x32xf32>
    %82 = tpu.matmul %80, %81, %cst_46 {dimension_numbers = #tpu.dot_dimension_numbers<[1], [0], [0], [1], [0, 0, 1, 1], [], []>} : vector<8x16xbf16>, vector<16x32xbf16>, vector<8x32xf32> -> vector<8x32xf32>
    %83 = arith.addf %53, %82 : vector<8x32xf32>
    %84 = vector.extract_strided_slice %46 {offsets = [0, 16], sizes = [8, 16], strides = [1, 1]} : vector<8x32xbf16> to vector<8x16xbf16>
    %85 = vector.extract_strided_slice %51 {offsets = [16, 0], sizes = [16, 8], strides = [1, 1]} : vector<32x8xbf16> to vector<16x8xbf16>
    %cst_47 = arith.constant dense<0.000000e+00> : vector<8x8xf32>
    %86 = tpu.matmul %84, %85, %cst_47 {dimension_numbers = #tpu.dot_dimension_numbers<[1], [0], [0], [1], [0, 0, 1, 1], [], []>} : vector<8x16xbf16>, vector<16x8xbf16>, vector<8x8xf32> -> vector<8x8xf32>
    %87 = vector.extract_strided_slice %50 {offsets = [0, 16], sizes = [8, 16], strides = [1, 1]} : vector<8x32xbf16> to vector<8x16xbf16>
    %c1 = arith.constant 1 : index
    %c0_48 = arith.constant 0 : index
    %c0_49 = arith.constant 0 : index
    %88 = vector.load %arg12[%c1, %c0_48, %c0_49] : memref<2x16x128xbf16, #tpu.memory_space<vmem>>, vector<1x16x128xbf16>
    %89 = vector.shape_cast %88 : vector<1x16x128xbf16> to vector<16x128xbf16>
    %cst_50 = arith.constant dense<0.000000e+00> : vector<8x128xf32>
    %90 = tpu.matmul %87, %89, %cst_50 {dimension_numbers = #tpu.dot_dimension_numbers<[1], [0], [0], [1], [0, 0, 1, 1], [], []>} : vector<8x16xbf16>, vector<16x128xbf16>, vector<8x128xf32> -> vector<8x128xf32>
    %c0_i32_51 = arith.constant 0 : i32
    %91 = tpu.dynamic_rotate %90 by %c0_i32_51 dim 1 {stride = 1 : si32, stride_dimension = 0 : si32} : vector<8x128xf32>, i32 -> vector<8x128xf32>
    %92 = vector.extract_strided_slice %91 {offsets = [0, 7], sizes = [8, 8], strides = [1, 1]} : vector<8x128xf32> to vector<8x8xf32>
    %93 = arith.addf %86, %92 : vector<8x8xf32>
    %cst_52 = arith.constant 2.500000e-01 : f32
    %94 = vector.broadcast %cst_52 : f32 to vector<8x8xf32>
    %95 = arith.mulf %93, %94 : vector<8x8xf32>
    %96 = arith.addf %95, %19 : vector<8x8xf32>
    %cst_53 = arith.constant dense<0xFF800000> : vector<8xf32>
    %97 = vector.multi_reduction <maximumf>, %96, %cst_53 [1] : vector<8x8xf32> to vector<8xf32>
    %98 = vector.shape_cast %97 : vector<8xf32> to vector<8x1xf32>
    %99 = vector.broadcast %98 : vector<8x1xf32> to vector<8x8xf32>
    %100 = arith.subf %96, %99 : vector<8x8xf32>
    %101 = math.exp %100 : vector<8x8xf32>
    %cst_54 = arith.constant dense<0.000000e+00> : vector<8xf32>
    %102 = vector.multi_reduction <add>, %101, %cst_54 [1] : vector<8x8xf32> to vector<8xf32>
    %103 = vector.shape_cast %102 : vector<8xf32> to vector<8x1xf32>
    %104 = tpu.reciprocal %103 {approx = true} : vector<8x1xf32> -> vector<8x1xf32>
    %105 = vector.broadcast %104 : vector<8x1xf32> to vector<8x8xf32>
    %106 = arith.mulf %101, %105 : vector<8x8xf32>
    %107 = arith.truncf %106 : vector<8x8xf32> to vector<8x8xbf16>
    %108 = vector.extract_strided_slice %52 {offsets = [0, 16], sizes = [8, 16], strides = [1, 1]} : vector<8x32xbf16> to vector<8x16xbf16>
    %cst_55 = arith.constant dense<0.000000e+00> : vector<8x16xf32>
    %109 = tpu.matmul %107, %108, %cst_55 {dimension_numbers = #tpu.dot_dimension_numbers<[1], [0], [0], [1], [0, 0, 1, 1], [], []>} : vector<8x8xbf16>, vector<8x16xbf16>, vector<8x16xf32> -> vector<8x16xf32>
    %110 = arith.truncf %109 : vector<8x16xf32> to vector<8x16xbf16>
    %c16 = arith.constant 16 : index
    %c0_56 = arith.constant 0 : index
    %111 = vector.load %arg13[%c16, %c0_56] : memref<32x32xbf16, #tpu.memory_space<vmem>>, vector<16x32xbf16>
    %cst_57 = arith.constant dense<0.000000e+00> : vector<8x32xf32>
    %112 = tpu.matmul %110, %111, %cst_57 {dimension_numbers = #tpu.dot_dimension_numbers<[1], [0], [0], [1], [0, 0, 1, 1], [], []>} : vector<8x16xbf16>, vector<16x32xbf16>, vector<8x32xf32> -> vector<8x32xf32>
    %113 = arith.addf %83, %112 : vector<8x32xf32>
    %c0_58 = arith.constant 0 : index
    %c0_59 = arith.constant 0 : index
    %114 = vector.load %arg14[%c0_58, %c0_59] : memref<1x32xf32, #tpu.memory_space<vmem>>, vector<1x32xf32>
    %115 = vector.broadcast %114 : vector<1x32xf32> to vector<8x32xf32>
    %116 = arith.addf %113, %115 : vector<8x32xf32>
    %117 = arith.addf %116, %1 : vector<8x32xf32>
    %cst_60 = arith.constant dense<0.000000e+00> : vector<8xf32>
    %118 = vector.multi_reduction <add>, %117, %cst_60 [1] : vector<8x32xf32> to vector<8xf32>
    %119 = vector.shape_cast %118 : vector<8xf32> to vector<8x1xf32>
    %cst_61 = arith.constant 3.200000e+01 : f32
    %120 = vector.broadcast %cst_61 : f32 to vector<8x1xf32>
    %121 = arith.divf %119, %120 : vector<8x1xf32>
    %122 = vector.broadcast %121 : vector<8x1xf32> to vector<8x32xf32>
    %123 = arith.subf %117, %122 : vector<8x32xf32>
    %124 = arith.mulf %123, %123 : vector<8x32xf32>
    %cst_62 = arith.constant dense<0.000000e+00> : vector<8xf32>
    %125 = vector.multi_reduction <add>, %124, %cst_62 [1] : vector<8x32xf32> to vector<8xf32>
    %126 = vector.shape_cast %125 : vector<8xf32> to vector<8x1xf32>
    %cst_63 = arith.constant 3.200000e+01 : f32
    %127 = vector.broadcast %cst_63 : f32 to vector<8x1xf32>
    %128 = arith.divf %126, %127 : vector<8x1xf32>
    %cst_64 = arith.constant 9.99999974E-6 : f32
    %129 = vector.broadcast %cst_64 : f32 to vector<8x1xf32>
    %130 = arith.addf %128, %129 : vector<8x1xf32>
    %131 = math.rsqrt %130 : vector<8x1xf32>
    %132 = vector.broadcast %131 : vector<8x1xf32> to vector<8x32xf32>
    %133 = arith.mulf %123, %132 : vector<8x32xf32>
    %c0_65 = arith.constant 0 : index
    %c0_66 = arith.constant 0 : index
    %134 = vector.load %arg15[%c0_65, %c0_66] : memref<1x32xf32, #tpu.memory_space<vmem>>, vector<1x32xf32>
    %135 = vector.broadcast %134 : vector<1x32xf32> to vector<8x32xf32>
    %136 = arith.mulf %133, %135 : vector<8x32xf32>
    %c0_67 = arith.constant 0 : index
    %c0_68 = arith.constant 0 : index
    %137 = vector.load %arg16[%c0_67, %c0_68] : memref<1x32xf32, #tpu.memory_space<vmem>>, vector<1x32xf32>
    %138 = vector.broadcast %137 : vector<1x32xf32> to vector<8x32xf32>
    %139 = arith.addf %136, %138 : vector<8x32xf32>
    %140 = arith.mulf %139, %7 : vector<8x32xf32>
    %141 = arith.truncf %140 : vector<8x32xf32> to vector<8x32xbf16>
    %142 = tpu.transpose %3, [1, 0] : vector<12x32xbf16> -> vector<32x12xbf16>
    %c0_69 = arith.constant 0 : index
    %c0_70 = arith.constant 0 : index
    %143 = vector.load %arg17[%c0_69, %c0_70] : memref<32x32xbf16, #tpu.memory_space<vmem>>, vector<32x32xbf16>
    %cst_71 = arith.constant dense<0.000000e+00> : vector<8x32xf32>
    %144 = tpu.matmul %141, %143, %cst_71 {dimension_numbers = #tpu.dot_dimension_numbers<[1], [0], [0], [1], [0, 0, 1, 1], [], []>} : vector<8x32xbf16>, vector<32x32xbf16>, vector<8x32xf32> -> vector<8x32xf32>
    %c0_72 = arith.constant 0 : index
    %c0_73 = arith.constant 0 : index
    %145 = vector.load %arg18[%c0_72, %c0_73] : memref<1x32xf32, #tpu.memory_space<vmem>>, vector<1x32xf32>
    %146 = vector.broadcast %145 : vector<1x32xf32> to vector<8x32xf32>
    %147 = arith.addf %144, %146 : vector<8x32xf32>
    %c0_74 = arith.constant 0 : index
    %c0_75 = arith.constant 0 : index
    %148 = vector.load %arg19[%c0_74, %c0_75] : memref<32x32xbf16, #tpu.memory_space<vmem>>, vector<32x32xbf16>
    %cst_76 = arith.constant dense<0.000000e+00> : vector<32x12xf32>
    %149 = tpu.matmul %148, %142, %cst_76 {dimension_numbers = #tpu.dot_dimension_numbers<[1], [0], [0], [1], [0, 0, 1, 1], [], []>} : vector<32x32xbf16>, vector<32x12xbf16>, vector<32x12xf32> -> vector<32x12xf32>
    %c0_77 = arith.constant 0 : index
    %c0_78 = arith.constant 0 : index
    %150 = vector.load %arg20[%c0_77, %c0_78] : memref<32x1xf32, #tpu.memory_space<vmem>>, vector<32x1xf32>
    %151 = vector.broadcast %150 : vector<32x1xf32> to vector<32x12xf32>
    %152 = arith.addf %149, %151 : vector<32x12xf32>
    %c0_79 = arith.constant 0 : index
    %c0_80 = arith.constant 0 : index
    %153 = vector.load %arg21[%c0_79, %c0_80] : memref<32x32xbf16, #tpu.memory_space<vmem>>, vector<32x32xbf16>
    %cst_81 = arith.constant dense<0.000000e+00> : vector<12x32xf32>
    %154 = tpu.matmul %3, %153, %cst_81 {dimension_numbers = #tpu.dot_dimension_numbers<[1], [0], [0], [1], [0, 0, 1, 1], [], []>} : vector<12x32xbf16>, vector<32x32xbf16>, vector<12x32xf32> -> vector<12x32xf32>
    %c0_82 = arith.constant 0 : index
    %c0_83 = arith.constant 0 : index
    %155 = vector.load %arg22[%c0_82, %c0_83] : memref<1x32xf32, #tpu.memory_space<vmem>>, vector<1x32xf32>
    %156 = vector.broadcast %155 : vector<1x32xf32> to vector<12x32xf32>
    %157 = arith.addf %154, %156 : vector<12x32xf32>
    %c0_84 = arith.constant 0 : index
    %c0_85 = arith.constant 0 : index
    %158 = vector.load %arg28[%c0_84, %c0_85] : memref<1x32xf32, #tpu.memory_space<vmem>>, vector<1x32xf32>
    %159 = vector.broadcast %158 : vector<1x32xf32> to vector<8x32xf32>
    %160 = arith.addf %147, %159 : vector<8x32xf32>
    %161 = arith.truncf %160 : vector<8x32xf32> to vector<8x32xbf16>
    %c0_86 = arith.constant 0 : index
    %c0_87 = arith.constant 0 : index
    %162 = vector.load %arg29[%c0_86, %c0_87] : memref<1x32xf32, #tpu.memory_space<vmem>>, vector<1x32xf32>
    %163 = vector.broadcast %162 : vector<1x32xf32> to vector<8x32xf32>
    %164 = arith.addf %147, %163 : vector<8x32xf32>
    %165 = arith.truncf %164 : vector<8x32xf32> to vector<8x32xbf16>
    %166 = arith.truncf %152 : vector<32x12xf32> to vector<32x12xbf16>
    %167 = arith.truncf %157 : vector<12x32xf32> to vector<12x32xbf16>
    %cst_88 = arith.constant 0.000000e+00 : f32
    %168 = vector.broadcast %cst_88 : f32 to vector<8x32xf32>
    %169 = vector.extract_strided_slice %161 {offsets = [0, 0], sizes = [8, 16], strides = [1, 1]} : vector<8x32xbf16> to vector<8x16xbf16>
    %170 = vector.extract_strided_slice %166 {offsets = [0, 0], sizes = [16, 12], strides = [1, 1]} : vector<32x12xbf16> to vector<16x12xbf16>
    %cst_89 = arith.constant dense<0.000000e+00> : vector<8x12xf32>
    %171 = tpu.matmul %169, %170, %cst_89 {dimension_numbers = #tpu.dot_dimension_numbers<[1], [0], [0], [1], [0, 0, 1, 1], [], []>} : vector<8x16xbf16>, vector<16x12xbf16>, vector<8x12xf32> -> vector<8x12xf32>
    %172 = vector.extract_strided_slice %165 {offsets = [0, 0], sizes = [8, 16], strides = [1, 1]} : vector<8x32xbf16> to vector<8x16xbf16>
    %c0_90 = arith.constant 0 : index
    %c0_91 = arith.constant 0 : index
    %c0_92 = arith.constant 0 : index
    %173 = vector.load %arg23[%c0_90, %c0_91, %c0_92] : memref<2x16x128xbf16, #tpu.memory_space<vmem>>, vector<1x16x128xbf16>
    %174 = vector.shape_cast %173 : vector<1x16x128xbf16> to vector<16x128xbf16>
    %cst_93 = arith.constant dense<0.000000e+00> : vector<8x128xf32>
    %175 = tpu.matmul %172, %174, %cst_93 {dimension_numbers = #tpu.dot_dimension_numbers<[1], [0], [0], [1], [0, 0, 1, 1], [], []>} : vector<8x16xbf16>, vector<16x128xbf16>, vector<8x128xf32> -> vector<8x128xf32>
    %c0_i32_94 = arith.constant 0 : i32
    %176 = tpu.dynamic_rotate %175 by %c0_i32_94 dim 1 {stride = 1 : si32, stride_dimension = 0 : si32} : vector<8x128xf32>, i32 -> vector<8x128xf32>
    %177 = vector.extract_strided_slice %176 {offsets = [0, 7], sizes = [8, 12], strides = [1, 1]} : vector<8x128xf32> to vector<8x12xf32>
    %178 = arith.addf %171, %177 : vector<8x12xf32>
    %cst_95 = arith.constant 2.500000e-01 : f32
    %179 = vector.broadcast %cst_95 : f32 to vector<8x12xf32>
    %180 = arith.mulf %178, %179 : vector<8x12xf32>
    %181 = arith.addf %180, %25 : vector<8x12xf32>
    %cst_96 = arith.constant dense<0xFF800000> : vector<8xf32>
    %182 = vector.multi_reduction <maximumf>, %181, %cst_96 [1] : vector<8x12xf32> to vector<8xf32>
    %183 = vector.shape_cast %182 : vector<8xf32> to vector<8x1xf32>
    %184 = vector.broadcast %183 : vector<8x1xf32> to vector<8x12xf32>
    %185 = arith.subf %181, %184 : vector<8x12xf32>
    %186 = math.exp %185 : vector<8x12xf32>
    %cst_97 = arith.constant dense<0.000000e+00> : vector<8xf32>
    %187 = vector.multi_reduction <add>, %186, %cst_97 [1] : vector<8x12xf32> to vector<8xf32>
    %188 = vector.shape_cast %187 : vector<8xf32> to vector<8x1xf32>
    %189 = tpu.reciprocal %188 {approx = true} : vector<8x1xf32> -> vector<8x1xf32>
    %190 = vector.broadcast %189 : vector<8x1xf32> to vector<8x12xf32>
    %191 = arith.mulf %186, %190 : vector<8x12xf32>
    %192 = arith.truncf %191 : vector<8x12xf32> to vector<8x12xbf16>
    %193 = vector.extract_strided_slice %167 {offsets = [0, 0], sizes = [12, 16], strides = [1, 1]} : vector<12x32xbf16> to vector<12x16xbf16>
    %cst_98 = arith.constant dense<0.000000e+00> : vector<8x16xf32>
    %194 = tpu.matmul %192, %193, %cst_98 {dimension_numbers = #tpu.dot_dimension_numbers<[1], [0], [0], [1], [0, 0, 1, 1], [], []>} : vector<8x12xbf16>, vector<12x16xbf16>, vector<8x16xf32> -> vector<8x16xf32>
    %195 = arith.truncf %194 : vector<8x16xf32> to vector<8x16xbf16>
    %c0_99 = arith.constant 0 : index
    %c0_100 = arith.constant 0 : index
    %196 = vector.load %arg24[%c0_99, %c0_100] : memref<32x32xbf16, #tpu.memory_space<vmem>>, vector<16x32xbf16>
    %cst_101 = arith.constant dense<0.000000e+00> : vector<8x32xf32>
    %197 = tpu.matmul %195, %196, %cst_101 {dimension_numbers = #tpu.dot_dimension_numbers<[1], [0], [0], [1], [0, 0, 1, 1], [], []>} : vector<8x16xbf16>, vector<16x32xbf16>, vector<8x32xf32> -> vector<8x32xf32>
    %198 = arith.addf %168, %197 : vector<8x32xf32>
    %199 = vector.extract_strided_slice %161 {offsets = [0, 16], sizes = [8, 16], strides = [1, 1]} : vector<8x32xbf16> to vector<8x16xbf16>
    %200 = vector.extract_strided_slice %166 {offsets = [16, 0], sizes = [16, 12], strides = [1, 1]} : vector<32x12xbf16> to vector<16x12xbf16>
    %cst_102 = arith.constant dense<0.000000e+00> : vector<8x12xf32>
    %201 = tpu.matmul %199, %200, %cst_102 {dimension_numbers = #tpu.dot_dimension_numbers<[1], [0], [0], [1], [0, 0, 1, 1], [], []>} : vector<8x16xbf16>, vector<16x12xbf16>, vector<8x12xf32> -> vector<8x12xf32>
    %202 = vector.extract_strided_slice %165 {offsets = [0, 16], sizes = [8, 16], strides = [1, 1]} : vector<8x32xbf16> to vector<8x16xbf16>
    %c1_103 = arith.constant 1 : index
    %c0_104 = arith.constant 0 : index
    %c0_105 = arith.constant 0 : index
    %203 = vector.load %arg23[%c1_103, %c0_104, %c0_105] : memref<2x16x128xbf16, #tpu.memory_space<vmem>>, vector<1x16x128xbf16>
    %204 = vector.shape_cast %203 : vector<1x16x128xbf16> to vector<16x128xbf16>
    %cst_106 = arith.constant dense<0.000000e+00> : vector<8x128xf32>
    %205 = tpu.matmul %202, %204, %cst_106 {dimension_numbers = #tpu.dot_dimension_numbers<[1], [0], [0], [1], [0, 0, 1, 1], [], []>} : vector<8x16xbf16>, vector<16x128xbf16>, vector<8x128xf32> -> vector<8x128xf32>
    %c0_i32_107 = arith.constant 0 : i32
    %206 = tpu.dynamic_rotate %205 by %c0_i32_107 dim 1 {stride = 1 : si32, stride_dimension = 0 : si32} : vector<8x128xf32>, i32 -> vector<8x128xf32>
    %207 = vector.extract_strided_slice %206 {offsets = [0, 7], sizes = [8, 12], strides = [1, 1]} : vector<8x128xf32> to vector<8x12xf32>
    %208 = arith.addf %201, %207 : vector<8x12xf32>
    %cst_108 = arith.constant 2.500000e-01 : f32
    %209 = vector.broadcast %cst_108 : f32 to vector<8x12xf32>
    %210 = arith.mulf %208, %209 : vector<8x12xf32>
    %211 = arith.addf %210, %25 : vector<8x12xf32>
    %cst_109 = arith.constant dense<0xFF800000> : vector<8xf32>
    %212 = vector.multi_reduction <maximumf>, %211, %cst_109 [1] : vector<8x12xf32> to vector<8xf32>
    %213 = vector.shape_cast %212 : vector<8xf32> to vector<8x1xf32>
    %214 = vector.broadcast %213 : vector<8x1xf32> to vector<8x12xf32>
    %215 = arith.subf %211, %214 : vector<8x12xf32>
    %216 = math.exp %215 : vector<8x12xf32>
    %cst_110 = arith.constant dense<0.000000e+00> : vector<8xf32>
    %217 = vector.multi_reduction <add>, %216, %cst_110 [1] : vector<8x12xf32> to vector<8xf32>
    %218 = vector.shape_cast %217 : vector<8xf32> to vector<8x1xf32>
    %219 = tpu.reciprocal %218 {approx = true} : vector<8x1xf32> -> vector<8x1xf32>
    %220 = vector.broadcast %219 : vector<8x1xf32> to vector<8x12xf32>
    %221 = arith.mulf %216, %220 : vector<8x12xf32>
    %222 = arith.truncf %221 : vector<8x12xf32> to vector<8x12xbf16>
    %223 = vector.extract_strided_slice %167 {offsets = [0, 16], sizes = [12, 16], strides = [1, 1]} : vector<12x32xbf16> to vector<12x16xbf16>
    %cst_111 = arith.constant dense<0.000000e+00> : vector<8x16xf32>
    %224 = tpu.matmul %222, %223, %cst_111 {dimension_numbers = #tpu.dot_dimension_numbers<[1], [0], [0], [1], [0, 0, 1, 1], [], []>} : vector<8x12xbf16>, vector<12x16xbf16>, vector<8x16xf32> -> vector<8x16xf32>
    %225 = arith.truncf %224 : vector<8x16xf32> to vector<8x16xbf16>
    %c16_112 = arith.constant 16 : index
    %c0_113 = arith.constant 0 : index
    %226 = vector.load %arg24[%c16_112, %c0_113] : memref<32x32xbf16, #tpu.memory_space<vmem>>, vector<16x32xbf16>
    %cst_114 = arith.constant dense<0.000000e+00> : vector<8x32xf32>
    %227 = tpu.matmul %225, %226, %cst_114 {dimension_numbers = #tpu.dot_dimension_numbers<[1], [0], [0], [1], [0, 0, 1, 1], [], []>} : vector<8x16xbf16>, vector<16x32xbf16>, vector<8x32xf32> -> vector<8x32xf32>
    %228 = arith.addf %198, %227 : vector<8x32xf32>
    %c0_115 = arith.constant 0 : index
    %c0_116 = arith.constant 0 : index
    %229 = vector.load %arg25[%c0_115, %c0_116] : memref<1x32xf32, #tpu.memory_space<vmem>>, vector<1x32xf32>
    %230 = vector.broadcast %229 : vector<1x32xf32> to vector<8x32xf32>
    %231 = arith.addf %228, %230 : vector<8x32xf32>
    %232 = arith.addf %231, %140 : vector<8x32xf32>
    %cst_117 = arith.constant dense<0.000000e+00> : vector<8xf32>
    %233 = vector.multi_reduction <add>, %232, %cst_117 [1] : vector<8x32xf32> to vector<8xf32>
    %234 = vector.shape_cast %233 : vector<8xf32> to vector<8x1xf32>
    %cst_118 = arith.constant 3.200000e+01 : f32
    %235 = vector.broadcast %cst_118 : f32 to vector<8x1xf32>
    %236 = arith.divf %234, %235 : vector<8x1xf32>
    %237 = vector.broadcast %236 : vector<8x1xf32> to vector<8x32xf32>
    %238 = arith.subf %232, %237 : vector<8x32xf32>
    %239 = arith.mulf %238, %238 : vector<8x32xf32>
    %cst_119 = arith.constant dense<0.000000e+00> : vector<8xf32>
    %240 = vector.multi_reduction <add>, %239, %cst_119 [1] : vector<8x32xf32> to vector<8xf32>
    %241 = vector.shape_cast %240 : vector<8xf32> to vector<8x1xf32>
    %cst_120 = arith.constant 3.200000e+01 : f32
    %242 = vector.broadcast %cst_120 : f32 to vector<8x1xf32>
    %243 = arith.divf %241, %242 : vector<8x1xf32>
    %cst_121 = arith.constant 9.99999974E-6 : f32
    %244 = vector.broadcast %cst_121 : f32 to vector<8x1xf32>
    %245 = arith.addf %243, %244 : vector<8x1xf32>
    %246 = math.rsqrt %245 : vector<8x1xf32>
    %247 = vector.broadcast %246 : vector<8x1xf32> to vector<8x32xf32>
    %248 = arith.mulf %238, %247 : vector<8x32xf32>
    %c0_122 = arith.constant 0 : index
    %c0_123 = arith.constant 0 : index
    %249 = vector.load %arg26[%c0_122, %c0_123] : memref<1x32xf32, #tpu.memory_space<vmem>>, vector<1x32xf32>
    %250 = vector.broadcast %249 : vector<1x32xf32> to vector<8x32xf32>
    %251 = arith.mulf %248, %250 : vector<8x32xf32>
    %c0_124 = arith.constant 0 : index
    %c0_125 = arith.constant 0 : index
    %252 = vector.load %arg27[%c0_124, %c0_125] : memref<1x32xf32, #tpu.memory_space<vmem>>, vector<1x32xf32>
    %253 = vector.broadcast %252 : vector<1x32xf32> to vector<8x32xf32>
    %254 = arith.addf %251, %253 : vector<8x32xf32>
    %255 = arith.mulf %254, %7 : vector<8x32xf32>
    %256 = arith.truncf %255 : vector<8x32xf32> to vector<8x32xbf16>
    %c0_126 = arith.constant 0 : index
    %c0_127 = arith.constant 0 : index
    %257 = vector.load %arg30[%c0_126, %c0_127] : memref<32x64xbf16, #tpu.memory_space<vmem>>, vector<32x64xbf16>
    %cst_128 = arith.constant dense<0.000000e+00> : vector<8x64xf32>
    %258 = tpu.matmul %256, %257, %cst_128 {dimension_numbers = #tpu.dot_dimension_numbers<[1], [0], [0], [1], [0, 0, 1, 1], [], []>} : vector<8x32xbf16>, vector<32x64xbf16>, vector<8x64xf32> -> vector<8x64xf32>
    %c0_129 = arith.constant 0 : index
    %c0_130 = arith.constant 0 : index
    %259 = vector.load %arg31[%c0_129, %c0_130] : memref<1x64xf32, #tpu.memory_space<vmem>>, vector<1x64xf32>
    %260 = vector.broadcast %259 : vector<1x64xf32> to vector<8x64xf32>
    %261 = arith.addf %258, %260 : vector<8x64xf32>
    %cst_131 = arith.constant 0.000000e+00 : f32
    %262 = vector.broadcast %cst_131 : f32 to vector<8x64xf32>
    %263 = arith.maximumf %261, %262 : vector<8x64xf32>
    %264 = arith.truncf %263 : vector<8x64xf32> to vector<8x64xbf16>
    %c0_132 = arith.constant 0 : index
    %c0_133 = arith.constant 0 : index
    %265 = vector.load %arg32[%c0_132, %c0_133] : memref<64x32xbf16, #tpu.memory_space<vmem>>, vector<64x32xbf16>
    %cst_134 = arith.constant dense<0.000000e+00> : vector<8x32xf32>
    %266 = tpu.matmul %264, %265, %cst_134 {dimension_numbers = #tpu.dot_dimension_numbers<[1], [0], [0], [1], [0, 0, 1, 1], [], []>} : vector<8x64xbf16>, vector<64x32xbf16>, vector<8x32xf32> -> vector<8x32xf32>
    %c0_135 = arith.constant 0 : index
    %c0_136 = arith.constant 0 : index
    %267 = vector.load %arg33[%c0_135, %c0_136] : memref<1x32xf32, #tpu.memory_space<vmem>>, vector<1x32xf32>
    %268 = vector.broadcast %267 : vector<1x32xf32> to vector<8x32xf32>
    %269 = arith.addf %266, %268 : vector<8x32xf32>
    %270 = arith.addf %269, %255 : vector<8x32xf32>
    %cst_137 = arith.constant dense<0.000000e+00> : vector<8xf32>
    %271 = vector.multi_reduction <add>, %270, %cst_137 [1] : vector<8x32xf32> to vector<8xf32>
    %272 = vector.shape_cast %271 : vector<8xf32> to vector<8x1xf32>
    %cst_138 = arith.constant 3.200000e+01 : f32
    %273 = vector.broadcast %cst_138 : f32 to vector<8x1xf32>
    %274 = arith.divf %272, %273 : vector<8x1xf32>
    %275 = vector.broadcast %274 : vector<8x1xf32> to vector<8x32xf32>
    %276 = arith.subf %270, %275 : vector<8x32xf32>
    %277 = arith.mulf %276, %276 : vector<8x32xf32>
    %cst_139 = arith.constant dense<0.000000e+00> : vector<8xf32>
    %278 = vector.multi_reduction <add>, %277, %cst_139 [1] : vector<8x32xf32> to vector<8xf32>
    %279 = vector.shape_cast %278 : vector<8xf32> to vector<8x1xf32>
    %cst_140 = arith.constant 3.200000e+01 : f32
    %280 = vector.broadcast %cst_140 : f32 to vector<8x1xf32>
    %281 = arith.divf %279, %280 : vector<8x1xf32>
    %cst_141 = arith.constant 9.99999974E-6 : f32
    %282 = vector.broadcast %cst_141 : f32 to vector<8x1xf32>
    %283 = arith.addf %281, %282 : vector<8x1xf32>
    %284 = math.rsqrt %283 : vector<8x1xf32>
    %285 = vector.broadcast %284 : vector<8x1xf32> to vector<8x32xf32>
    %286 = arith.mulf %276, %285 : vector<8x32xf32>
    %c0_142 = arith.constant 0 : index
    %c0_143 = arith.constant 0 : index
    %287 = vector.load %arg34[%c0_142, %c0_143] : memref<1x32xf32, #tpu.memory_space<vmem>>, vector<1x32xf32>
    %288 = vector.broadcast %287 : vector<1x32xf32> to vector<8x32xf32>
    %289 = arith.mulf %286, %288 : vector<8x32xf32>
    %c0_144 = arith.constant 0 : index
    %c0_145 = arith.constant 0 : index
    %290 = vector.load %arg35[%c0_144, %c0_145] : memref<1x32xf32, #tpu.memory_space<vmem>>, vector<1x32xf32>
    %291 = vector.broadcast %290 : vector<1x32xf32> to vector<8x32xf32>
    %292 = arith.addf %289, %291 : vector<8x32xf32>
    %293 = arith.mulf %292, %7 : vector<8x32xf32>
    %c0_146 = arith.constant 0 : index
    %c0_147 = arith.constant 0 : index
    %c0_148 = arith.constant 0 : index
    %294 = vector.load %arg36[%c0_146, %c0_147, %c0_148] : memref<1x8x32xf32, #tpu.memory_space<vmem>>, vector<1x8x32xf32>
    %295 = vector.shape_cast %294 : vector<1x8x32xf32> to vector<8x32xf32>
    %296 = vector.shape_cast %293 : vector<8x32xf32> to vector<1x8x32xf32>
    tpu.vector_store %arg36[%c0_146, %c0_147, %c0_148], %296 {strides = array<i32>} : memref<1x8x32xf32, #tpu.memory_space<vmem>>, vector<1x8x32xf32>,
    return
  }
  func.func @transform_0(%arg0: i32) -> (i32, i32, i32) {
    %c0_i32 = arith.constant 0 : i32
    %c0_i32_0 = arith.constant 0 : i32
    %c0_i32_1 = arith.constant 0 : i32
    return %arg0, %c0_i32, %c0_i32_0 : i32, i32, i32
  }
  func.func @transform_1(%arg0: i32) -> (i32, i32, i32) {
    %c0_i32 = arith.constant 0 : i32
    %c0_i32_0 = arith.constant 0 : i32
    %c0_i32_1 = arith.constant 0 : i32
    return %arg0, %c0_i32, %c0_i32_0 : i32, i32, i32
  }
  func.func @transform_2(%arg0: i32) -> (i32, i32, i32) {
    %c0_i32 = arith.constant 0 : i32
    %c0_i32_0 = arith.constant 0 : i32
    %c0_i32_1 = arith.constant 0 : i32
    return %arg0, %c0_i32, %c0_i32_0 : i32, i32, i32
  }
  func.func @transform_3(%arg0: i32) -> (i32, i32, i32) {
    %c0_i32 = arith.constant 0 : i32
    %c0_i32_0 = arith.constant 0 : i32
    %c0_i32_1 = arith.constant 0 : i32
    return %arg0, %c0_i32, %c0_i32_0 : i32, i32, i32
  }
  func.func @transform_4(%arg0: i32) -> (i32, i32, i32) {
    %c0_i32 = arith.constant 0 : i32
    %c0_i32_0 = arith.constant 0 : i32
    %c0_i32_1 = arith.constant 0 : i32
    return %arg0, %c0_i32, %c0_i32_0 : i32, i32, i32
  }
  func.func @transform_5(%arg0: i32) -> (i32, i32) {
    %c0_i32 = arith.constant 0 : i32
    %c0_i32_0 = arith.constant 0 : i32
    %c0_i32_1 = arith.constant 0 : i32
    return %c0_i32, %c0_i32_0 : i32, i32
  }
  func.func @transform_6(%arg0: i32) -> (i32, i32) {
    %c0_i32 = arith.constant 0 : i32
    %c0_i32_0 = arith.constant 0 : i32
    %c0_i32_1 = arith.constant 0 : i32
    return %c0_i32, %c0_i32_0 : i32, i32
  }
  func.func @transform_7(%arg0: i32) -> (i32, i32) {
    %c0_i32 = arith.constant 0 : i32
    %c0_i32_0 = arith.constant 0 : i32
    %c0_i32_1 = arith.constant 0 : i32
    return %c0_i32, %c0_i32_0 : i32, i32
  }
  func.func @transform_8(%arg0: i32) -> (i32, i32) {
    %c0_i32 = arith.constant 0 : i32
    %c0_i32_0 = arith.constant 0 : i32
    %c0_i32_1 = arith.constant 0 : i32
    return %c0_i32, %c0_i32_0 : i32, i32
  }
  func.func @transform_9(%arg0: i32) -> (i32, i32) {
    %c0_i32 = arith.constant 0 : i32
    %c0_i32_0 = arith.constant 0 : i32
    %c0_i32_1 = arith.constant 0 : i32
    return %c0_i32, %c0_i32_0 : i32, i32
  }
  func.func @transform_10(%arg0: i32) -> (i32, i32) {
    %c0_i32 = arith.constant 0 : i32
    %c0_i32_0 = arith.constant 0 : i32
    %c0_i32_1 = arith.constant 0 : i32
    return %c0_i32, %c0_i32_0 : i32, i32
  }
  func.func @transform_11(%arg0: i32) -> (i32, i32, i32) {
    %c0_i32 = arith.constant 0 : i32
    %c0_i32_0 = arith.constant 0 : i32
    %c0_i32_1 = arith.constant 0 : i32
    %c0_i32_2 = arith.constant 0 : i32
    return %c0_i32, %c0_i32_0, %c0_i32_1 : i32, i32, i32
  }
  func.func @transform_12(%arg0: i32) -> (i32, i32) {
    %c0_i32 = arith.constant 0 : i32
    %c0_i32_0 = arith.constant 0 : i32
    %c0_i32_1 = arith.constant 0 : i32
    return %c0_i32, %c0_i32_0 : i32, i32
  }
  func.func @transform_13(%arg0: i32) -> (i32, i32) {
    %c0_i32 = arith.constant 0 : i32
    %c0_i32_0 = arith.constant 0 : i32
    %c0_i32_1 = arith.constant 0 : i32
    return %c0_i32, %c0_i32_0 : i32, i32
  }
  func.func @transform_14(%arg0: i32) -> (i32, i32) {
    %c0_i32 = arith.constant 0 : i32
    %c0_i32_0 = arith.constant 0 : i32
    %c0_i32_1 = arith.constant 0 : i32
    return %c0_i32, %c0_i32_0 : i32, i32
  }
  func.func @transform_15(%arg0: i32) -> (i32, i32) {
    %c0_i32 = arith.constant 0 : i32
    %c0_i32_0 = arith.constant 0 : i32
    %c0_i32_1 = arith.constant 0 : i32
    return %c0_i32, %c0_i32_0 : i32, i32
  }
  func.func @transform_16(%arg0: i32) -> (i32, i32) {
    %c0_i32 = arith.constant 0 : i32
    %c0_i32_0 = arith.constant 0 : i32
    %c0_i32_1 = arith.constant 0 : i32
    return %c0_i32, %c0_i32_0 : i32, i32
  }
  func.func @transform_17(%arg0: i32) -> (i32, i32) {
    %c0_i32 = arith.constant 0 : i32
    %c0_i32_0 = arith.constant 0 : i32
    %c0_i32_1 = arith.constant 0 : i32
    return %c0_i32, %c0_i32_0 : i32, i32
  }
  func.func @transform_18(%arg0: i32) -> (i32, i32) {
    %c0_i32 = arith.constant 0 : i32
    %c0_i32_0 = arith.constant 0 : i32
    %c0_i32_1 = arith.constant 0 : i32
    return %c0_i32, %c0_i32_0 : i32, i32
  }
  func.func @transform_19(%arg0: i32) -> (i32, i32) {
    %c0_i32 = arith.constant 0 : i32
    %c0_i32_0 = arith.constant 0 : i32
    %c0_i32_1 = arith.constant 0 : i32
    return %c0_i32, %c0_i32_0 : i32, i32
  }
  func.func @transform_20(%arg0: i32) -> (i32, i32) {
    %c0_i32 = arith.constant 0 : i32
    %c0_i32_0 = arith.constant 0 : i32
    %c0_i32_1 = arith.constant 0 : i32
    return %c0_i32, %c0_i32_0 : i32, i32
  }
  func.func @transform_21(%arg0: i32) -> (i32, i32) {
    %c0_i32 = arith.constant 0 : i32
    %c0_i32_0 = arith.constant 0 : i32
    %c0_i32_1 = arith.constant 0 : i32
    return %c0_i32, %c0_i32_0 : i32, i32
  }
  func.func @transform_22(%arg0: i32) -> (i32, i32, i32) {
    %c0_i32 = arith.constant 0 : i32
    %c0_i32_0 = arith.constant 0 : i32
    %c0_i32_1 = arith.constant 0 : i32
    %c0_i32_2 = arith.constant 0 : i32
    return %c0_i32, %c0_i32_0, %c0_i32_1 : i32, i32, i32
  }
  func.func @transform_23(%arg0: i32) -> (i32, i32) {
    %c0_i32 = arith.constant 0 : i32
    %c0_i32_0 = arith.constant 0 : i32
    %c0_i32_1 = arith.constant 0 : i32
    return %c0_i32, %c0_i32_0 : i32, i32
  }
  func.func @transform_24(%arg0: i32) -> (i32, i32) {
    %c0_i32 = arith.constant 0 : i32
    %c0_i32_0 = arith.constant 0 : i32
    %c0_i32_1 = arith.constant 0 : i32
    return %c0_i32, %c0_i32_0 : i32, i32
  }
  func.func @transform_25(%arg0: i32) -> (i32, i32) {
    %c0_i32 = arith.constant 0 : i32
    %c0_i32_0 = arith.constant 0 : i32
    %c0_i32_1 = arith.constant 0 : i32
    return %c0_i32, %c0_i32_0 : i32, i32
  }
  func.func @transform_26(%arg0: i32) -> (i32, i32) {
    %c0_i32 = arith.constant 0 : i32
    %c0_i32_0 = arith.constant 0 : i32
    %c0_i32_1 = arith.constant 0 : i32
    return %c0_i32, %c0_i32_0 : i32, i32
  }
  func.func @transform_27(%arg0: i32) -> (i32, i32) {
    %c0_i32 = arith.constant 0 : i32
    %c0_i32_0 = arith.constant 0 : i32
    %c0_i32_1 = arith.constant 0 : i32
    return %c0_i32, %c0_i32_0 : i32, i32
  }
  func.func @transform_28(%arg0: i32) -> (i32, i32) {
    %c0_i32 = arith.constant 0 : i32
    %c0_i32_0 = arith.constant 0 : i32
    %c0_i32_1 = arith.constant 0 : i32
    return %c0_i32, %c0_i32_0 : i32, i32
  }
  func.func @transform_29(%arg0: i32) -> (i32, i32) {
    %c0_i32 = arith.constant 0 : i32
    %c0_i32_0 = arith.constant 0 : i32
    %c0_i32_1 = arith.constant 0 : i32
    return %c0_i32, %c0_i32_0 : i32, i32
  }
  func.func @transform_30(%arg0: i32) -> (i32, i32) {
    %c0_i32 = arith.constant 0 : i32
    %c0_i32_0 = arith.constant 0 : i32
    %c0_i32_1 = arith.constant 0 : i32
    return %c0_i32, %c0_i32_0 : i32, i32
  }
  func.func @transform_31(%arg0: i32) -> (i32, i32) {
    %c0_i32 = arith.constant 0 : i32
    %c0_i32_0 = arith.constant 0 : i32
    %c0_i32_1 = arith.constant 0 : i32
    return %c0_i32, %c0_i32_0 : i32, i32
  }
  func.func @transform_32(%arg0: i32) -> (i32, i32) {
    %c0_i32 = arith.constant 0 : i32
    %c0_i32_0 = arith.constant 0 : i32
    %c0_i32_1 = arith.constant 0 : i32
    return %c0_i32, %c0_i32_0 : i32, i32
  }
  func.func @transform_33(%arg0: i32) -> (i32, i32) {
    %c0_i32 = arith.constant 0 : i32
    %c0_i32_0 = arith.constant 0 : i32
    %c0_i32_1 = arith.constant 0 : i32
    return %c0_i32, %c0_i32_0 : i32, i32
  }
  func.func @transform_34(%arg0: i32) -> (i32, i32) {
    %c0_i32 = arith.constant 0 : i32
    %c0_i32_0 = arith.constant 0 : i32
    %c0_i32_1 = arith.constant 0 : i32
    return %c0_i32, %c0_i32_0 : i32, i32
  }
  func.func @transform_35(%arg0: i32) -> (i32, i32, i32) {
    %c0_i32 = arith.constant 0 : i32
    %c0_i32_0 = arith.constant 0 : i32
    %c0_i32_1 = arith.constant 0 : i32
    return %arg0, %c0_i32, %c0_i32_0 : i32, i32, i32
  }
}

</mosaic_0001>

<llo_original>
// kernel: tpu_custom_call.1
$region0: #{tpu_custom_call.1}
  #allocation0 [shape = 'u32[]', space=smem, size = 0x4, offset = 0x4, fixed_abs, tag = 'smem constant byte address 0x4 - core index']
  #allocation1 [shape = 'u32[144,128]{1,0:T(1,128)}', space=vmem, size = 0x12000, scoped, tag = 'internal scratch']
  %s0 = inlined_call_operand.smem [shape: u32[36], index: -1, kind: input, shape index: {}]
  %s1 = sld [smem:[%s0]]
  %s2 = scalar_lea.smem %s0, 1
  %s3 = sld [smem:[%s2]]
  %s4 = scalar_lea.smem %s0, 2
  %s5 = sld [smem:[%s4]]
  %s6 = scalar_lea.smem %s0, 3
  %s7 = sld [smem:[%s6]]
  %s8 = scalar_lea.smem %s0, 4
  %s9 = sld [smem:[%s8]]
  %s10 = scalar_lea.smem %s0, 5
  %s11 = sld [smem:[%s10]]
  %s12 = scalar_lea.smem %s0, 6
  %s13 = sld [smem:[%s12]]
  %s14 = scalar_lea.smem %s0, 7
  %s15 = sld [smem:[%s14]]
  %s16 = scalar_lea.smem %s0, 8
  %s17 = sld [smem:[%s16]]
  %s18 = scalar_lea.smem %s0, 9
  %s19 = sld [smem:[%s18]]
  %s20 = scalar_lea.smem %s0, 10
  %s21 = sld [smem:[%s20]]
  %s22 = scalar_lea.smem %s0, 11
  %s23 = sld [smem:[%s22]]
  %s24 = scalar_lea.smem %s0, 12
  %s25 = sld [smem:[%s24]]
  %s26 = scalar_lea.smem %s0, 13
  %s27 = sld [smem:[%s26]]
  %s28 = scalar_lea.smem %s0, 14
  %s29 = sld [smem:[%s28]]
  %s30 = scalar_lea.smem %s0, 15
  %s31 = sld [smem:[%s30]]
  %s32 = scalar_lea.smem %s0, 16
  %s33 = sld [smem:[%s32]]
  %s34 = scalar_lea.smem %s0, 17
  %s35 = sld [smem:[%s34]]
  %s36 = scalar_lea.smem %s0, 18
  %s37 = sld [smem:[%s36]]
  %s38 = scalar_lea.smem %s0, 19
  %s39 = sld [smem:[%s38]]
  %s40 = scalar_lea.smem %s0, 20
  %s41 = sld [smem:[%s40]]
  %s42 = scalar_lea.smem %s0, 21
  %s43 = sld [smem:[%s42]]
  %s44 = scalar_lea.smem %s0, 22
  %s45 = sld [smem:[%s44]]
  %s46 = scalar_lea.smem %s0, 23
  %s47 = sld [smem:[%s46]]
  %s48 = scalar_lea.smem %s0, 24
  %s49 = sld [smem:[%s48]]
  %s50 = scalar_lea.smem %s0, 25
  %s51 = sld [smem:[%s50]]
  %s52 = scalar_lea.smem %s0, 26
  %s53 = sld [smem:[%s52]]
  %s54 = scalar_lea.smem %s0, 27
  %s55 = sld [smem:[%s54]]
  %s56 = scalar_lea.smem %s0, 28
  %s57 = sld [smem:[%s56]]
  %s58 = scalar_lea.smem %s0, 29
  %s59 = sld [smem:[%s58]]
  %s60 = scalar_lea.smem %s0, 30
  %s61 = sld [smem:[%s60]]
  %s62 = scalar_lea.smem %s0, 31
  %s63 = sld [smem:[%s62]]
  %s64 = scalar_lea.smem %s0, 32
  %s65 = sld [smem:[%s64]]
  %s66 = scalar_lea.smem %s0, 33
  %s67 = sld [smem:[%s66]]
  %s68 = scalar_lea.smem %s0, 34
  %s69 = sld [smem:[%s68]]
  %s70 = scalar_lea.smem %s0, 35
  %s71 = sld [smem:[%s70]]
  %s72 = sld [smem:[#allocation0]]
  $region189: #{tpu_custom_call.1} parent=0
    _
  %s74 = ssub.s32 1, %s72
  %s75 = scalar_select 0, %s74, %s72
  $region1: #{tpu_custom_call.1} parent=0
    #allocation2 [shape = 'u8[1024]{0}', space=vmem, size = 0x400, scoped, tag = 'input window, operand 2']
    #allocation3 [shape = 's32[2]{0}', space=sflag, size = 0x8, scoped, tag = 'scoped memory for tpu_custom_call.1']
    #allocation4 [shape = 's32[2]{0}', space=sflag, size = 0x8, scoped, tag = 'scoped memory for tpu_custom_call.1']
    #allocation5 [shape = 'u8[1024]{0}', space=vmem, size = 0x400, scoped, tag = 'input window, operand 3']
    #allocation6 [shape = 's32[2]{0}', space=sflag, size = 0x8, scoped, tag = 'scoped memory for tpu_custom_call.1']
    #allocation7 [shape = 'u8[512]{0}', space=vmem, size = 0x400, scoped, tag = 'input window, operand 10, single buffered']
    #allocation8 [shape = 'u8[512]{0}', space=vmem, size = 0x400, scoped, tag = 'input window, operand 13, single buffered']
    #allocation9 [shape = 's32[1]{0}', space=sflag, size = 0x4, scoped, tag = 'scoped memory for tpu_custom_call.1']
    #allocation10 [shape = 'u8[8192]{0}', space=vmem, size = 0x2000, scoped, tag = 'output window, operand 0']
    %76 = vsyncpa [#allocation3], 0
    %s77 = scalar_lea.sflag [#allocation3], 1
    %78 = vsyncpa %s77, 0
    %79 = vsyncpa [#allocation6], 0
    %s80 = scalar_lea.sflag [#allocation6], 1
    %81 = vsyncpa %s80, 0
    %82 = vsyncpa [#allocation9], 0
    %83 = vsyncpa [#allocation4], 0
    %s84 = scalar_lea.sflag [#allocation4], 1
    %85 = vsyncpa %s84, 0
    loop: start=0, step=1, limit=4
    $region2: #{tpu_custom_call.1} parent=1 // loop_pre_header
      _
    $region3: #{tpu_custom_call.1} parent=1 // loop_header
      %s87 = sphi 0, %s91
      %p88 = scmp.ge.s32.totalorder %s87, 4
      %s97 = sphi 0, %s99
      %s100 = sphi 0, %s97
      %s101 = sphi 0, %s100
      %s117 = sphi 0, %s101
      %s123 = sphi 0, %s125
      %s126 = sphi 0, %s123
      %s127 = sphi 0, %s126
      %s143 = sphi 0, %s127
      %s149 = sphi 0, %s151
      %s152 = sphi 0, %s149
      %s153 = sphi 0, %s152
      %s169 = sphi 0, %s153
      %s175 = sphi 0, %s177
      %s178 = sphi 0, %s175
      %s179 = sphi 0, %s178
      %s195 = sphi 0, %s179
      %s201 = sphi 0, %s203
      %s204 = sphi 0, %s201
      %s205 = sphi 0, %s204
      %s221 = sphi 0, %s205
      %s225 = sphi 0, %s225
      %s227 = sphi 0, %s225
      %s228 = sphi 0, %s227
      %s242 = sphi 0, %s228
      %s246 = sphi 0, %s246
      %s248 = sphi 0, %s246
      %s249 = sphi 0, %s248
      %s263 = sphi 0, %s249
      %s267 = sphi 0, %s267
      %s269 = sphi 0, %s267
      %s270 = sphi 0, %s269
      %s284 = sphi 0, %s270
      %s288 = sphi 0, %s288
      %s290 = sphi 0, %s288
      %s291 = sphi 0, %s290
      %s305 = sphi 0, %s291
      %s309 = sphi 0, %s309
      %s311 = sphi 0, %s309
      %s312 = sphi 0, %s311
      %s326 = sphi 0, %s312
      %s330 = sphi 0, %s330
      %s332 = sphi 0, %s330
      %s333 = sphi 0, %s332
      %s347 = sphi 0, %s333
      %s351 = sphi 0, %s351
      %s353 = sphi 0, %s351
      %s354 = sphi 0, %s353
      %s368 = sphi 0, %s354
      %s372 = sphi 0, %s372
      %s374 = sphi 0, %s372
      %s375 = sphi 0, %s374
      %s389 = sphi 0, %s375
      %s393 = sphi 0, %s393
      %s395 = sphi 0, %s393
      %s396 = sphi 0, %s395
      %s410 = sphi 0, %s396
      %s414 = sphi 0, %s414
      %s416 = sphi 0, %s414
      %s417 = sphi 0, %s416
      %s431 = sphi 0, %s417
      %s435 = sphi 0, %s435
      %s437 = sphi 0, %s435
      %s438 = sphi 0, %s437
      %s452 = sphi 0, %s438
      %s456 = sphi 0, %s456
      %s458 = sphi 0, %s456
      %s459 = sphi 0, %s458
      %s473 = sphi 0, %s459
      %s477 = sphi 0, %s477
      %s479 = sphi 0, %s477
      %s480 = sphi 0, %s479
      %s494 = sphi 0, %s480
      %s498 = sphi 0, %s498
      %s500 = sphi 0, %s498
      %s501 = sphi 0, %s500
      %s515 = sphi 0, %s501
      %s519 = sphi 0, %s519
      %s521 = sphi 0, %s519
      %s522 = sphi 0, %s521
      %s536 = sphi 0, %s522
      %s540 = sphi 0, %s540
      %s542 = sphi 0, %s540
      %s543 = sphi 0, %s542
      %s557 = sphi 0, %s543
      %s561 = sphi 0, %s561
      %s563 = sphi 0, %s561
      %s564 = sphi 0, %s563
      %s578 = sphi 0, %s564
      %s582 = sphi 0, %s582
      %s584 = sphi 0, %s582
      %s585 = sphi 0, %s584
      %s599 = sphi 0, %s585
      %s603 = sphi 0, %s603
      %s605 = sphi 0, %s603
      %s606 = sphi 0, %s605
      %s620 = sphi 0, %s606
      %s624 = sphi 0, %s624
      %s626 = sphi 0, %s624
      %s627 = sphi 0, %s626
      %s641 = sphi 0, %s627
      %s645 = sphi 0, %s645
      %s647 = sphi 0, %s645
      %s648 = sphi 0, %s647
      %s662 = sphi 0, %s648
      %s666 = sphi 0, %s666
      %s668 = sphi 0, %s666
      %s669 = sphi 0, %s668
      %s683 = sphi 0, %s669
      %s687 = sphi 0, %s687
      %s689 = sphi 0, %s687
      %s690 = sphi 0, %s689
      %s704 = sphi 0, %s690
      %s708 = sphi 0, %s708
      %s710 = sphi 0, %s708
      %s711 = sphi 0, %s710
      %s725 = sphi 0, %s711
      %s729 = sphi 0, %s729
      %s731 = sphi 0, %s729
      %s732 = sphi 0, %s731
      %s746 = sphi 0, %s732
      %s750 = sphi 0, %s750
      %s752 = sphi 0, %s750
      %s753 = sphi 0, %s752
      %s767 = sphi 0, %s753
      %s771 = sphi 0, %s771
      %s773 = sphi 0, %s771
      %s774 = sphi 0, %s773
      %s788 = sphi 0, %s774
      %s792 = sphi 0, %s792
      %s794 = sphi 0, %s792
      %s795 = sphi 0, %s794
      %s809 = sphi 0, %s795
      %s813 = sphi 0, %s813
      %s815 = sphi 0, %s813
      %s816 = sphi 0, %s815
      %s830 = sphi 0, %s816
      %s834 = sphi 0, %s834
      %s836 = sphi 0, %s834
      %s837 = sphi 0, %s836
      %s851 = sphi 0, %s837
      %s857 = sphi 0, %s859
      %s860 = sphi 0, %s857
      %s861 = sphi 0, %s860
      %s877 = sphi 0, %s861
    $region4: #{tpu_custom_call.1} parent=1 // loop_header_branch
      %90 = sbr.rel (%p88) target = $region8
    $region5: #{tpu_custom_call.1} parent=1 // loop_body
      %s92 = ssub.s32 %s87, 1
      %s93 = ssub.s32 %s87, 2
      %s94 = sadd.s32 %s87, 1
      %s95 = ssub.s32 %s87, %s94
      %p96 = scmp.eq.s32.totalorder %s95, 0
      %s98 = sadd.s32 %s97, 1
      %s99 = scalar_select %p96, %s97, %s98
      %p102 = pneg %p96
      %p103 = scmp.eq.s32.totalorder %s87, 1
      %p104 = por %p102, %p103
      %p105 = scmp.ne.s32.totalorder %s97, %s100
      %p106 = scmp.eq.s32.totalorder %s87, 0
      %p107 = por %p105, %p106
      %p108 = scmp.ne.s32.totalorder %s97, %s100
      %p109 = scmp.eq.s32.totalorder %s92, 1
      %p110 = por %p108, %p109
      %p111 = scmp.ne.s32.totalorder %s100, %s101
      %p112 = scmp.eq.s32.totalorder %s92, 0
      %p113 = por %p111, %p112
      %p114 = scmp.ne.s32.totalorder %s100, %s101
      %p115 = scmp.eq.s32.totalorder %s93, 1
      %p116 = por %p114, %p115
      %p118 = scmp.ne.s32.totalorder %s101, %s117
      %p119 = scmp.eq.s32.totalorder %s93, 0
      %p120 = por %p118, %p119
      %s121 = ssub.s32 %s87, %s94
      %p122 = scmp.eq.s32.totalorder %s121, 0
      %s124 = sadd.s32 %s123, 1
      %s125 = scalar_select %p122, %s123, %s124
      %p128 = pneg %p122
      %p129 = scmp.eq.s32.totalorder %s87, 1
      %p130 = por %p128, %p129
      %p131 = scmp.ne.s32.totalorder %s123, %s126
      %p132 = scmp.eq.s32.totalorder %s87, 0
      %p133 = por %p131, %p132
      %p134 = scmp.ne.s32.totalorder %s123, %s126
      %p135 = scmp.eq.s32.totalorder %s92, 1
      %p136 = por %p134, %p135
      %p137 = scmp.ne.s32.totalorder %s126, %s127
      %p138 = scmp.eq.s32.totalorder %s92, 0
      %p139 = por %p137, %p138
      %p140 = scmp.ne.s32.totalorder %s126, %s127
      %p141 = scmp.eq.s32.totalorder %s93, 1
      %p142 = por %p140, %p141
      %p144 = scmp.ne.s32.totalorder %s127, %s143
      %p145 = scmp.eq.s32.totalorder %s93, 0
      %p146 = por %p144, %p145
      %s147 = ssub.s32 %s87, %s94
      %p148 = scmp.eq.s32.totalorder %s147, 0
      %s150 = sadd.s32 %s149, 1
      %s151 = scalar_select %p148, %s149, %s150
      %p154 = pneg %p148
      %p155 = scmp.eq.s32.totalorder %s87, 1
      %p156 = por %p154, %p155
      %p157 = scmp.ne.s32.totalorder %s149, %s152
      %p158 = scmp.eq.s32.totalorder %s87, 0
      %p159 = por %p157, %p158
      %p160 = scmp.ne.s32.totalorder %s149, %s152
      %p161 = scmp.eq.s32.totalorder %s92, 1
      %p162 = por %p160, %p161
      %p163 = scmp.ne.s32.totalorder %s152, %s153
      %p164 = scmp.eq.s32.totalorder %s92, 0
      %p165 = por %p163, %p164
      %p166 = scmp.ne.s32.totalorder %s152, %s153
      %p167 = scmp.eq.s32.totalorder %s93, 1
      %p168 = por %p166, %p167
      %p170 = scmp.ne.s32.totalorder %s153, %s169
      %p171 = scmp.eq.s32.totalorder %s93, 0
      %p172 = por %p170, %p171
      %s173 = ssub.s32 %s87, %s94
      %p174 = scmp.eq.s32.totalorder %s173, 0
      %s176 = sadd.s32 %s175, 1
      %s177 = scalar_select %p174, %s175, %s176
      %p180 = pneg %p174
      %p181 = scmp.eq.s32.totalorder %s87, 1
      %p182 = por %p180, %p181
      %p183 = scmp.ne.s32.totalorder %s175, %s178
      %p184 = scmp.eq.s32.totalorder %s87, 0
      %p185 = por %p183, %p184
      %p186 = scmp.ne.s32.totalorder %s175, %s178
      %p187 = scmp.eq.s32.totalorder %s92, 1
      %p188 = por %p186, %p187
      %p189 = scmp.ne.s32.totalorder %s178, %s179
      %p190 = scmp.eq.s32.totalorder %s92, 0
      %p191 = por %p189, %p190
      %p192 = scmp.ne.s32.totalorder %s178, %s179
      %p193 = scmp.eq.s32.totalorder %s93, 1
      %p194 = por %p192, %p193
      %p196 = scmp.ne.s32.totalorder %s179, %s195
      %p197 = scmp.eq.s32.totalorder %s93, 0
      %p198 = por %p196, %p197
      %s199 = ssub.s32 %s87, %s94
      %p200 = scmp.eq.s32.totalorder %s199, 0
      %s202 = sadd.s32 %s201, 1
      %s203 = scalar_select %p200, %s201, %s202
      %p206 = pneg %p200
      %p207 = scmp.eq.s32.totalorder %s87, 1
      %p208 = por %p206, %p207
      %p209 = scmp.ne.s32.totalorder %s201, %s204
      %p210 = scmp.eq.s32.totalorder %s87, 0
      %p211 = por %p209, %p210
      %p212 = scmp.ne.s32.totalorder %s201, %s204
      %p213 = scmp.eq.s32.totalorder %s92, 1
      %p214 = por %p212, %p213
      %p215 = scmp.ne.s32.totalorder %s204, %s205
      %p216 = scmp.eq.s32.totalorder %s92, 0
      %p217 = por %p215, %p216
      %p218 = scmp.ne.s32.totalorder %s204, %s205
      %p219 = scmp.eq.s32.totalorder %s93, 1
      %p220 = por %p218, %p219
      %p222 = scmp.ne.s32.totalorder %s205, %s221
      %p223 = scmp.eq.s32.totalorder %s93, 0
      %p224 = por %p222, %p223
      %s226 = sadd.s32 %s225, 1
      %p229 = scmp.eq.s32.totalorder %s87, 1
      %p230 = scmp.ne.s32.totalorder %s225, %s227
      %p231 = scmp.eq.s32.totalorder %s87, 0
      %p232 = por %p230, %p231
      %p233 = scmp.ne.s32.totalorder %s225, %s227
      %p234 = scmp.eq.s32.totalorder %s92, 1
      %p235 = por %p233, %p234
      %p236 = scmp.ne.s32.totalorder %s227, %s228
      %p237 = scmp.eq.s32.totalorder %s92, 0
      %p238 = por %p236, %p237
      %p239 = scmp.ne.s32.totalorder %s227, %s228
      %p240 = scmp.eq.s32.totalorder %s93, 1
      %p241 = por %p239, %p240
      %p243 = scmp.ne.s32.totalorder %s228, %s242
      %p244 = scmp.eq.s32.totalorder %s93, 0
      %p245 = por %p243, %p244
      %s247 = sadd.s32 %s246, 1
      %p250 = scmp.eq.s32.totalorder %s87, 1
      %p251 = scmp.ne.s32.totalorder %s246, %s248
      %p252 = scmp.eq.s32.totalorder %s87, 0
      %p253 = por %p251, %p252
      %p254 = scmp.ne.s32.totalorder %s246, %s248
      %p255 = scmp.eq.s32.totalorder %s92, 1
      %p256 = por %p254, %p255
      %p257 = scmp.ne.s32.totalorder %s248, %s249
      %p258 = scmp.eq.s32.totalorder %s92, 0
      %p259 = por %p257, %p258
      %p260 = scmp.ne.s32.totalorder %s248, %s249
      %p261 = scmp.eq.s32.totalorder %s93, 1
      %p262 = por %p260, %p261
      %p264 = scmp.ne.s32.totalorder %s249, %s263
      %p265 = scmp.eq.s32.totalorder %s93, 0
      %p266 = por %p264, %p265
      %s268 = sadd.s32 %s267, 1
      %p271 = scmp.eq.s32.totalorder %s87, 1
      %p272 = scmp.ne.s32.totalorder %s267, %s269
      %p273 = scmp.eq.s32.totalorder %s87, 0
      %p274 = por %p272, %p273
      %p275 = scmp.ne.s32.totalorder %s267, %s269
      %p276 = scmp.eq.s32.totalorder %s92, 1
      %p277 = por %p275, %p276
      %p278 = scmp.ne.s32.totalorder %s269, %s270
      %p279 = scmp.eq.s32.totalorder %s92, 0
      %p280 = por %p278, %p279
      %p281 = scmp.ne.s32.totalorder %s269, %s270
      %p282 = scmp.eq.s32.totalorder %s93, 1
      %p283 = por %p281, %p282
      %p285 = scmp.ne.s32.totalorder %s270, %s284
      %p286 = scmp.eq.s32.totalorder %s93, 0
      %p287 = por %p285, %p286
      %s289 = sadd.s32 %s288, 1
      %p292 = scmp.eq.s32.totalorder %s87, 1
      %p293 = scmp.ne.s32.totalorder %s288, %s290
      %p294 = scmp.eq.s32.totalorder %s87, 0
      %p295 = por %p293, %p294
      %p296 = scmp.ne.s32.totalorder %s288, %s290
      %p297 = scmp.eq.s32.totalorder %s92, 1
      %p298 = por %p296, %p297
      %p299 = scmp.ne.s32.totalorder %s290, %s291
      %p300 = scmp.eq.s32.totalorder %s92, 0
      %p301 = por %p299, %p300
      %p302 = scmp.ne.s32.totalorder %s290, %s291
      %p303 = scmp.eq.s32.totalorder %s93, 1
      %p304 = por %p302, %p303
      %p306 = scmp.ne.s32.totalorder %s291, %s305
      %p307 = scmp.eq.s32.totalorder %s93, 0
      %p308 = por %p306, %p307
      %s310 = sadd.s32 %s309, 1
      %p313 = scmp.eq.s32.totalorder %s87, 1
      %p314 = scmp.ne.s32.totalorder %s309, %s311
      %p315 = scmp.eq.s32.totalorder %s87, 0
      %p316 = por %p314, %p315
      %p317 = scmp.ne.s32.totalorder %s309, %s311
      %p318 = scmp.eq.s32.totalorder %s92, 1
      %p319 = por %p317, %p318
      %p320 = scmp.ne.s32.totalorder %s311, %s312
      %p321 = scmp.eq.s32.totalorder %s92, 0
      %p322 = por %p320, %p321
      %p323 = scmp.ne.s32.totalorder %s311, %s312
      %p324 = scmp.eq.s32.totalorder %s93, 1
      %p325 = por %p323, %p324
      %p327 = scmp.ne.s32.totalorder %s312, %s326
      %p328 = scmp.eq.s32.totalorder %s93, 0
      %p329 = por %p327, %p328
      %s331 = sadd.s32 %s330, 1
      %p334 = scmp.eq.s32.totalorder %s87, 1
      %p335 = scmp.ne.s32.totalorder %s330, %s332
      %p336 = scmp.eq.s32.totalorder %s87, 0
      %p337 = por %p335, %p336
      %p338 = scmp.ne.s32.totalorder %s330, %s332
      %p339 = scmp.eq.s32.totalorder %s92, 1
      %p340 = por %p338, %p339
      %p341 = scmp.ne.s32.totalorder %s332, %s333
      %p342 = scmp.eq.s32.totalorder %s92, 0
      %p343 = por %p341, %p342
      %p344 = scmp.ne.s32.totalorder %s332, %s333
      %p345 = scmp.eq.s32.totalorder %s93, 1
      %p346 = por %p344, %p345
      %p348 = scmp.ne.s32.totalorder %s333, %s347
      %p349 = scmp.eq.s32.totalorder %s93, 0
      %p350 = por %p348, %p349
      %s352 = sadd.s32 %s351, 1
      %p355 = scmp.eq.s32.totalorder %s87, 1
      %p356 = scmp.ne.s32.totalorder %s351, %s353
      %p357 = scmp.eq.s32.totalorder %s87, 0
      %p358 = por %p356, %p357
      %p359 = scmp.ne.s32.totalorder %s351, %s353
      %p360 = scmp.eq.s32.totalorder %s92, 1
      %p361 = por %p359, %p360
      %p362 = scmp.ne.s32.totalorder %s353, %s354
      %p363 = scmp.eq.s32.totalorder %s92, 0
      %p364 = por %p362, %p363
      %p365 = scmp.ne.s32.totalorder %s353, %s354
      %p366 = scmp.eq.s32.totalorder %s93, 1
      %p367 = por %p365, %p366
      %p369 = scmp.ne.s32.totalorder %s354, %s368
      %p370 = scmp.eq.s32.totalorder %s93, 0
      %p371 = por %p369, %p370
      %s373 = sadd.s32 %s372, 1
      %p376 = scmp.eq.s32.totalorder %s87, 1
      %p377 = scmp.ne.s32.totalorder %s372, %s374
      %p378 = scmp.eq.s32.totalorder %s87, 0
      %p379 = por %p377, %p378
      %p380 = scmp.ne.s32.totalorder %s372, %s374
      %p381 = scmp.eq.s32.totalorder %s92, 1
      %p382 = por %p380, %p381
      %p383 = scmp.ne.s32.totalorder %s374, %s375
      %p384 = scmp.eq.s32.totalorder %s92, 0
      %p385 = por %p383, %p384
      %p386 = scmp.ne.s32.totalorder %s374, %s375
      %p387 = scmp.eq.s32.totalorder %s93, 1
      %p388 = por %p386, %p387
      %p390 = scmp.ne.s32.totalorder %s375, %s389
      %p391 = scmp.eq.s32.totalorder %s93, 0
      %p392 = por %p390, %p391
      %s394 = sadd.s32 %s393, 1
      %p397 = scmp.eq.s32.totalorder %s87, 1
      %p398 = scmp.ne.s32.totalorder %s393, %s395
      %p399 = scmp.eq.s32.totalorder %s87, 0
      %p400 = por %p398, %p399
      %p401 = scmp.ne.s32.totalorder %s393, %s395
      %p402 = scmp.eq.s32.totalorder %s92, 1
      %p403 = por %p401, %p402
      %p404 = scmp.ne.s32.totalorder %s395, %s396
      %p405 = scmp.eq.s32.totalorder %s92, 0
      %p406 = por %p404, %p405
      %p407 = scmp.ne.s32.totalorder %s395, %s396
      %p408 = scmp.eq.s32.totalorder %s93, 1
      %p409 = por %p407, %p408
      %p411 = scmp.ne.s32.totalorder %s396, %s410
      %p412 = scmp.eq.s32.totalorder %s93, 0
      %p413 = por %p411, %p412
      %s415 = sadd.s32 %s414, 1
      %p418 = scmp.eq.s32.totalorder %s87, 1
      %p419 = scmp.ne.s32.totalorder %s414, %s416
      %p420 = scmp.eq.s32.totalorder %s87, 0
      %p421 = por %p419, %p420
      %p422 = scmp.ne.s32.totalorder %s414, %s416
      %p423 = scmp.eq.s32.totalorder %s92, 1
      %p424 = por %p422, %p423
      %p425 = scmp.ne.s32.totalorder %s416, %s417
      %p426 = scmp.eq.s32.totalorder %s92, 0
      %p427 = por %p425, %p426
      %p428 = scmp.ne.s32.totalorder %s416, %s417
      %p429 = scmp.eq.s32.totalorder %s93, 1
      %p430 = por %p428, %p429
      %p432 = scmp.ne.s32.totalorder %s417, %s431
      %p433 = scmp.eq.s32.totalorder %s93, 0
      %p434 = por %p432, %p433
      %s436 = sadd.s32 %s435, 1
      %p439 = scmp.eq.s32.totalorder %s87, 1
      %p440 = scmp.ne.s32.totalorder %s435, %s437
      %p441 = scmp.eq.s32.totalorder %s87, 0
      %p442 = por %p440, %p441
      %p443 = scmp.ne.s32.totalorder %s435, %s437
      %p444 = scmp.eq.s32.totalorder %s92, 1
      %p445 = por %p443, %p444
      %p446 = scmp.ne.s32.totalorder %s437, %s438
      %p447 = scmp.eq.s32.totalorder %s92, 0
      %p448 = por %p446, %p447
      %p449 = scmp.ne.s32.totalorder %s437, %s438
      %p450 = scmp.eq.s32.totalorder %s93, 1
      %p451 = por %p449, %p450
      %p453 = scmp.ne.s32.totalorder %s438, %s452
      %p454 = scmp.eq.s32.totalorder %s93, 0
      %p455 = por %p453, %p454
      %s457 = sadd.s32 %s456, 1
      %p460 = scmp.eq.s32.totalorder %s87, 1
      %p461 = scmp.ne.s32.totalorder %s456, %s458
      %p462 = scmp.eq.s32.totalorder %s87, 0
      %p463 = por %p461, %p462
      %p464 = scmp.ne.s32.totalorder %s456, %s458
      %p465 = scmp.eq.s32.totalorder %s92, 1
      %p466 = por %p464, %p465
      %p467 = scmp.ne.s32.totalorder %s458, %s459
      %p468 = scmp.eq.s32.totalorder %s92, 0
      %p469 = por %p467, %p468
      %p470 = scmp.ne.s32.totalorder %s458, %s459
      %p471 = scmp.eq.s32.totalorder %s93, 1
      %p472 = por %p470, %p471
      %p474 = scmp.ne.s32.totalorder %s459, %s473
      %p475 = scmp.eq.s32.totalorder %s93, 0
      %p476 = por %p474, %p475
      %s478 = sadd.s32 %s477, 1
      %p481 = scmp.eq.s32.totalorder %s87, 1
      %p482 = scmp.ne.s32.totalorder %s477, %s479
      %p483 = scmp.eq.s32.totalorder %s87, 0
      %p484 = por %p482, %p483
      %p485 = scmp.ne.s32.totalorder %s477, %s479
      %p486 = scmp.eq.s32.totalorder %s92, 1
      %p487 = por %p485, %p486
      %p488 = scmp.ne.s32.totalorder %s479, %s480
      %p489 = scmp.eq.s32.totalorder %s92, 0
      %p490 = por %p488, %p489
      %p491 = scmp.ne.s32.totalorder %s479, %s480
      %p492 = scmp.eq.s32.totalorder %s93, 1
      %p493 = por %p491, %p492
      %p495 = scmp.ne.s32.totalorder %s480, %s494
      %p496 = scmp.eq.s32.totalorder %s93, 0
      %p497 = por %p495, %p496
      %s499 = sadd.s32 %s498, 1
      %p502 = scmp.eq.s32.totalorder %s87, 1
      %p503 = scmp.ne.s32.totalorder %s498, %s500
      %p504 = scmp.eq.s32.totalorder %s87, 0
      %p505 = por %p503, %p504
      %p506 = scmp.ne.s32.totalorder %s498, %s500
      %p507 = scmp.eq.s32.totalorder %s92, 1
      %p508 = por %p506, %p507
      %p509 = scmp.ne.s32.totalorder %s500, %s501
      %p510 = scmp.eq.s32.totalorder %s92, 0
      %p511 = por %p509, %p510
      %p512 = scmp.ne.s32.totalorder %s500, %s501
      %p513 = scmp.eq.s32.totalorder %s93, 1
      %p514 = por %p512, %p513
      %p516 = scmp.ne.s32.totalorder %s501, %s515
      %p517 = scmp.eq.s32.totalorder %s93, 0
      %p518 = por %p516, %p517
      %s520 = sadd.s32 %s519, 1
      %p523 = scmp.eq.s32.totalorder %s87, 1
      %p524 = scmp.ne.s32.totalorder %s519, %s521
      %p525 = scmp.eq.s32.totalorder %s87, 0
      %p526 = por %p524, %p525
      %p527 = scmp.ne.s32.totalorder %s519, %s521
      %p528 = scmp.eq.s32.totalorder %s92, 1
      %p529 = por %p527, %p528
      %p530 = scmp.ne.s32.totalorder %s521, %s522
      %p531 = scmp.eq.s32.totalorder %s92, 0
      %p532 = por %p530, %p531
      %p533 = scmp.ne.s32.totalorder %s521, %s522
      %p534 = scmp.eq.s32.totalorder %s93, 1
      %p535 = por %p533, %p534
      %p537 = scmp.ne.s32.totalorder %s522, %s536
      %p538 = scmp.eq.s32.totalorder %s93, 0
      %p539 = por %p537, %p538
      %s541 = sadd.s32 %s540, 1
      %p544 = scmp.eq.s32.totalorder %s87, 1
      %p545 = scmp.ne.s32.totalorder %s540, %s542
      %p546 = scmp.eq.s32.totalorder %s87, 0
      %p547 = por %p545, %p546
      %p548 = scmp.ne.s32.totalorder %s540, %s542
      %p549 = scmp.eq.s32.totalorder %s92, 1
      %p550 = por %p548, %p549
      %p551 = scmp.ne.s32.totalorder %s542, %s543
      %p552 = scmp.eq.s32.totalorder %s92, 0
      %p553 = por %p551, %p552
      %p554 = scmp.ne.s32.totalorder %s542, %s543
      %p555 = scmp.eq.s32.totalorder %s93, 1
      %p556 = por %p554, %p555
      %p558 = scmp.ne.s32.totalorder %s543, %s557
      %p559 = scmp.eq.s32.totalorder %s93, 0
      %p560 = por %p558, %p559
      %s562 = sadd.s32 %s561, 1
      %p565 = scmp.eq.s32.totalorder %s87, 1
      %p566 = scmp.ne.s32.totalorder %s561, %s563
      %p567 = scmp.eq.s32.totalorder %s87, 0
      %p568 = por %p566, %p567
      %p569 = scmp.ne.s32.totalorder %s561, %s563
      %p570 = scmp.eq.s32.totalorder %s92, 1
      %p571 = por %p569, %p570
      %p572 = scmp.ne.s32.totalorder %s563, %s564
      %p573 = scmp.eq.s32.totalorder %s92, 0
      %p574 = por %p572, %p573
      %p575 = scmp.ne.s32.totalorder %s563, %s564
      %p576 = scmp.eq.s32.totalorder %s93, 1
      %p577 = por %p575, %p576
      %p579 = scmp.ne.s32.totalorder %s564, %s578
      %p580 = scmp.eq.s32.totalorder %s93, 0
      %p581 = por %p579, %p580
      %s583 = sadd.s32 %s582, 1
      %p586 = scmp.eq.s32.totalorder %s87, 1
      %p587 = scmp.ne.s32.totalorder %s582, %s584
      %p588 = scmp.eq.s32.totalorder %s87, 0
      %p589 = por %p587, %p588
      %p590 = scmp.ne.s32.totalorder %s582, %s584
      %p591 = scmp.eq.s32.totalorder %s92, 1
      %p592 = por %p590, %p591
      %p593 = scmp.ne.s32.totalorder %s584, %s585
      %p594 = scmp.eq.s32.totalorder %s92, 0
      %p595 = por %p593, %p594
      %p596 = scmp.ne.s32.totalorder %s584, %s585
      %p597 = scmp.eq.s32.totalorder %s93, 1
      %p598 = por %p596, %p597
      %p600 = scmp.ne.s32.totalorder %s585, %s599
      %p601 = scmp.eq.s32.totalorder %s93, 0
      %p602 = por %p600, %p601
      %s604 = sadd.s32 %s603, 1
      %p607 = scmp.eq.s32.totalorder %s87, 1
      %p608 = scmp.ne.s32.totalorder %s603, %s605
      %p609 = scmp.eq.s32.totalorder %s87, 0
      %p610 = por %p608, %p609
      %p611 = scmp.ne.s32.totalorder %s603, %s605
      %p612 = scmp.eq.s32.totalorder %s92, 1
      %p613 = por %p611, %p612
      %p614 = scmp.ne.s32.totalorder %s605, %s606
      %p615 = scmp.eq.s32.totalorder %s92, 0
      %p616 = por %p614, %p615
      %p617 = scmp.ne.s32.totalorder %s605, %s606
      %p618 = scmp.eq.s32.totalorder %s93, 1
      %p619 = por %p617, %p618
      %p621 = scmp.ne.s32.totalorder %s606, %s620
      %p622 = scmp.eq.s32.totalorder %s93, 0
      %p623 = por %p621, %p622
      %s625 = sadd.s32 %s624, 1
      %p628 = scmp.eq.s32.totalorder %s87, 1
      %p629 = scmp.ne.s32.totalorder %s624, %s626
      %p630 = scmp.eq.s32.totalorder %s87, 0
      %p631 = por %p629, %p630
      %p632 = scmp.ne.s32.totalorder %s624, %s626
      %p633 = scmp.eq.s32.totalorder %s92, 1
      %p634 = por %p632, %p633
      %p635 = scmp.ne.s32.totalorder %s626, %s627
      %p636 = scmp.eq.s32.totalorder %s92, 0
      %p637 = por %p635, %p636
      %p638 = scmp.ne.s32.totalorder %s626, %s627
      %p639 = scmp.eq.s32.totalorder %s93, 1
      %p640 = por %p638, %p639
      %p642 = scmp.ne.s32.totalorder %s627, %s641
      %p643 = scmp.eq.s32.totalorder %s93, 0
      %p644 = por %p642, %p643
      %s646 = sadd.s32 %s645, 1
      %p649 = scmp.eq.s32.totalorder %s87, 1
      %p650 = scmp.ne.s32.totalorder %s645, %s647
      %p651 = scmp.eq.s32.totalorder %s87, 0
      %p652 = por %p650, %p651
      %p653 = scmp.ne.s32.totalorder %s645, %s647
      %p654 = scmp.eq.s32.totalorder %s92, 1
      %p655 = por %p653, %p654
      %p656 = scmp.ne.s32.totalorder %s647, %s648
      %p657 = scmp.eq.s32.totalorder %s92, 0
      %p658 = por %p656, %p657
      %p659 = scmp.ne.s32.totalorder %s647, %s648
      %p660 = scmp.eq.s32.totalorder %s93, 1
      %p661 = por %p659, %p660
      %p663 = scmp.ne.s32.totalorder %s648, %s662
      %p664 = scmp.eq.s32.totalorder %s93, 0
      %p665 = por %p663, %p664
      %s667 = sadd.s32 %s666, 1
      %p670 = scmp.eq.s32.totalorder %s87, 1
      %p671 = scmp.ne.s32.totalorder %s666, %s668
      %p672 = scmp.eq.s32.totalorder %s87, 0
      %p673 = por %p671, %p672
      %p674 = scmp.ne.s32.totalorder %s666, %s668
      %p675 = scmp.eq.s32.totalorder %s92, 1
      %p676 = por %p674, %p675
      %p677 = scmp.ne.s32.totalorder %s668, %s669
      %p678 = scmp.eq.s32.totalorder %s92, 0
      %p679 = por %p677, %p678
      %p680 = scmp.ne.s32.totalorder %s668, %s669
      %p681 = scmp.eq.s32.totalorder %s93, 1
      %p682 = por %p680, %p681
      %p684 = scmp.ne.s32.totalorder %s669, %s683
      %p685 = scmp.eq.s32.totalorder %s93, 0
      %p686 = por %p684, %p685
      %s688 = sadd.s32 %s687, 1
      %p691 = scmp.eq.s32.totalorder %s87, 1
      %p692 = scmp.ne.s32.totalorder %s687, %s689
      %p693 = scmp.eq.s32.totalorder %s87, 0
      %p694 = por %p692, %p693
      %p695 = scmp.ne.s32.totalorder %s687, %s689
      %p696 = scmp.eq.s32.totalorder %s92, 1
      %p697 = por %p695, %p696
      %p698 = scmp.ne.s32.totalorder %s689, %s690
      %p699 = scmp.eq.s32.totalorder %s92, 0
      %p700 = por %p698, %p699
      %p701 = scmp.ne.s32.totalorder %s689, %s690
      %p702 = scmp.eq.s32.totalorder %s93, 1
      %p703 = por %p701, %p702
      %p705 = scmp.ne.s32.totalorder %s690, %s704
      %p706 = scmp.eq.s32.totalorder %s93, 0
      %p707 = por %p705, %p706
      %s709 = sadd.s32 %s708, 1
      %p712 = scmp.eq.s32.totalorder %s87, 1
      %p713 = scmp.ne.s32.totalorder %s708, %s710
      %p714 = scmp.eq.s32.totalorder %s87, 0
      %p715 = por %p713, %p714
      %p716 = scmp.ne.s32.totalorder %s708, %s710
      %p717 = scmp.eq.s32.totalorder %s92, 1
      %p718 = por %p716, %p717
      %p719 = scmp.ne.s32.totalorder %s710, %s711
      %p720 = scmp.eq.s32.totalorder %s92, 0
      %p721 = por %p719, %p720
      %p722 = scmp.ne.s32.totalorder %s710, %s711
      %p723 = scmp.eq.s32.totalorder %s93, 1
      %p724 = por %p722, %p723
      %p726 = scmp.ne.s32.totalorder %s711, %s725
      %p727 = scmp.eq.s32.totalorder %s93, 0
      %p728 = por %p726, %p727
      %s730 = sadd.s32 %s729, 1
      %p733 = scmp.eq.s32.totalorder %s87, 1
      %p734 = scmp.ne.s32.totalorder %s729, %s731
      %p735 = scmp.eq.s32.totalorder %s87, 0
      %p736 = por %p734, %p735
      %p737 = scmp.ne.s32.totalorder %s729, %s731
      %p738 = scmp.eq.s32.totalorder %s92, 1
      %p739 = por %p737, %p738
      %p740 = scmp.ne.s32.totalorder %s731, %s732
      %p741 = scmp.eq.s32.totalorder %s92, 0
      %p742 = por %p740, %p741
      %p743 = scmp.ne.s32.totalorder %s731, %s732
      %p744 = scmp.eq.s32.totalorder %s93, 1
      %p745 = por %p743, %p744
      %p747 = scmp.ne.s32.totalorder %s732, %s746
      %p748 = scmp.eq.s32.totalorder %s93, 0
      %p749 = por %p747, %p748
      %s751 = sadd.s32 %s750, 1
      %p754 = scmp.eq.s32.totalorder %s87, 1
      %p755 = scmp.ne.s32.totalorder %s750, %s752
      %p756 = scmp.eq.s32.totalorder %s87, 0
      %p757 = por %p755, %p756
      %p758 = scmp.ne.s32.totalorder %s750, %s752
      %p759 = scmp.eq.s32.totalorder %s92, 1
      %p760 = por %p758, %p759
      %p761 = scmp.ne.s32.totalorder %s752, %s753
      %p762 = scmp.eq.s32.totalorder %s92, 0
      %p763 = por %p761, %p762
      %p764 = scmp.ne.s32.totalorder %s752, %s753
      %p765 = scmp.eq.s32.totalorder %s93, 1
      %p766 = por %p764, %p765
      %p768 = scmp.ne.s32.totalorder %s753, %s767
      %p769 = scmp.eq.s32.totalorder %s93, 0
      %p770 = por %p768, %p769
      %s772 = sadd.s32 %s771, 1
      %p775 = scmp.eq.s32.totalorder %s87, 1
      %p776 = scmp.ne.s32.totalorder %s771, %s773
      %p777 = scmp.eq.s32.totalorder %s87, 0
      %p778 = por %p776, %p777
      %p779 = scmp.ne.s32.totalorder %s771, %s773
      %p780 = scmp.eq.s32.totalorder %s92, 1
      %p781 = por %p779, %p780
      %p782 = scmp.ne.s32.totalorder %s773, %s774
      %p783 = scmp.eq.s32.totalorder %s92, 0
      %p784 = por %p782, %p783
      %p785 = scmp.ne.s32.totalorder %s773, %s774
      %p786 = scmp.eq.s32.totalorder %s93, 1
      %p787 = por %p785, %p786
      %p789 = scmp.ne.s32.totalorder %s774, %s788
      %p790 = scmp.eq.s32.totalorder %s93, 0
      %p791 = por %p789, %p790
      %s793 = sadd.s32 %s792, 1
      %p796 = scmp.eq.s32.totalorder %s87, 1
      %p797 = scmp.ne.s32.totalorder %s792, %s794
      %p798 = scmp.eq.s32.totalorder %s87, 0
      %p799 = por %p797, %p798
      %p800 = scmp.ne.s32.totalorder %s792, %s794
      %p801 = scmp.eq.s32.totalorder %s92, 1
      %p802 = por %p800, %p801
      %p803 = scmp.ne.s32.totalorder %s794, %s795
      %p804 = scmp.eq.s32.totalorder %s92, 0
      %p805 = por %p803, %p804
      %p806 = scmp.ne.s32.totalorder %s794, %s795
      %p807 = scmp.eq.s32.totalorder %s93, 1
      %p808 = por %p806, %p807
      %p810 = scmp.ne.s32.totalorder %s795, %s809
      %p811 = scmp.eq.s32.totalorder %s93, 0
      %p812 = por %p810, %p811
      %s814 = sadd.s32 %s813, 1
      %p817 = scmp.eq.s32.totalorder %s87, 1
      %p818 = scmp.ne.s32.totalorder %s813, %s815
      %p819 = scmp.eq.s32.totalorder %s87, 0
      %p820 = por %p818, %p819
      %p821 = scmp.ne.s32.totalorder %s813, %s815
      %p822 = scmp.eq.s32.totalorder %s92, 1
      %p823 = por %p821, %p822
      %p824 = scmp.ne.s32.totalorder %s815, %s816
      %p825 = scmp.eq.s32.totalorder %s92, 0
      %p826 = por %p824, %p825
      %p827 = scmp.ne.s32.totalorder %s815, %s816
      %p828 = scmp.eq.s32.totalorder %s93, 1
      %p829 = por %p827, %p828
      %p831 = scmp.ne.s32.totalorder %s816, %s830
      %p832 = scmp.eq.s32.totalorder %s93, 0
      %p833 = por %p831, %p832
      %s835 = sadd.s32 %s834, 1
      %p838 = scmp.eq.s32.totalorder %s87, 1
      %p839 = scmp.ne.s32.totalorder %s834, %s836
      %p840 = scmp.eq.s32.totalorder %s87, 0
      %p841 = por %p839, %p840
      %p842 = scmp.ne.s32.totalorder %s834, %s836
      %p843 = scmp.eq.s32.totalorder %s92, 1
      %p844 = por %p842, %p843
      %p845 = scmp.ne.s32.totalorder %s836, %s837
      %p846 = scmp.eq.s32.totalorder %s92, 0
      %p847 = por %p845, %p846
      %p848 = scmp.ne.s32.totalorder %s836, %s837
      %p849 = scmp.eq.s32.totalorder %s93, 1
      %p850 = por %p848, %p849
      %p852 = scmp.ne.s32.totalorder %s837, %s851
      %p853 = scmp.eq.s32.totalorder %s93, 0
      %p854 = por %p852, %p853
      %s855 = ssub.s32 %s87, %s94
      %p856 = scmp.eq.s32.totalorder %s855, 0
      %s858 = sadd.s32 %s857, 1
      %s859 = scalar_select %p856, %s857, %s858
      %p862 = pneg %p856
      %p863 = scmp.eq.s32.totalorder %s87, 1
      %p864 = por %p862, %p863
      %p865 = scmp.ne.s32.totalorder %s857, %s860
      %p866 = scmp.eq.s32.totalorder %s87, 0
      %p867 = por %p865, %p866
      %p868 = scmp.ne.s32.totalorder %s857, %s860
      %p869 = scmp.eq.s32.totalorder %s92, 1
      %p870 = por %p868, %p869
      %p871 = scmp.ne.s32.totalorder %s860, %s861
      %p872 = scmp.eq.s32.totalorder %s92, 0
      %p873 = por %p871, %p872
      %p874 = scmp.ne.s32.totalorder %s860, %s861
      %p875 = scmp.eq.s32.totalorder %s93, 1
      %p876 = por %p874, %p875
      %p878 = scmp.ne.s32.totalorder %s861, %s877
      %p879 = scmp.eq.s32.totalorder %s93, 0
      %p880 = por %p878, %p879
      %p881 = scmp.le.s32.totalorder 1, %s87
      %p882 = scmp.lt.s32.totalorder %s87, 3
      %p883 = pnand %p881, %p882
      %p884 = pneg %p883
      // Predicated region
      $region9: #{tpu_custom_call.1} parent=5 // pred_check
        _
      $region10: #{tpu_custom_call.1} parent=5 // pred_check_branch
        %886 = sbr.rel (%p883) target = $region12
      $region11: #{tpu_custom_call.1} parent=5 // pred_region
        %s887 = ssub.s32 %s87, 1
        // Predicated region
        $region13: #{tpu_custom_call.1} parent=11 // pred_check
          %p888 = pneg %p238
        $region14: #{tpu_custom_call.1} parent=11 // pred_check_branch
          %890 = sbr.rel (%p888) target = $region16
        $region15: #{tpu_custom_call.1} parent=11 // pred_region
          _
        $region16: #{tpu_custom_call.1} parent=11 // pred_fallthru
          _
        // Predicated region
        $region17: #{tpu_custom_call.1} parent=11 // pred_check
          %p891 = pneg %p259
        $region18: #{tpu_custom_call.1} parent=11 // pred_check_branch
          %893 = sbr.rel (%p891) target = $region20
        $region19: #{tpu_custom_call.1} parent=11 // pred_region
          _
        $region20: #{tpu_custom_call.1} parent=11 // pred_fallthru
          _
        // Predicated region
        $region21: #{tpu_custom_call.1} parent=11 // pred_check
          %p894 = pneg %p280
        $region22: #{tpu_custom_call.1} parent=11 // pred_check_branch
          %896 = sbr.rel (%p894) target = $region24
        $region23: #{tpu_custom_call.1} parent=11 // pred_region
          _
        $region24: #{tpu_custom_call.1} parent=11 // pred_fallthru
          _
        // Predicated region
        $region25: #{tpu_custom_call.1} parent=11 // pred_check
          %p897 = pneg %p301
        $region26: #{tpu_custom_call.1} parent=11 // pred_check_branch
          %899 = sbr.rel (%p897) target = $region28
        $region27: #{tpu_custom_call.1} parent=11 // pred_region
          _
        $region28: #{tpu_custom_call.1} parent=11 // pred_fallthru
          _
        // Predicated region
        $region29: #{tpu_custom_call.1} parent=11 // pred_check
          %p900 = pneg %p322
        $region30: #{tpu_custom_call.1} parent=11 // pred_check_branch
          %902 = sbr.rel (%p900) target = $region32
        $region31: #{tpu_custom_call.1} parent=11 // pred_region
          _
        $region32: #{tpu_custom_call.1} parent=11 // pred_fallthru
          _
        // Predicated region
        $region33: #{tpu_custom_call.1} parent=11 // pred_check
          %p903 = pneg %p343
        $region34: #{tpu_custom_call.1} parent=11 // pred_check_branch
          %905 = sbr.rel (%p903) target = $region36
        $region35: #{tpu_custom_call.1} parent=11 // pred_region
          %s907 = ssub.s32 16, 16
          %908 = vsyncadd [#allocation6], %s907
          %s910 = sshll.u32 [#allocation7], 4
          %s911 = int_to_ptr.vmem [resolvable:$true] %s910
          %913 = dma.hbm_to_vmem [thread:$0]  %s21, 16, %s911, [#allocation6]
        $region36: #{tpu_custom_call.1} parent=11 // pred_fallthru
          _
        // Predicated region
        $region37: #{tpu_custom_call.1} parent=11 // pred_check
          %p914 = pneg %p364
        $region38: #{tpu_custom_call.1} parent=11 // pred_check_branch
          %916 = sbr.rel (%p914) target = $region40
        $region39: #{tpu_custom_call.1} parent=11 // pred_region
          _
        $region40: #{tpu_custom_call.1} parent=11 // pred_fallthru
          _
        // Predicated region
        $region41: #{tpu_custom_call.1} parent=11 // pred_check
          %p917 = pneg %p385
        $region42: #{tpu_custom_call.1} parent=11 // pred_check_branch
          %919 = sbr.rel (%p917) target = $region44
        $region43: #{tpu_custom_call.1} parent=11 // pred_region
          _
        $region44: #{tpu_custom_call.1} parent=11 // pred_fallthru
          _
        // Predicated region
        $region45: #{tpu_custom_call.1} parent=11 // pred_check
          %p920 = pneg %p406
        $region46: #{tpu_custom_call.1} parent=11 // pred_check_branch
          %922 = sbr.rel (%p920) target = $region48
        $region47: #{tpu_custom_call.1} parent=11 // pred_region
          %s924 = ssub.s32 16, 16
          %925 = vsyncadd [#allocation9], %s924
          %s927 = sshll.u32 [#allocation8], 4
          %s928 = int_to_ptr.vmem [resolvable:$true] %s927
          %930 = dma.hbm_to_vmem [thread:$0]  %s27, 16, %s928, [#allocation9]
        $region48: #{tpu_custom_call.1} parent=11 // pred_fallthru
          _
        // Predicated region
        $region49: #{tpu_custom_call.1} parent=11 // pred_check
          %p931 = pneg %p427
        $region50: #{tpu_custom_call.1} parent=11 // pred_check_branch
          %933 = sbr.rel (%p931) target = $region52
        $region51: #{tpu_custom_call.1} parent=11 // pred_region
          _
        $region52: #{tpu_custom_call.1} parent=11 // pred_fallthru
          _
        // Predicated region
        $region53: #{tpu_custom_call.1} parent=11 // pred_check
          %p934 = pneg %p448
        $region54: #{tpu_custom_call.1} parent=11 // pred_check_branch
          %936 = sbr.rel (%p934) target = $region56
        $region55: #{tpu_custom_call.1} parent=11 // pred_region
          _
        $region56: #{tpu_custom_call.1} parent=11 // pred_fallthru
          _
        // Predicated region
        $region57: #{tpu_custom_call.1} parent=11 // pred_check
          %p937 = pneg %p469
        $region58: #{tpu_custom_call.1} parent=11 // pred_check_branch
          %939 = sbr.rel (%p937) target = $region60
        $region59: #{tpu_custom_call.1} parent=11 // pred_region
          _
        $region60: #{tpu_custom_call.1} parent=11 // pred_fallthru
          _
        // Predicated region
        $region61: #{tpu_custom_call.1} parent=11 // pred_check
          %p940 = pneg %p490
        $region62: #{tpu_custom_call.1} parent=11 // pred_check_branch
          %942 = sbr.rel (%p940) target = $region64
        $region63: #{tpu_custom_call.1} parent=11 // pred_region
          _
        $region64: #{tpu_custom_call.1} parent=11 // pred_fallthru
          _
        // Predicated region
        $region65: #{tpu_custom_call.1} parent=11 // pred_check
          %p943 = pneg %p511
        $region66: #{tpu_custom_call.1} parent=11 // pred_check_branch
          %945 = sbr.rel (%p943) target = $region68
        $region67: #{tpu_custom_call.1} parent=11 // pred_region
          _
        $region68: #{tpu_custom_call.1} parent=11 // pred_fallthru
          _
        // Predicated region
        $region69: #{tpu_custom_call.1} parent=11 // pred_check
          %p946 = pneg %p532
        $region70: #{tpu_custom_call.1} parent=11 // pred_check_branch
          %948 = sbr.rel (%p946) target = $region72
        $region71: #{tpu_custom_call.1} parent=11 // pred_region
          _
        $region72: #{tpu_custom_call.1} parent=11 // pred_fallthru
          _
        // Predicated region
        $region73: #{tpu_custom_call.1} parent=11 // pred_check
          %p949 = pneg %p553
        $region74: #{tpu_custom_call.1} parent=11 // pred_check_branch
          %951 = sbr.rel (%p949) target = $region76
        $region75: #{tpu_custom_call.1} parent=11 // pred_region
          _
        $region76: #{tpu_custom_call.1} parent=11 // pred_fallthru
          _
        // Predicated region
        $region77: #{tpu_custom_call.1} parent=11 // pred_check
          %p952 = pneg %p574
        $region78: #{tpu_custom_call.1} parent=11 // pred_check_branch
          %954 = sbr.rel (%p952) target = $region80
        $region79: #{tpu_custom_call.1} parent=11 // pred_region
          _
        $region80: #{tpu_custom_call.1} parent=11 // pred_fallthru
          _
        // Predicated region
        $region81: #{tpu_custom_call.1} parent=11 // pred_check
          %p955 = pneg %p595
        $region82: #{tpu_custom_call.1} parent=11 // pred_check_branch
          %957 = sbr.rel (%p955) target = $region84
        $region83: #{tpu_custom_call.1} parent=11 // pred_region
          _
        $region84: #{tpu_custom_call.1} parent=11 // pred_fallthru
          _
        // Predicated region
        $region85: #{tpu_custom_call.1} parent=11 // pred_check
          %p958 = pneg %p616
        $region86: #{tpu_custom_call.1} parent=11 // pred_check_branch
          %960 = sbr.rel (%p958) target = $region88
        $region87: #{tpu_custom_call.1} parent=11 // pred_region
          _
        $region88: #{tpu_custom_call.1} parent=11 // pred_fallthru
          _
        // Predicated region
        $region89: #{tpu_custom_call.1} parent=11 // pred_check
          %p961 = pneg %p637
        $region90: #{tpu_custom_call.1} parent=11 // pred_check_branch
          %963 = sbr.rel (%p961) target = $region92
        $region91: #{tpu_custom_call.1} parent=11 // pred_region
          _
        $region92: #{tpu_custom_call.1} parent=11 // pred_fallthru
          _
        // Predicated region
        $region93: #{tpu_custom_call.1} parent=11 // pred_check
          %p964 = pneg %p658
        $region94: #{tpu_custom_call.1} parent=11 // pred_check_branch
          %966 = sbr.rel (%p964) target = $region96
        $region95: #{tpu_custom_call.1} parent=11 // pred_region
          _
        $region96: #{tpu_custom_call.1} parent=11 // pred_fallthru
          _
        // Predicated region
        $region97: #{tpu_custom_call.1} parent=11 // pred_check
          %p967 = pneg %p679
        $region98: #{tpu_custom_call.1} parent=11 // pred_check_branch
          %969 = sbr.rel (%p967) target = $region100
        $region99: #{tpu_custom_call.1} parent=11 // pred_region
          _
        $region100: #{tpu_custom_call.1} parent=11 // pred_fallthru
          _
        // Predicated region
        $region101: #{tpu_custom_call.1} parent=11 // pred_check
          %p970 = pneg %p700
        $region102: #{tpu_custom_call.1} parent=11 // pred_check_branch
          %972 = sbr.rel (%p970) target = $region104
        $region103: #{tpu_custom_call.1} parent=11 // pred_region
          _
        $region104: #{tpu_custom_call.1} parent=11 // pred_fallthru
          _
        // Predicated region
        $region105: #{tpu_custom_call.1} parent=11 // pred_check
          %p973 = pneg %p721
        $region106: #{tpu_custom_call.1} parent=11 // pred_check_branch
          %975 = sbr.rel (%p973) target = $region108
        $region107: #{tpu_custom_call.1} parent=11 // pred_region
          _
        $region108: #{tpu_custom_call.1} parent=11 // pred_fallthru
          _
        // Predicated region
        $region109: #{tpu_custom_call.1} parent=11 // pred_check
          %p976 = pneg %p742
        $region110: #{tpu_custom_call.1} parent=11 // pred_check_branch
          %978 = sbr.rel (%p976) target = $region112
        $region111: #{tpu_custom_call.1} parent=11 // pred_region
          _
        $region112: #{tpu_custom_call.1} parent=11 // pred_fallthru
          _
        // Predicated region
        $region113: #{tpu_custom_call.1} parent=11 // pred_check
          %p979 = pneg %p763
        $region114: #{tpu_custom_call.1} parent=11 // pred_check_branch
          %981 = sbr.rel (%p979) target = $region116
        $region115: #{tpu_custom_call.1} parent=11 // pred_region
          _
        $region116: #{tpu_custom_call.1} parent=11 // pred_fallthru
          _
        // Predicated region
        $region117: #{tpu_custom_call.1} parent=11 // pred_check
          %p982 = pneg %p784
        $region118: #{tpu_custom_call.1} parent=11 // pred_check_branch
          %984 = sbr.rel (%p982) target = $region120
        $region119: #{tpu_custom_call.1} parent=11 // pred_region
          _
        $region120: #{tpu_custom_call.1} parent=11 // pred_fallthru
          _
        // Predicated region
        $region121: #{tpu_custom_call.1} parent=11 // pred_check
          %p985 = pneg %p805
        $region122: #{tpu_custom_call.1} parent=11 // pred_check_branch
          %987 = sbr.rel (%p985) target = $region124
        $region123: #{tpu_custom_call.1} parent=11 // pred_region
          _
        $region124: #{tpu_custom_call.1} parent=11 // pred_fallthru
          _
        // Predicated region
        $region125: #{tpu_custom_call.1} parent=11 // pred_check
          %p988 = pneg %p826
        $region126: #{tpu_custom_call.1} parent=11 // pred_check_branch
          %990 = sbr.rel (%p988) target = $region128
        $region127: #{tpu_custom_call.1} parent=11 // pred_region
          _
        $region128: #{tpu_custom_call.1} parent=11 // pred_fallthru
          _
        // Predicated region
        $region129: #{tpu_custom_call.1} parent=11 // pred_check
          %p991 = pneg %p847
        $region130: #{tpu_custom_call.1} parent=11 // pred_check_branch
          %993 = sbr.rel (%p991) target = $region132
        $region131: #{tpu_custom_call.1} parent=11 // pred_region
          _
        $region132: #{tpu_custom_call.1} parent=11 // pred_fallthru
          _
      $region12: #{tpu_custom_call.1} parent=5 // pred_fallthru
        _
      %p994 = scmp.lt.s32.totalorder %s87, 2
      // Predicated region
      $region133: #{tpu_custom_call.1} parent=5 // pred_check
        %p995 = pneg %p994
      $region134: #{tpu_custom_call.1} parent=5 // pred_check_branch
        %997 = sbr.rel (%p995) target = $region136
      $region135: #{tpu_custom_call.1} parent=5 // pred_region
        // Predicated region
        $region137: #{tpu_custom_call.1} parent=135 // pred_check
          %p998 = pneg %p107
        $region138: #{tpu_custom_call.1} parent=135 // pred_check_branch
          %1000 = sbr.rel (%p998) target = $region140
        $region139: #{tpu_custom_call.1} parent=135 // pred_region
          %p1001 = scmp.lt.s32.totalorder %s87, 1
          %s1002 = scalar_select %p1001, %s87, 1
          %s1003 = smul.addr %s1002, 8
          %s1004 = scalar_lea.vmem %s1, %s1003
        $region140: #{tpu_custom_call.1} parent=135 // pred_fallthru
          _
        // Predicated region
        $region141: #{tpu_custom_call.1} parent=135 // pred_check
          %p1005 = pneg %p133
        $region142: #{tpu_custom_call.1} parent=135 // pred_check_branch
          %1007 = sbr.rel (%p1005) target = $region144
        $region143: #{tpu_custom_call.1} parent=135 // pred_region
          %p1008 = scmp.lt.s32.totalorder %s87, 1
          %s1009 = scalar_select %p1008, %s87, 1
          %s1010 = smul.addr %s1009, 2
          %s1011 = smul.addr %s1010, 4
          %s1012 = scalar_lea.vmem %s3, %s1011
        $region144: #{tpu_custom_call.1} parent=135 // pred_fallthru
          _
        // Predicated region
        $region145: #{tpu_custom_call.1} parent=135 // pred_check
          %p1013 = pneg %p159
        $region146: #{tpu_custom_call.1} parent=135 // pred_check_branch
          %1015 = sbr.rel (%p1013) target = $region148
        $region147: #{tpu_custom_call.1} parent=135 // pred_region
          %s1016 = sand.u32 %s149, 1
          %s1017 = scalar_lea.sflag [#allocation3], %s1016
          %s1018 = sand.u32 %s149, 1
          %s1019 = scalar_lea.vmem [#allocation2], %s1018
          %s1021 = ssub.s32 16, 16
          %1022 = vsyncadd %s1017, %s1021
          %s1023 = smul.addr %s87, 16
          %s1024 = scalar_lea.hbm %s5, %s1023
          %s1026 = sshll.u32 %s1019, 4
          %s1027 = int_to_ptr.vmem [resolvable:$true] %s1026
          %1029 = dma.hbm_to_vmem [thread:$0]  %s1024, 16, %s1027, %s1017
        $region148: #{tpu_custom_call.1} parent=135 // pred_fallthru
          _
        // Predicated region
        $region149: #{tpu_custom_call.1} parent=135 // pred_check
          %p1030 = pneg %p185
        $region150: #{tpu_custom_call.1} parent=135 // pred_check_branch
          %1032 = sbr.rel (%p1030) target = $region152
        $region151: #{tpu_custom_call.1} parent=135 // pred_region
          %s1033 = sand.u32 %s87, 1
          %s1034 = scalar_lea.sflag [#allocation6], %s1033
          %s1035 = sand.u32 %s175, 1
          %s1036 = scalar_lea.vmem [#allocation5], %s1035
          %s1038 = ssub.s32 16, 16
          %1039 = vsyncadd %s1034, %s1038
          %s1040 = smul.addr %s87, 16
          %s1041 = scalar_lea.hbm %s7, %s1040
          %s1043 = sshll.u32 %s1036, 4
          %s1044 = int_to_ptr.vmem [resolvable:$true] %s1043
          %1046 = dma.hbm_to_vmem [thread:$0]  %s1041, 16, %s1044, %s1034
        $region152: #{tpu_custom_call.1} parent=135 // pred_fallthru
          _
        // Predicated region
        $region153: #{tpu_custom_call.1} parent=135 // pred_check
          %p1047 = pneg %p211
        $region154: #{tpu_custom_call.1} parent=135 // pred_check_branch
          %1049 = sbr.rel (%p1047) target = $region156
        $region155: #{tpu_custom_call.1} parent=135 // pred_region
          %p1050 = scmp.lt.s32.totalorder %s87, 1
          %s1051 = scalar_select %p1050, %s87, 1
          %s1052 = smul.addr %s1051, 8
          %s1053 = scalar_lea.vmem %s9, %s1052
        $region156: #{tpu_custom_call.1} parent=135 // pred_fallthru
          _
      $region136: #{tpu_custom_call.1} parent=5 // pred_fallthru
        _
      %p1054 = scmp.le.s32.totalorder 1, %s87
      %p1055 = scmp.lt.s32.totalorder %s87, 3
      %p1056 = pnand %p1054, %p1055
      %p1057 = pneg %p1056
      // Predicated region
      $region157: #{tpu_custom_call.1} parent=5 // pred_check
        _
      $region158: #{tpu_custom_call.1} parent=5 // pred_check_branch
        %1059 = sbr.rel (%p1056) target = $region160
      $region159: #{tpu_custom_call.1} parent=5 // pred_region
        %s1060 = ssub.s32 %s87, 1
        %s1061 = sand.u32 %s152, 1
        %s1062 = scalar_lea.sflag [#allocation3], %s1061
        %s1063 = sand.u32 %s152, 1
        %s1064 = scalar_lea.vmem [#allocation2], %s1063
        // Predicated region
        $region161: #{tpu_custom_call.1} parent=159 // pred_check
          %p1065 = pneg %p165
        $region162: #{tpu_custom_call.1} parent=159 // pred_check_branch
          %1067 = sbr.rel (%p1065) target = $region164
        $region163: #{tpu_custom_call.1} parent=159 // pred_region
          %1068 = dma.done %s1062, 16
        $region164: #{tpu_custom_call.1} parent=159 // pred_fallthru
          _
        %s1069 = sand.u32 %s92, 1
        %s1070 = scalar_lea.sflag [#allocation6], %s1069
        %s1071 = sand.u32 %s178, 1
        %s1072 = scalar_lea.vmem [#allocation5], %s1071
        // Predicated region
        $region165: #{tpu_custom_call.1} parent=159 // pred_check
          %p1073 = pneg %p191
        $region166: #{tpu_custom_call.1} parent=159 // pred_check_branch
          %1075 = sbr.rel (%p1073) target = $region168
        $region167: #{tpu_custom_call.1} parent=159 // pred_region
          %1076 = dma.done %s1070, 16
        $region168: #{tpu_custom_call.1} parent=159 // pred_fallthru
          _
        // Predicated region
        $region169: #{tpu_custom_call.1} parent=159 // pred_check
          %p1077 = pneg %p343
        $region170: #{tpu_custom_call.1} parent=159 // pred_check_branch
          %1079 = sbr.rel (%p1077) target = $region172
        $region171: #{tpu_custom_call.1} parent=159 // pred_region
          %1080 = dma.done [#allocation6], 16
        $region172: #{tpu_custom_call.1} parent=159 // pred_fallthru
          _
        // Predicated region
        $region173: #{tpu_custom_call.1} parent=159 // pred_check
          %p1081 = pneg %p406
        $region174: #{tpu_custom_call.1} parent=159 // pred_check_branch
          %1083 = sbr.rel (%p1081) target = $region176
        $region175: #{tpu_custom_call.1} parent=159 // pred_region
          %1084 = dma.done [#allocation9], 16
        $region176: #{tpu_custom_call.1} parent=159 // pred_fallthru
          _
        %p1085 = scmp.lt.s32.totalorder %s92, 1
        %s1086 = scalar_select %p1085, %s92, 1
        %s1087 = smul.addr %s1086, 8
        %s1088 = scalar_lea.vmem %s1, %s1087
        %p1089 = pneg %p113
        %p1090 = pneg %p110
        %p1091 = scmp.lt.s32.totalorder %s92, 1
        %s1092 = scalar_select %p1091, %s92, 1
        %s1093 = smul.addr %s1092, 2
        %s1094 = smul.addr %s1093, 4
        %s1095 = scalar_lea.vmem %s3, %s1094
        %p1096 = pneg %p139
        %p1097 = pneg %p136
        %s1098 = sand.u32 %s152, 1
        %s1099 = scalar_lea.sflag [#allocation3], %s1098
        %s1100 = sand.u32 %s152, 1
        %s1101 = scalar_lea.vmem [#allocation2], %s1100
        %p1102 = pneg %p165
        %p1103 = pneg %p162
        %s1104 = sand.u32 %s92, 1
        %s1105 = scalar_lea.sflag [#allocation6], %s1104
        %s1106 = sand.u32 %s178, 1
        %s1107 = scalar_lea.vmem [#allocation5], %s1106
        %p1108 = pneg %p191
        %p1109 = pneg %p188
        %p1110 = scmp.lt.s32.totalorder %s92, 1
        %s1111 = scalar_select %p1110, %s92, 1
        %s1112 = smul.addr %s1111, 8
        %s1113 = scalar_lea.vmem %s9, %s1112
        %p1114 = pneg %p217
        %p1115 = pneg %p214
        %p1116 = pneg %p238
        %p1117 = pneg %p235
        %p1118 = pneg %p259
        %p1119 = pneg %p256
        %p1120 = pneg %p280
        %p1121 = pneg %p277
        %p1122 = pneg %p301
        %p1123 = pneg %p298
        %p1124 = pneg %p322
        %p1125 = pneg %p319
        %p1126 = pneg %p343
        %p1127 = pneg %p340
        %p1128 = pneg %p364
        %p1129 = pneg %p361
        %p1130 = pneg %p385
        %p1131 = pneg %p382
        %p1132 = pneg %p406
        %p1133 = pneg %p403
        %p1134 = pneg %p427
        %p1135 = pneg %p424
        %p1136 = pneg %p448
        %p1137 = pneg %p445
        %p1138 = pneg %p469
        %p1139 = pneg %p466
        %p1140 = pneg %p490
        %p1141 = pneg %p487
        %p1142 = pneg %p511
        %p1143 = pneg %p508
        %p1144 = pneg %p532
        %p1145 = pneg %p529
        %p1146 = pneg %p553
        %p1147 = pneg %p550
        %p1148 = pneg %p574
        %p1149 = pneg %p571
        %p1150 = pneg %p595
        %p1151 = pneg %p592
        %p1152 = pneg %p616
        %p1153 = pneg %p613
        %p1154 = pneg %p637
        %p1155 = pneg %p634
        %p1156 = pneg %p658
        %p1157 = pneg %p655
        %p1158 = pneg %p679
        %p1159 = pneg %p676
        %p1160 = pneg %p700
        %p1161 = pneg %p697
        %p1162 = pneg %p721
        %p1163 = pneg %p718
        %p1164 = pneg %p742
        %p1165 = pneg %p739
        %p1166 = pneg %p763
        %p1167 = pneg %p760
        %p1168 = pneg %p784
        %p1169 = pneg %p781
        %p1170 = pneg %p805
        %p1171 = pneg %p802
        %p1172 = pneg %p826
        %p1173 = pneg %p823
        %p1174 = pneg %p847
        %p1175 = pneg %p844
        %p1176 = pneg %p873
        %p1177 = pneg %p870
        %s1178 = sand.u32 %s860, 1
        %s1179 = scalar_lea.sflag [#allocation4], %s1178
        %s1180 = sand.u32 %s860, 1
        %s1181 = smul.addr %s1180, 8
        %s1182 = scalar_lea.vmem [#allocation10], %s1181
        %p1183 = scmp.lt.s32.totalorder %s92, 1
        %s1184 = scalar_select %p1183, %s92, 1
        %s1185 = smul.addr %s1184, 8
        %s1186 = scalar_lea.vmem %s1, %s1185
        %p1187 = scmp.lt.s32.totalorder %s92, 1
        %s1188 = scalar_select %p1187, %s92, 1
        %s1189 = smul.addr %s1188, 2
        %s1190 = smul.addr %s1189, 4
        %s1191 = scalar_lea.vmem %s3, %s1190
        %p1192 = scmp.lt.s32.totalorder %s92, 1
        %s1193 = scalar_select %p1192, %s92, 1
        %s1194 = smul.addr %s1193, 8
        %s1195 = scalar_lea.vmem %s9, %s1194
        %v1197 = vld [vmem:[%s1186] sm:$0xff]
        %v1198 = vld [vmem:[%s1191] sm:$0xf]
        %v1199 = vld [vmem:[%s1191 + $0x4] sm:$0x3]
        %v1200 = vld [vmem:[%s1195] sm:$0xff]
        %1202 = vset.pattern.permute.xlu0 0
        %1203 = vperm.xlu0 %1202, %v1200
        %v1204 = vpop.permute.xlu0 %1203
        %v1206 = vlaneseq
        %v1207 = vshrl.u32 %v1206, 7
        %v1208 = vlaneseq
        %v1209 = vand.u32 %v1208, 127
        %vm1210 = vcmp.gt.s32.totalorder %v1209, %v1207
        %v1211 = vsel %vm1210, 1, 0
        %v1212 = vcvt.s32.f32 %v1211
        %v1213 = vld [vmem:[%s1064] sm:$0x1]
        %v1215 = vlaneseq
        %v1216 = vshrl.u32 %v1215, 7
        %v1217 = vsub.s32 0, %v1216
        %v1218 = vrot.slane %v1213, %v1217
        %v1220 = vadd.f32 %v1212, %v1218
        %v1221 = vmul.f32 %v1220, -1e+09
        %v1222 = vld [vmem:[%s1072] sm:$0x1]
        %v1224 = vlaneseq
        %v1225 = vshrl.u32 %v1224, 7
        %v1226 = vsub.s32 0, %v1225
        %v1227 = vrot.slane %v1222, %v1226
        %v1229 = vmul.f32 %v1227, -1e+09
        %v1230 = vpack.c.bf16 %v1197, %v1197
        %v1231 = vld [vmem:[%s11] sm:$0xf]
        %v1232 = vld [vmem:[%s11 + $0x4] sm:$0xf]
        %v1233 = vld [vmem:[%s11 + $0x8] sm:$0xf]
        %v1234 = vld [vmem:[%s11 + $0xc] sm:$0xf]
        %v1235 = vld [vmem:[%s13] sm:$0x1]
        %v1237 = vlaneseq
        %v1238 = vshrl.u32 %v1237, 7
        %v1239 = vsub.s32 0, %v1238
        %v1240 = vrot.slane %v1235, %v1239
        %v1246 = vunpack.c.l.b16 %v1231
        %v1247 = vunpack.c.l.b16 %v1232
        %v1248 = vunpack.c.l.b16 %v1233
        %v1249 = vunpack.c.l.b16 %v1234
        %v1250 = vpack.c.b16 %v1247, %v1246
        %v1251 = vpack.c.b16 %v1249, %v1248
        %vm1254 = vcmask 261120
        %v1256 = vsel %vm1254, %v1230, 0
        %1258 = vmatprep.subr.bf16.mxu0 0
        %1259 = vmatpush1.bf16.msra.mxu0 %v1250
        %1260 = vmatprep.subr.bf16.mxu0 0
        %1261 = vmatpush1.bf16.msra.mxu0 %v1251
        %1262 = vmatprep.subr.bf16.mxu0 0
        %1263 = vmatpush1.bf16.msra.mxu0 0
        %1264 = vmatprep.subr.bf16.mxu0 0
        %1265 = vmatpush1.bf16.msra.mxu0 0
        %1266 = vmatprep.subr.bf16.mxu0 0
        %1267 = vmatpush1.bf16.msra.mxu0 0
        %1268 = vmatprep.subr.bf16.mxu0 0
        %1269 = vmatpush1.bf16.msra.mxu0 0
        %1270 = vmatprep.subr.bf16.mxu0 0
        %1271 = vmatpush1.bf16.msra.mxu0 0
        %1272 = vmatprep.subr.bf16.mxu0 0
        %1273 = vmatpush1.bf16.msra.mxu0 0
        %1274 = vmatprep.subr.bf16.mxu0 0
        %1275 = vmatpush1.bf16.msra.mxu0 0
        %1276 = vmatprep.subr.bf16.mxu0 0
        %1277 = vmatpush1.bf16.msra.mxu0 0
        %1278 = vmatprep.subr.bf16.mxu0 0
        %1279 = vmatpush1.bf16.msra.mxu0 0
        %1280 = vmatprep.subr.bf16.mxu0 0
        %1281 = vmatpush1.bf16.msra.mxu0 0
        %1282 = vmatprep.subr.bf16.mxu0 0
        %1283 = vmatpush1.bf16.msra.mxu0 0
        %1284 = vmatprep.subr.bf16.mxu0 0
        %1285 = vmatpush1.bf16.msra.mxu0 0
        %1286 = vmatprep.subr.bf16.mxu0 0
        %1287 = vmatpush1.bf16.msra.mxu0 0
        %1288 = vmatprep.subr.bf16.mxu0 0
        %1289 = vmatpush1.bf16.msra.mxu0 0
        %1290 = vmatprep.mubr.bf16.mxu0 0
        %1291 = vmatmul.mubr.bf16.gmra.mrb[0].mxu0 %v1256
        %v1292 = vpop.f32.mrb[0].mxu0
        %v1293 = vadd.f32 %v1240, %v1292
        %v1294 = vpop.f32.mrb[0].mxu0
        %v1295 = vpop.f32.mrb[0].mxu0
        %v1296 = vpop.f32.mrb[0].mxu0
        %1297 = vdwg.mxu0
        %v1298 = vld [vmem:[%s15] sm:$0xf]
        %v1299 = vld [vmem:[%s15 + $0x4] sm:$0xf]
        %v1300 = vld [vmem:[%s15 + $0x8] sm:$0xf]
        %v1301 = vld [vmem:[%s15 + $0xc] sm:$0xf]
        %v1302 = vld [vmem:[%s17] sm:$0xff]
        %v1303 = vld [vmem:[%s17 + $0x8] sm:$0xff]
        %v1304 = vld [vmem:[%s17 + $0x10] sm:$0xff]
        %v1305 = vld [vmem:[%s17 + $0x18] sm:$0xff]
        %1307 = vset.pattern.permute.xlu0 0
        %1308 = vperm.xlu0 %1307, %v1302
        %v1309 = vpop.permute.xlu0 %1308
        %1312 = vset.pattern.permute.xlu0 0
        %1313 = vperm.xlu0 %1312, %v1303
        %v1314 = vpop.permute.xlu0 %1313
        %1317 = vset.pattern.permute.xlu0 0
        %1318 = vperm.xlu0 %1317, %v1304
        %v1319 = vpop.permute.xlu0 %1318
        %1322 = vset.pattern.permute.xlu0 0
        %1323 = vperm.xlu0 %1322, %v1305
        %v1324 = vpop.permute.xlu0 %1323
        %v1330 = vunpack.c.l.b16 %v1298
        %v1331 = vunpack.c.l.b16 %v1299
        %v1332 = vunpack.c.l.b16 %v1300
        %v1333 = vunpack.c.l.b16 %v1301
        %v1334 = vpack.c.b16 %v1331, %v1330
        %v1335 = vpack.c.b16 %v1333, %v1332
        %v1337 = vsel %vm1254, %v1334, 0
        %v1340 = vsel %vm1254, %v1335, 0
        %1342 = vmatprep.subr.bf16.mxu0 0
        %1343 = vmatpush1.bf16.xpose.msra.mxu0 %v1256
        %1344 = vmatprep.subr.bf16.mxu0 0
        %1345 = vmatpush1.bf16.xpose.msra.mxu0 0
        %1346 = vmatprep.subr.bf16.mxu0 0
        %1347 = vmatpush1.bf16.xpose.msra.mxu0 0
        %1348 = vmatprep.subr.bf16.mxu0 0
        %1349 = vmatpush1.bf16.xpose.msra.mxu0 0
        %1350 = vmatprep.subr.bf16.mxu0 0
        %1351 = vmatpush1.bf16.xpose.msra.mxu0 0
        %1352 = vmatprep.subr.bf16.mxu0 0
        %1353 = vmatpush1.bf16.xpose.msra.mxu0 0
        %1354 = vmatprep.subr.bf16.mxu0 0
        %1355 = vmatpush1.bf16.xpose.msra.mxu0 0
        %1356 = vmatprep.subr.bf16.mxu0 0
        %1357 = vmatpush1.bf16.xpose.msra.mxu0 0
        %1358 = vmatprep.subr.bf16.mxu0 0
        %1359 = vmatpush1.bf16.xpose.msra.mxu0 0
        %1360 = vmatprep.subr.bf16.mxu0 0
        %1361 = vmatpush1.bf16.xpose.msra.mxu0 0
        %1362 = vmatprep.subr.bf16.mxu0 0
        %1363 = vmatpush1.bf16.xpose.msra.mxu0 0
        %1364 = vmatprep.subr.bf16.mxu0 0
        %1365 = vmatpush1.bf16.xpose.msra.mxu0 0
        %1366 = vmatprep.subr.bf16.mxu0 0
        %1367 = vmatpush1.bf16.xpose.msra.mxu0 0
        %1368 = vmatprep.subr.bf16.mxu0 0
        %1369 = vmatpush1.bf16.xpose.msra.mxu0 0
        %1370 = vmatprep.subr.bf16.mxu0 0
        %1371 = vmatpush1.bf16.xpose.msra.mxu0 0
        %1372 = vmatprep.subr.bf16.mxu0 0
        %1373 = vmatpush1.bf16.xpose.msra.mxu0 0
        %1374 = vmatprep.mubr.bf16.mxu0 0
        %1375 = vmatmul.mubr.bf16.gmra.mrb[0].mxu0 %v1337
        %v1376 = vpop.f32.mrb[0].mxu0
        %v1377 = vadd.f32 %v1309, %v1376
        %v1378 = vpop.f32.mrb[0].mxu0
        %v1379 = vpop.f32.mrb[0].mxu0
        %v1380 = vadd.f32 %v1314, %v1379
        %v1381 = vpop.f32.mrb[0].mxu0
        %1382 = vmatprep.mubr.bf16.mxu0 0
        %1383 = vmatmul.mubr.bf16.gmra.mrb[0].mxu0 %v1340
        %v1384 = vpop.f32.mrb[0].mxu0
        %v1385 = vadd.f32 %v1319, %v1384
        %v1386 = vpop.f32.mrb[0].mxu0
        %v1387 = vpop.f32.mrb[0].mxu0
        %v1388 = vadd.f32 %v1324, %v1387
        %v1389 = vpop.f32.mrb[0].mxu0
        %1390 = vdwg.mxu0
        %v1391 = vld [vmem:[%s19] sm:$0xf]
        %v1392 = vld [vmem:[%s19 + $0x4] sm:$0xf]
        %v1393 = vld [vmem:[%s19 + $0x8] sm:$0xf]
        %v1394 = vld [vmem:[%s19 + $0xc] sm:$0xf]
        %v1395 = vld [vmem:[#allocation7] sm:$0x1]
        %v1397 = vlaneseq
        %v1398 = vshrl.u32 %v1397, 7
        %v1399 = vsub.s32 0, %v1398
        %v1400 = vrot.slane %v1395, %v1399
        %v1406 = vunpack.c.l.b16 %v1391
        %v1407 = vunpack.c.l.b16 %v1392
        %v1408 = vunpack.c.l.b16 %v1393
        %v1409 = vunpack.c.l.b16 %v1394
        %v1410 = vpack.c.b16 %v1407, %v1406
        %v1411 = vpack.c.b16 %v1409, %v1408
        %1414 = vmatprep.subr.bf16.mxu0 0
        %1415 = vmatpush1.bf16.msra.mxu0 %v1410
        %1416 = vmatprep.subr.bf16.mxu0 0
        %1417 = vmatpush1.bf16.msra.mxu0 %v1411
        %1418 = vmatprep.subr.bf16.mxu0 0
        %1419 = vmatpush1.bf16.msra.mxu0 0
        %1420 = vmatprep.subr.bf16.mxu0 0
        %1421 = vmatpush1.bf16.msra.mxu0 0
        %1422 = vmatprep.subr.bf16.mxu0 0
        %1423 = vmatpush1.bf16.msra.mxu0 0
        %1424 = vmatprep.subr.bf16.mxu0 0
        %1425 = vmatpush1.bf16.msra.mxu0 0
        %1426 = vmatprep.subr.bf16.mxu0 0
        %1427 = vmatpush1.bf16.msra.mxu0 0
        %1428 = vmatprep.subr.bf16.mxu0 0
        %1429 = vmatpush1.bf16.msra.mxu0 0
        %1430 = vmatprep.subr.bf16.mxu0 0
        %1431 = vmatpush1.bf16.msra.mxu0 0
        %1432 = vmatprep.subr.bf16.mxu0 0
        %1433 = vmatpush1.bf16.msra.mxu0 0
        %1434 = vmatprep.subr.bf16.mxu0 0
        %1435 = vmatpush1.bf16.msra.mxu0 0
        %1436 = vmatprep.subr.bf16.mxu0 0
        %1437 = vmatpush1.bf16.msra.mxu0 0
        %1438 = vmatprep.subr.bf16.mxu0 0
        %1439 = vmatpush1.bf16.msra.mxu0 0
        %1440 = vmatprep.subr.bf16.mxu0 0
        %1441 = vmatpush1.bf16.msra.mxu0 0
        %1442 = vmatprep.subr.bf16.mxu0 0
        %1443 = vmatpush1.bf16.msra.mxu0 0
        %1444 = vmatprep.subr.bf16.mxu0 0
        %1445 = vmatpush1.bf16.msra.mxu0 0
        %1446 = vmatprep.mubr.bf16.mxu0 0
        %1447 = vmatmul.mubr.bf16.gmra.mrb[0].mxu0 %v1256
        %v1448 = vpop.f32.mrb[0].mxu0
        %v1449 = vadd.f32 %v1400, %v1448
        %v1450 = vpop.f32.mrb[0].mxu0
        %v1451 = vpop.f32.mrb[0].mxu0
        %v1452 = vpop.f32.mrb[0].mxu0
        %1453 = vdwg.mxu0
        %v1454 = vld [vmem:[%s55] sm:$0x1]
        %v1456 = vlaneseq
        %v1457 = vshrl.u32 %v1456, 7
        %v1458 = vsub.s32 0, %v1457
        %v1459 = vrot.slane %v1454, %v1458
        %v1461 = vadd.f32 %v1293, %v1459
        %v1462 = vpack.c.bf16 %v1461, %v1461
        %v1463 = vld [vmem:[%s57] sm:$0x1]
        %v1465 = vlaneseq
        %v1466 = vshrl.u32 %v1465, 7
        %v1467 = vsub.s32 0, %v1466
        %v1468 = vrot.slane %v1463, %v1467
        %v1470 = vadd.f32 %v1293, %v1468
        %v1471 = vpack.c.bf16 %v1470, %v1470
        %v1472 = vpack.c.bf16 %v1380, %v1377
        %v1473 = vpack.c.bf16 %v1388, %v1385
        %v1474 = vpack.c.bf16 %v1449, %v1449
        %v1475 = vld [vmem:[%s23] sm:$0xf]
        %v1476 = vld [vmem:[%s23 + $0x4] sm:$0xf]
        %v1479 = vunpack.c.l.b16 %v1475
        %v1480 = vunpack.c.l.b16 %v1476
        %v1481 = vpack.c.b16 %v1480, %v1479
        %vm1483 = vcmask 130048
        %v1485 = vsel %vm1483, %v1471, 0
        %1487 = vmatprep.subr.bf16.mxu0 0
        %1488 = vmatpush1.bf16.msra.mxu0 %v1481
        %1489 = vmatprep.subr.bf16.mxu0 0
        %1490 = vmatpush1.bf16.msra.mxu0 0
        %1491 = vmatprep.subr.bf16.mxu0 0
        %1492 = vmatpush1.bf16.msra.mxu0 0
        %1493 = vmatprep.subr.bf16.mxu0 0
        %1494 = vmatpush1.bf16.msra.mxu0 0
        %1495 = vmatprep.subr.bf16.mxu0 0
        %1496 = vmatpush1.bf16.msra.mxu0 0
        %1497 = vmatprep.subr.bf16.mxu0 0
        %1498 = vmatpush1.bf16.msra.mxu0 0
        %1499 = vmatprep.subr.bf16.mxu0 0
        %1500 = vmatpush1.bf16.msra.mxu0 0
        %1501 = vmatprep.subr.bf16.mxu0 0
        %1502 = vmatpush1.bf16.msra.mxu0 0
        %1503 = vmatprep.subr.bf16.mxu0 0
        %1504 = vmatpush1.bf16.msra.mxu0 0
        %1505 = vmatprep.subr.bf16.mxu0 0
        %1506 = vmatpush1.bf16.msra.mxu0 0
        %1507 = vmatprep.subr.bf16.mxu0 0
        %1508 = vmatpush1.bf16.msra.mxu0 0
        %1509 = vmatprep.subr.bf16.mxu0 0
        %1510 = vmatpush1.bf16.msra.mxu0 0
        %1511 = vmatprep.subr.bf16.mxu0 0
        %1512 = vmatpush1.bf16.msra.mxu0 0
        %1513 = vmatprep.subr.bf16.mxu0 0
        %1514 = vmatpush1.bf16.msra.mxu0 0
        %1515 = vmatprep.subr.bf16.mxu0 0
        %1516 = vmatpush1.bf16.msra.mxu0 0
        %1517 = vmatprep.subr.bf16.mxu0 0
        %1518 = vmatpush1.bf16.msra.mxu0 0
        %1519 = vmatprep.mubr.bf16.mxu0 0
        %1520 = vmatmul.mubr.bf16.gmra.mrb[0].mxu0 %v1485
        %v1521 = vpop.f32.mrb[0].mxu0
        %v1522 = vadd.f32 0.0, %v1521
        %v1523 = vpop.f32.mrb[0].mxu0
        %v1524 = vpop.f32.mrb[0].mxu0
        %v1525 = vpop.f32.mrb[0].mxu0
        %1526 = vdwg.mxu0
        %1528 = vrot.lane.b32.xlu0 %v1522, 256
        %v1529 = vpop.permute.xlu0 %1528
        %1531 = vrot.lane.b32.xlu0 %v1529, 121
        %v1532 = vpop.permute.xlu0 %1531
        %v1535 = vsel %vm1483, %v1462, 0
        %1537 = vmatprep.subr.bf16.mxu0 0
        %1538 = vmatpush1.bf16.msra.mxu0 %v1472
        %1539 = vmatprep.subr.bf16.mxu0 0
        %1540 = vmatpush1.bf16.msra.mxu0 0
        %1541 = vmatprep.subr.bf16.mxu0 0
        %1542 = vmatpush1.bf16.msra.mxu0 0
        %1543 = vmatprep.subr.bf16.mxu0 0
        %1544 = vmatpush1.bf16.msra.mxu0 0
        %1545 = vmatprep.subr.bf16.mxu0 0
        %1546 = vmatpush1.bf16.msra.mxu0 0
        %1547 = vmatprep.subr.bf16.mxu0 0
        %1548 = vmatpush1.bf16.msra.mxu0 0
        %1549 = vmatprep.subr.bf16.mxu0 0
        %1550 = vmatpush1.bf16.msra.mxu0 0
        %1551 = vmatprep.subr.bf16.mxu0 0
        %1552 = vmatpush1.bf16.msra.mxu0 0
        %1553 = vmatprep.subr.bf16.mxu0 0
        %1554 = vmatpush1.bf16.msra.mxu0 0
        %1555 = vmatprep.subr.bf16.mxu0 0
        %1556 = vmatpush1.bf16.msra.mxu0 0
        %1557 = vmatprep.subr.bf16.mxu0 0
        %1558 = vmatpush1.bf16.msra.mxu0 0
        %1559 = vmatprep.subr.bf16.mxu0 0
        %1560 = vmatpush1.bf16.msra.mxu0 0
        %1561 = vmatprep.subr.bf16.mxu0 0
        %1562 = vmatpush1.bf16.msra.mxu0 0
        %1563 = vmatprep.subr.bf16.mxu0 0
        %1564 = vmatpush1.bf16.msra.mxu0 0
        %1565 = vmatprep.subr.bf16.mxu0 0
        %1566 = vmatpush1.bf16.msra.mxu0 0
        %1567 = vmatprep.subr.bf16.mxu0 0
        %1568 = vmatpush1.bf16.msra.mxu0 0
        %1569 = vmatprep.mubr.bf16.mxu0 0
        %1570 = vmatmul.mubr.bf16.gmra.mrb[0].mxu0 %v1535
        %v1571 = vpop.f32.mrb[0].mxu0
        %v1572 = vadd.f32 %v1532, %v1571
        %v1573 = vpop.f32.mrb[0].mxu0
        %v1574 = vpop.f32.mrb[0].mxu0
        %v1575 = vpop.f32.mrb[0].mxu0
        %1576 = vdwg.mxu0
        %v1577 = vmul.f32 %v1572, 0.25
        %v1578 = vadd.f32 %v1577, %v1221
        %vm1579 = vcmask 64512
        %v1580 = vsel %vm1579, %v1578, -inf
        %1581 = vmax.xlane.f32.xlu0 %v1580
        %v1582 = vpop.xlane.xlu0 %1581
        %v1583 = vsub.f32 %v1578, %v1582
        %v1584 = vmul.f32 %v1583, 1.442695
        %v1585 = vpow.pop %v1584
        %v1586 = vsel %vm1579, %v1585, 0.0
        %1587 = vadd.xlane.f32.xlu0 %v1586
        %v1588 = vpop.xlane.xlu0 %1587
        %v1589 = vrcp.pop %v1588
        %v1590 = vmul.f32 %v1585, %v1589
        %v1591 = vpack.c.bf16 %v1590, %v1590
        %v1593 = vsel %vm1579, %v1591, 0
        %vm1595 = vcmask 1043456
        %v1597 = vsel %vm1595, %v1474, 0
        %1599 = vmatprep.subr.bf16.mxu0 0
        %1600 = vmatpush1.bf16.msra.mxu0 %v1597
        %1601 = vmatprep.subr.bf16.mxu0 0
        %1602 = vmatpush1.bf16.msra.mxu0 0
        %1603 = vmatprep.subr.bf16.mxu0 0
        %1604 = vmatpush1.bf16.msra.mxu0 0
        %1605 = vmatprep.subr.bf16.mxu0 0
        %1606 = vmatpush1.bf16.msra.mxu0 0
        %1607 = vmatprep.subr.bf16.mxu0 0
        %1608 = vmatpush1.bf16.msra.mxu0 0
        %1609 = vmatprep.subr.bf16.mxu0 0
        %1610 = vmatpush1.bf16.msra.mxu0 0
        %1611 = vmatprep.subr.bf16.mxu0 0
        %1612 = vmatpush1.bf16.msra.mxu0 0
        %1613 = vmatprep.subr.bf16.mxu0 0
        %1614 = vmatpush1.bf16.msra.mxu0 0
        %1615 = vmatprep.subr.bf16.mxu0 0
        %1616 = vmatpush1.bf16.msra.mxu0 0
        %1617 = vmatprep.subr.bf16.mxu0 0
        %1618 = vmatpush1.bf16.msra.mxu0 0
        %1619 = vmatprep.subr.bf16.mxu0 0
        %1620 = vmatpush1.bf16.msra.mxu0 0
        %1621 = vmatprep.subr.bf16.mxu0 0
        %1622 = vmatpush1.bf16.msra.mxu0 0
        %1623 = vmatprep.subr.bf16.mxu0 0
        %1624 = vmatpush1.bf16.msra.mxu0 0
        %1625 = vmatprep.subr.bf16.mxu0 0
        %1626 = vmatpush1.bf16.msra.mxu0 0
        %1627 = vmatprep.subr.bf16.mxu0 0
        %1628 = vmatpush1.bf16.msra.mxu0 0
        %1629 = vmatprep.subr.bf16.mxu0 0
        %1630 = vmatpush1.bf16.msra.mxu0 0
        %1631 = vmatprep.mubr.bf16.mxu0 0
        %1632 = vmatmul.mubr.bf16.gmra.mrb[0].mxu0 %v1593
        %v1633 = vpop.f32.mrb[0].mxu0
        %v1634 = vadd.f32 0.0, %v1633
        %v1635 = vpop.f32.mrb[0].mxu0
        %v1636 = vpop.f32.mrb[0].mxu0
        %v1637 = vpop.f32.mrb[0].mxu0
        %1638 = vdwg.mxu0
        %v1639 = vpack.c.bf16 %v1634, %v1634
        %v1640 = vld [vmem:[%s25] sm:$0xf]
        %v1641 = vld [vmem:[%s25 + $0x4] sm:$0xf]
        %s1642 = scalar_lea.vmem %s23, 8
        %v1643 = vld [vmem:[%s1642] sm:$0xf]
        %v1644 = vld [vmem:[%s1642 + $0x4] sm:$0xf]
        %1646 = vrot.lane.b32.xlu0 %v1471, 112
        %v1647 = vpop.permute.xlu0 %1646
        %v1650 = vunpack.c.l.b16 %v1643
        %v1651 = vunpack.c.l.b16 %v1644
        %v1652 = vpack.c.b16 %v1651, %v1650
        %v1655 = vsel %vm1483, %v1647, 0
        %1657 = vmatprep.subr.bf16.mxu0 0
        %1658 = vmatpush1.bf16.msra.mxu0 %v1652
        %1659 = vmatprep.subr.bf16.mxu0 0
        %1660 = vmatpush1.bf16.msra.mxu0 0
        %1661 = vmatprep.subr.bf16.mxu0 0
        %1662 = vmatpush1.bf16.msra.mxu0 0
        %1663 = vmatprep.subr.bf16.mxu0 0
        %1664 = vmatpush1.bf16.msra.mxu0 0
        %1665 = vmatprep.subr.bf16.mxu0 0
        %1666 = vmatpush1.bf16.msra.mxu0 0
        %1667 = vmatprep.subr.bf16.mxu0 0
        %1668 = vmatpush1.bf16.msra.mxu0 0
        %1669 = vmatprep.subr.bf16.mxu0 0
        %1670 = vmatpush1.bf16.msra.mxu0 0
        %1671 = vmatprep.subr.bf16.mxu0 0
        %1672 = vmatpush1.bf16.msra.mxu0 0
        %1673 = vmatprep.subr.bf16.mxu0 0
        %1674 = vmatpush1.bf16.msra.mxu0 0
        %1675 = vmatprep.subr.bf16.mxu0 0
        %1676 = vmatpush1.bf16.msra.mxu0 0
        %1677 = vmatprep.subr.bf16.mxu0 0
        %1678 = vmatpush1.bf16.msra.mxu0 0
        %1679 = vmatprep.subr.bf16.mxu0 0
        %1680 = vmatpush1.bf16.msra.mxu0 0
        %1681 = vmatprep.subr.bf16.mxu0 0
        %1682 = vmatpush1.bf16.msra.mxu0 0
        %1683 = vmatprep.subr.bf16.mxu0 0
        %1684 = vmatpush1.bf16.msra.mxu0 0
        %1685 = vmatprep.subr.bf16.mxu0 0
        %1686 = vmatpush1.bf16.msra.mxu0 0
        %1687 = vmatprep.subr.bf16.mxu0 0
        %1688 = vmatpush1.bf16.msra.mxu0 0
        %1689 = vmatprep.mubr.bf16.mxu0 0
        %1690 = vmatmul.mubr.bf16.gmra.mrb[0].mxu0 %v1655
        %v1691 = vpop.f32.mrb[0].mxu0
        %v1692 = vadd.f32 0.0, %v1691
        %v1693 = vpop.f32.mrb[0].mxu0
        %v1694 = vpop.f32.mrb[0].mxu0
        %v1695 = vpop.f32.mrb[0].mxu0
        %1696 = vdwg.mxu0
        %1698 = vrot.lane.b32.xlu0 %v1692, 256
        %v1699 = vpop.permute.xlu0 %1698
        %1701 = vrot.lane.b32.xlu0 %v1462, 112
        %v1702 = vpop.permute.xlu0 %1701
        %1704 = vrot.lane.b32.xlu0 %v1699, 121
        %v1705 = vpop.permute.xlu0 %1704
        %v1708 = vsel %vm1483, %v1702, 0
        %1710 = vmatprep.subr.bf16.mxu0 0
        %1711 = vmatpush1.bf16.msra.mxu0 %v1473
        %1712 = vmatprep.subr.bf16.mxu0 0
        %1713 = vmatpush1.bf16.msra.mxu0 0
        %1714 = vmatprep.subr.bf16.mxu0 0
        %1715 = vmatpush1.bf16.msra.mxu0 0
        %1716 = vmatprep.subr.bf16.mxu0 0
        %1717 = vmatpush1.bf16.msra.mxu0 0
        %1718 = vmatprep.subr.bf16.mxu0 0
        %1719 = vmatpush1.bf16.msra.mxu0 0
        %1720 = vmatprep.subr.bf16.mxu0 0
        %1721 = vmatpush1.bf16.msra.mxu0 0
        %1722 = vmatprep.subr.bf16.mxu0 0
        %1723 = vmatpush1.bf16.msra.mxu0 0
        %1724 = vmatprep.subr.bf16.mxu0 0
        %1725 = vmatpush1.bf16.msra.mxu0 0
        %1726 = vmatprep.subr.bf16.mxu0 0
        %1727 = vmatpush1.bf16.msra.mxu0 0
        %1728 = vmatprep.subr.bf16.mxu0 0
        %1729 = vmatpush1.bf16.msra.mxu0 0
        %1730 = vmatprep.subr.bf16.mxu0 0
        %1731 = vmatpush1.bf16.msra.mxu0 0
        %1732 = vmatprep.subr.bf16.mxu0 0
        %1733 = vmatpush1.bf16.msra.mxu0 0
        %1734 = vmatprep.subr.bf16.mxu0 0
        %1735 = vmatpush1.bf16.msra.mxu0 0
        %1736 = vmatprep.subr.bf16.mxu0 0
        %1737 = vmatpush1.bf16.msra.mxu0 0
        %1738 = vmatprep.subr.bf16.mxu0 0
        %1739 = vmatpush1.bf16.msra.mxu0 0
        %1740 = vmatprep.subr.bf16.mxu0 0
        %1741 = vmatpush1.bf16.msra.mxu0 0
        %1742 = vmatprep.mubr.bf16.mxu0 0
        %1743 = vmatmul.mubr.bf16.gmra.mrb[0].mxu0 %v1708
        %v1744 = vpop.f32.mrb[0].mxu0
        %v1745 = vadd.f32 %v1705, %v1744
        %v1746 = vpop.f32.mrb[0].mxu0
        %v1747 = vpop.f32.mrb[0].mxu0
        %v1748 = vpop.f32.mrb[0].mxu0
        %1749 = vdwg.mxu0
        %v1750 = vmul.f32 %v1745, 0.25
        %v1751 = vadd.f32 %v1750, %v1221
        %v1752 = vsel %vm1579, %v1751, -inf
        %1753 = vmax.xlane.f32.xlu0 %v1752
        %v1754 = vpop.xlane.xlu0 %1753
        %v1755 = vsub.f32 %v1751, %v1754
        %v1756 = vmul.f32 %v1755, 1.442695
        %v1757 = vpow.pop %v1756
        %v1758 = vsel %vm1579, %v1757, 0.0
        %1759 = vadd.xlane.f32.xlu0 %v1758
        %v1760 = vpop.xlane.xlu0 %1759
        %v1761 = vrcp.pop %v1760
        %v1762 = vmul.f32 %v1757, %v1761
        %v1763 = vpack.c.bf16 %v1762, %v1762
        %1765 = vrot.lane.b32.xlu0 %v1474, 112
        %v1766 = vpop.permute.xlu0 %1765
        %v1768 = vsel %vm1579, %v1763, 0
        %v1771 = vsel %vm1595, %v1766, 0
        %1773 = vmatprep.subr.bf16.mxu0 0
        %1774 = vmatpush1.bf16.msra.mxu0 %v1771
        %1775 = vmatprep.subr.bf16.mxu0 0
        %1776 = vmatpush1.bf16.msra.mxu0 0
        %1777 = vmatprep.subr.bf16.mxu0 0
        %1778 = vmatpush1.bf16.msra.mxu0 0
        %1779 = vmatprep.subr.bf16.mxu0 0
        %1780 = vmatpush1.bf16.msra.mxu0 0
        %1781 = vmatprep.subr.bf16.mxu0 0
        %1782 = vmatpush1.bf16.msra.mxu0 0
        %1783 = vmatprep.subr.bf16.mxu0 0
        %1784 = vmatpush1.bf16.msra.mxu0 0
        %1785 = vmatprep.subr.bf16.mxu0 0
        %1786 = vmatpush1.bf16.msra.mxu0 0
        %1787 = vmatprep.subr.bf16.mxu0 0
        %1788 = vmatpush1.bf16.msra.mxu0 0
        %1789 = vmatprep.subr.bf16.mxu0 0
        %1790 = vmatpush1.bf16.msra.mxu0 0
        %1791 = vmatprep.subr.bf16.mxu0 0
        %1792 = vmatpush1.bf16.msra.mxu0 0
        %1793 = vmatprep.subr.bf16.mxu0 0
        %1794 = vmatpush1.bf16.msra.mxu0 0
        %1795 = vmatprep.subr.bf16.mxu0 0
        %1796 = vmatpush1.bf16.msra.mxu0 0
        %1797 = vmatprep.subr.bf16.mxu0 0
        %1798 = vmatpush1.bf16.msra.mxu0 0
        %1799 = vmatprep.subr.bf16.mxu0 0
        %1800 = vmatpush1.bf16.msra.mxu0 0
        %1801 = vmatprep.subr.bf16.mxu0 0
        %1802 = vmatpush1.bf16.msra.mxu0 0
        %1803 = vmatprep.subr.bf16.mxu0 0
        %1804 = vmatpush1.bf16.msra.mxu0 0
        %1805 = vmatprep.mubr.bf16.mxu0 0
        %1806 = vmatmul.mubr.bf16.gmra.mrb[0].mxu0 %v1768
        %v1807 = vpop.f32.mrb[0].mxu0
        %v1808 = vadd.f32 0.0, %v1807
        %v1809 = vpop.f32.mrb[0].mxu0
        %v1810 = vpop.f32.mrb[0].mxu0
        %v1811 = vpop.f32.mrb[0].mxu0
        %1812 = vdwg.mxu0
        %v1813 = vpack.c.bf16 %v1808, %v1808
        %v1814 = vld [vmem:[%s25 + $0x8] sm:$0xf]
        %v1815 = vld [vmem:[%s25 + $0xc] sm:$0xf]
        %v1818 = vunpack.c.l.b16 %v1814
        %v1819 = vunpack.c.l.b16 %v1815
        %v1820 = vpack.c.b16 %v1819, %v1818
        %v1823 = vsel %vm1483, %v1813, 0
        %1825 = vmatprep.subr.bf16.mxu0 0
        %1826 = vmatpush1.bf16.msra.mxu0 %v1820
        %1827 = vmatprep.subr.bf16.mxu0 0
        %1828 = vmatpush1.bf16.msra.mxu0 0
        %1829 = vmatprep.subr.bf16.mxu0 0
        %1830 = vmatpush1.bf16.msra.mxu0 0
        %1831 = vmatprep.subr.bf16.mxu0 0
        %1832 = vmatpush1.bf16.msra.mxu0 0
        %1833 = vmatprep.subr.bf16.mxu0 0
        %1834 = vmatpush1.bf16.msra.mxu0 0
        %1835 = vmatprep.subr.bf16.mxu0 0
        %1836 = vmatpush1.bf16.msra.mxu0 0
        %1837 = vmatprep.subr.bf16.mxu0 0
        %1838 = vmatpush1.bf16.msra.mxu0 0
        %1839 = vmatprep.subr.bf16.mxu0 0
        %1840 = vmatpush1.bf16.msra.mxu0 0
        %1841 = vmatprep.subr.bf16.mxu0 0
        %1842 = vmatpush1.bf16.msra.mxu0 0
        %1843 = vmatprep.subr.bf16.mxu0 0
        %1844 = vmatpush1.bf16.msra.mxu0 0
        %1845 = vmatprep.subr.bf16.mxu0 0
        %1846 = vmatpush1.bf16.msra.mxu0 0
        %1847 = vmatprep.subr.bf16.mxu0 0
        %1848 = vmatpush1.bf16.msra.mxu0 0
        %1849 = vmatprep.subr.bf16.mxu0 0
        %1850 = vmatpush1.bf16.msra.mxu0 0
        %1851 = vmatprep.subr.bf16.mxu0 0
        %1852 = vmatpush1.bf16.msra.mxu0 0
        %1853 = vmatprep.subr.bf16.mxu0 0
        %1854 = vmatpush1.bf16.msra.mxu0 0
        %1855 = vmatprep.subr.bf16.mxu0 0
        %1856 = vmatpush1.bf16.msra.mxu0 0
        %1857 = vmatprep.mubr.bf16.mxu0 0
        %1858 = vmatmul.mubr.bf16.gmra.mrb[0].mxu0 %v1823
        %v1859 = vpop.f32.mrb[0].mxu0
        %v1860 = vadd.f32 0.0, %v1859
        %v1861 = vpop.f32.mrb[0].mxu0
        %v1862 = vpop.f32.mrb[0].mxu0
        %v1863 = vpop.f32.mrb[0].mxu0
        %1864 = vdwg.mxu0
        %v1867 = vunpack.c.l.b16 %v1640
        %v1868 = vunpack.c.l.b16 %v1641
        %v1869 = vpack.c.b16 %v1868, %v1867
        %v1872 = vsel %vm1483, %v1639, 0
        %1874 = vmatprep.subr.bf16.mxu0 0
        %1875 = vmatpush1.bf16.msra.mxu0 %v1869
        %1876 = vmatprep.subr.bf16.mxu0 0
        %1877 = vmatpush1.bf16.msra.mxu0 0
        %1878 = vmatprep.subr.bf16.mxu0 0
        %1879 = vmatpush1.bf16.msra.mxu0 0
        %1880 = vmatprep.subr.bf16.mxu0 0
        %1881 = vmatpush1.bf16.msra.mxu0 0
        %1882 = vmatprep.subr.bf16.mxu0 0
        %1883 = vmatpush1.bf16.msra.mxu0 0
        %1884 = vmatprep.subr.bf16.mxu0 0
        %1885 = vmatpush1.bf16.msra.mxu0 0
        %1886 = vmatprep.subr.bf16.mxu0 0
        %1887 = vmatpush1.bf16.msra.mxu0 0
        %1888 = vmatprep.subr.bf16.mxu0 0
        %1889 = vmatpush1.bf16.msra.mxu0 0
        %1890 = vmatprep.subr.bf16.mxu0 0
        %1891 = vmatpush1.bf16.msra.mxu0 0
        %1892 = vmatprep.subr.bf16.mxu0 0
        %1893 = vmatpush1.bf16.msra.mxu0 0
        %1894 = vmatprep.subr.bf16.mxu0 0
        %1895 = vmatpush1.bf16.msra.mxu0 0
        %1896 = vmatprep.subr.bf16.mxu0 0
        %1897 = vmatpush1.bf16.msra.mxu0 0
        %1898 = vmatprep.subr.bf16.mxu0 0
        %1899 = vmatpush1.bf16.msra.mxu0 0
        %1900 = vmatprep.subr.bf16.mxu0 0
        %1901 = vmatpush1.bf16.msra.mxu0 0
        %1902 = vmatprep.subr.bf16.mxu0 0
        %1903 = vmatpush1.bf16.msra.mxu0 0
        %1904 = vmatprep.subr.bf16.mxu0 0
        %1905 = vmatpush1.bf16.msra.mxu0 0
        %1906 = vmatprep.mubr.bf16.mxu0 0
        %1907 = vmatmul.mubr.bf16.gmra.mrb[0].mxu0 %v1872
        %v1908 = vpop.f32.mrb[0].mxu0
        %v1909 = vadd.f32 %v1860, %v1908
        %v1910 = vpop.f32.mrb[0].mxu0
        %v1911 = vpop.f32.mrb[0].mxu0
        %v1912 = vpop.f32.mrb[0].mxu0
        %1913 = vdwg.mxu0
        %v1914 = vld [vmem:[#allocation8] sm:$0x1]
        %v1916 = vlaneseq
        %v1917 = vshrl.u32 %v1916, 7
        %v1918 = vsub.s32 0, %v1917
        %v1919 = vrot.slane %v1914, %v1918
        %v1921 = vadd.f32 %v1909, %v1919
        %v1922 = vadd.f32 %v1921, %v1197
        %v1923 = vsel %vm1254, %v1922, 0.0
        %1924 = vadd.xlane.f32.xlu0 %v1923
        %v1925 = vpop.xlane.xlu0 %1924
        %v1926 = vrcp.pop 32.0
        %v1927 = vmul.f32 %v1925, %v1926
        %v1928 = vsub.f32 %v1922, %v1927
        %v1929 = vmul.f32 %v1928, %v1928
        %v1930 = vsel %vm1254, %v1929, 0.0
        %1931 = vadd.xlane.f32.xlu0 %v1930
        %v1932 = vpop.xlane.xlu0 %1931
        %v1933 = vmul.f32 %v1932, %v1926
        %v1934 = vadd.f32 %v1933, 1e-05
        %v1935 = vrsqrt.pop %v1934
        %v1936 = vmul.f32 %v1928, %v1935
        %v1937 = vld [vmem:[%s29] sm:$0x1]
        %v1939 = vlaneseq
        %v1940 = vshrl.u32 %v1939, 7
        %v1941 = vsub.s32 0, %v1940
        %v1942 = vrot.slane %v1937, %v1941
        %v1944 = vmul.f32 %v1936, %v1942
        %v1945 = vld [vmem:[%s31] sm:$0x1]
        %v1947 = vlaneseq
        %v1948 = vshrl.u32 %v1947, 7
        %v1949 = vsub.s32 0, %v1948
        %v1950 = vrot.slane %v1945, %v1949
        %v1952 = vadd.f32 %v1944, %v1950
        %v1953 = vmul.f32 %v1952, %v1204
        %v1954 = vpack.c.bf16 %v1953, %v1953
        %v1955 = vld [vmem:[%s33] sm:$0xf]
        %v1956 = vld [vmem:[%s33 + $0x4] sm:$0xf]
        %v1957 = vld [vmem:[%s33 + $0x8] sm:$0xf]
        %v1958 = vld [vmem:[%s33 + $0xc] sm:$0xf]
        %v1959 = vld [vmem:[%s35] sm:$0x1]
        %v1961 = vlaneseq
        %v1962 = vshrl.u32 %v1961, 7
        %v1963 = vsub.s32 0, %v1962
        %v1964 = vrot.slane %v1959, %v1963
        %v1970 = vunpack.c.l.b16 %v1955
        %v1971 = vunpack.c.l.b16 %v1956
        %v1972 = vunpack.c.l.b16 %v1957
        %v1973 = vunpack.c.l.b16 %v1958
        %v1974 = vpack.c.b16 %v1971, %v1970
        %v1975 = vpack.c.b16 %v1973, %v1972
        %v1979 = vsel %vm1254, %v1954, 0
        %1981 = vmatprep.subr.bf16.mxu0 0
        %1982 = vmatpush1.bf16.msra.mxu0 %v1974
        %1983 = vmatprep.subr.bf16.mxu0 0
        %1984 = vmatpush1.bf16.msra.mxu0 %v1975
        %1985 = vmatprep.subr.bf16.mxu0 0
        %1986 = vmatpush1.bf16.msra.mxu0 0
        %1987 = vmatprep.subr.bf16.mxu0 0
        %1988 = vmatpush1.bf16.msra.mxu0 0
        %1989 = vmatprep.subr.bf16.mxu0 0
        %1990 = vmatpush1.bf16.msra.mxu0 0
        %1991 = vmatprep.subr.bf16.mxu0 0
        %1992 = vmatpush1.bf16.msra.mxu0 0
        %1993 = vmatprep.subr.bf16.mxu0 0
        %1994 = vmatpush1.bf16.msra.mxu0 0
        %1995 = vmatprep.subr.bf16.mxu0 0
        %1996 = vmatpush1.bf16.msra.mxu0 0
        %1997 = vmatprep.subr.bf16.mxu0 0
        %1998 = vmatpush1.bf16.msra.mxu0 0
        %1999 = vmatprep.subr.bf16.mxu0 0
        %2000 = vmatpush1.bf16.msra.mxu0 0
        %2001 = vmatprep.subr.bf16.mxu0 0
        %2002 = vmatpush1.bf16.msra.mxu0 0
        %2003 = vmatprep.subr.bf16.mxu0 0
        %2004 = vmatpush1.bf16.msra.mxu0 0
        %2005 = vmatprep.subr.bf16.mxu0 0
        %2006 = vmatpush1.bf16.msra.mxu0 0
        %2007 = vmatprep.subr.bf16.mxu0 0
        %2008 = vmatpush1.bf16.msra.mxu0 0
        %2009 = vmatprep.subr.bf16.mxu0 0
        %2010 = vmatpush1.bf16.msra.mxu0 0
        %2011 = vmatprep.subr.bf16.mxu0 0
        %2012 = vmatpush1.bf16.msra.mxu0 0
        %2013 = vmatprep.mubr.bf16.mxu0 0
        %2014 = vmatmul.mubr.bf16.gmra.mrb[0].mxu0 %v1979
        %v2015 = vpop.f32.mrb[0].mxu0
        %v2016 = vadd.f32 %v1964, %v2015
        %v2017 = vpop.f32.mrb[0].mxu0
        %v2018 = vpop.f32.mrb[0].mxu0
        %v2019 = vpop.f32.mrb[0].mxu0
        %2020 = vdwg.mxu0
        %v2021 = vld [vmem:[%s37] sm:$0xf]
        %v2022 = vld [vmem:[%s37 + $0x4] sm:$0xf]
        %v2023 = vld [vmem:[%s37 + $0x8] sm:$0xf]
        %v2024 = vld [vmem:[%s37 + $0xc] sm:$0xf]
        %v2025 = vld [vmem:[%s39] sm:$0xff]
        %v2026 = vld [vmem:[%s39 + $0x8] sm:$0xff]
        %v2027 = vld [vmem:[%s39 + $0x10] sm:$0xff]
        %v2028 = vld [vmem:[%s39 + $0x18] sm:$0xff]
        %2030 = vset.pattern.permute.xlu0 0
        %2031 = vperm.xlu0 %2030, %v2025
        %v2032 = vpop.permute.xlu0 %2031
        %2035 = vset.pattern.permute.xlu0 0
        %2036 = vperm.xlu0 %2035, %v2026
        %v2037 = vpop.permute.xlu0 %2036
        %2040 = vset.pattern.permute.xlu0 0
        %2041 = vperm.xlu0 %2040, %v2027
        %v2042 = vpop.permute.xlu0 %2041
        %2045 = vset.pattern.permute.xlu0 0
        %2046 = vperm.xlu0 %2045, %v2028
        %v2047 = vpop.permute.xlu0 %2046
        %v2053 = vunpack.c.l.b16 %v2021
        %v2054 = vunpack.c.l.b16 %v2022
        %v2055 = vunpack.c.l.b16 %v2023
        %v2056 = vunpack.c.l.b16 %v2024
        %v2057 = vpack.c.b16 %v2054, %v2053
        %v2058 = vpack.c.b16 %v2056, %v2055
        %v2061 = vunpack.c.l.b16 %v1198
        %v2062 = vunpack.c.l.b16 %v1199
        %v2063 = vpack.c.b16 %v2062, %v2061
        %v2065 = vsel %vm1254, %v2057, 0
        %v2068 = vsel %vm1254, %v2058, 0
        %v2071 = vsel %vm1254, %v2063, 0
        %2073 = vmatprep.subr.bf16.mxu0 0
        %2074 = vmatpush1.bf16.xpose.msra.mxu0 %v2071
        %2075 = vmatprep.subr.bf16.mxu0 0
        %2076 = vmatpush1.bf16.xpose.msra.mxu0 0
        %2077 = vmatprep.subr.bf16.mxu0 0
        %2078 = vmatpush1.bf16.xpose.msra.mxu0 0
        %2079 = vmatprep.subr.bf16.mxu0 0
        %2080 = vmatpush1.bf16.xpose.msra.mxu0 0
        %2081 = vmatprep.subr.bf16.mxu0 0
        %2082 = vmatpush1.bf16.xpose.msra.mxu0 0
        %2083 = vmatprep.subr.bf16.mxu0 0
        %2084 = vmatpush1.bf16.xpose.msra.mxu0 0
        %2085 = vmatprep.subr.bf16.mxu0 0
        %2086 = vmatpush1.bf16.xpose.msra.mxu0 0
        %2087 = vmatprep.subr.bf16.mxu0 0
        %2088 = vmatpush1.bf16.xpose.msra.mxu0 0
        %2089 = vmatprep.subr.bf16.mxu0 0
        %2090 = vmatpush1.bf16.xpose.msra.mxu0 0
        %2091 = vmatprep.subr.bf16.mxu0 0
        %2092 = vmatpush1.bf16.xpose.msra.mxu0 0
        %2093 = vmatprep.subr.bf16.mxu0 0
        %2094 = vmatpush1.bf16.xpose.msra.mxu0 0
        %2095 = vmatprep.subr.bf16.mxu0 0
        %2096 = vmatpush1.bf16.xpose.msra.mxu0 0
        %2097 = vmatprep.subr.bf16.mxu0 0
        %2098 = vmatpush1.bf16.xpose.msra.mxu0 0
        %2099 = vmatprep.subr.bf16.mxu0 0
        %2100 = vmatpush1.bf16.xpose.msra.mxu0 0
        %2101 = vmatprep.subr.bf16.mxu0 0
        %2102 = vmatpush1.bf16.xpose.msra.mxu0 0
        %2103 = vmatprep.subr.bf16.mxu0 0
        %2104 = vmatpush1.bf16.xpose.msra.mxu0 0
        %2105 = vmatprep.mubr.bf16.mxu0 0
        %2106 = vmatmul.mubr.bf16.gmra.mrb[0].mxu0 %v2065
        %v2107 = vpop.f32.mrb[0].mxu0
        %v2108 = vadd.f32 %v2032, %v2107
        %v2109 = vpop.f32.mrb[0].mxu0
        %v2110 = vpop.f32.mrb[0].mxu0
        %v2111 = vadd.f32 %v2037, %v2110
        %v2112 = vpop.f32.mrb[0].mxu0
        %2113 = vmatprep.mubr.bf16.mxu0 0
        %2114 = vmatmul.mubr.bf16.gmra.mrb[0].mxu0 %v2068
        %v2115 = vpop.f32.mrb[0].mxu0
        %v2116 = vadd.f32 %v2042, %v2115
        %v2117 = vpop.f32.mrb[0].mxu0
        %v2118 = vpop.f32.mrb[0].mxu0
        %v2119 = vadd.f32 %v2047, %v2118
        %v2120 = vpop.f32.mrb[0].mxu0
        %2121 = vdwg.mxu0
        %v2122 = vld [vmem:[%s41] sm:$0xf]
        %v2123 = vld [vmem:[%s41 + $0x4] sm:$0xf]
        %v2124 = vld [vmem:[%s41 + $0x8] sm:$0xf]
        %v2125 = vld [vmem:[%s41 + $0xc] sm:$0xf]
        %v2126 = vld [vmem:[%s43] sm:$0x1]
        %v2128 = vlaneseq
        %v2129 = vshrl.u32 %v2128, 7
        %v2130 = vsub.s32 0, %v2129
        %v2131 = vrot.slane %v2126, %v2130
        %v2137 = vunpack.c.l.b16 %v2122
        %v2138 = vunpack.c.l.b16 %v2123
        %v2139 = vunpack.c.l.b16 %v2124
        %v2140 = vunpack.c.l.b16 %v2125
        %v2141 = vpack.c.b16 %v2138, %v2137
        %v2142 = vpack.c.b16 %v2140, %v2139
        %2145 = vmatprep.subr.bf16.mxu0 0
        %2146 = vmatpush1.bf16.msra.mxu0 %v2141
        %2147 = vmatprep.subr.bf16.mxu0 0
        %2148 = vmatpush1.bf16.msra.mxu0 %v2142
        %2149 = vmatprep.subr.bf16.mxu0 0
        %2150 = vmatpush1.bf16.msra.mxu0 0
        %2151 = vmatprep.subr.bf16.mxu0 0
        %2152 = vmatpush1.bf16.msra.mxu0 0
        %2153 = vmatprep.subr.bf16.mxu0 0
        %2154 = vmatpush1.bf16.msra.mxu0 0
        %2155 = vmatprep.subr.bf16.mxu0 0
        %2156 = vmatpush1.bf16.msra.mxu0 0
        %2157 = vmatprep.subr.bf16.mxu0 0
        %2158 = vmatpush1.bf16.msra.mxu0 0
        %2159 = vmatprep.subr.bf16.mxu0 0
        %2160 = vmatpush1.bf16.msra.mxu0 0
        %2161 = vmatprep.subr.bf16.mxu0 0
        %2162 = vmatpush1.bf16.msra.mxu0 0
        %2163 = vmatprep.subr.bf16.mxu0 0
        %2164 = vmatpush1.bf16.msra.mxu0 0
        %2165 = vmatprep.subr.bf16.mxu0 0
        %2166 = vmatpush1.bf16.msra.mxu0 0
        %2167 = vmatprep.subr.bf16.mxu0 0
        %2168 = vmatpush1.bf16.msra.mxu0 0
        %2169 = vmatprep.subr.bf16.mxu0 0
        %2170 = vmatpush1.bf16.msra.mxu0 0
        %2171 = vmatprep.subr.bf16.mxu0 0
        %2172 = vmatpush1.bf16.msra.mxu0 0
        %2173 = vmatprep.subr.bf16.mxu0 0
        %2174 = vmatpush1.bf16.msra.mxu0 0
        %2175 = vmatprep.subr.bf16.mxu0 0
        %2176 = vmatpush1.bf16.msra.mxu0 0
        %2177 = vmatprep.mubr.bf16.mxu0 0
        %2178 = vmatmul.mubr.bf16.gmra.mrb[0].mxu0 %v2071
        %v2179 = vpop.f32.mrb[0].mxu0
        %v2180 = vadd.f32 %v2131, %v2179
        %v2181 = vpop.f32.mrb[0].mxu0
        %v2182 = vpop.f32.mrb[0].mxu0
        %v2183 = vadd.f32 %v2131, %v2182
        %v2184 = vpop.f32.mrb[0].mxu0
        %2185 = vdwg.mxu0
        %v2186 = vadd.f32 %v2016, %v1459
        %v2187 = vpack.c.bf16 %v2186, %v2186
        %v2188 = vadd.f32 %v2016, %v1468
        %v2189 = vpack.c.bf16 %v2188, %v2188
        %v2190 = vpack.c.bf16 %v2111, %v2108
        %v2191 = vpack.c.bf16 %v2119, %v2116
        %v2192 = vpack.c.bf16 %v2183, %v2180
        %v2193 = vld [vmem:[%s45] sm:$0xf]
        %v2194 = vld [vmem:[%s45 + $0x4] sm:$0xf]
        %v2197 = vunpack.c.l.b16 %v2193
        %v2198 = vunpack.c.l.b16 %v2194
        %v2199 = vpack.c.b16 %v2198, %v2197
        %v2202 = vsel %vm1483, %v2189, 0
        %2204 = vmatprep.subr.bf16.mxu0 0
        %2205 = vmatpush1.bf16.msra.mxu0 %v2199
        %2206 = vmatprep.subr.bf16.mxu0 0
        %2207 = vmatpush1.bf16.msra.mxu0 0
        %2208 = vmatprep.subr.bf16.mxu0 0
        %2209 = vmatpush1.bf16.msra.mxu0 0
        %2210 = vmatprep.subr.bf16.mxu0 0
        %2211 = vmatpush1.bf16.msra.mxu0 0
        %2212 = vmatprep.subr.bf16.mxu0 0
        %2213 = vmatpush1.bf16.msra.mxu0 0
        %2214 = vmatprep.subr.bf16.mxu0 0
        %2215 = vmatpush1.bf16.msra.mxu0 0
        %2216 = vmatprep.subr.bf16.mxu0 0
        %2217 = vmatpush1.bf16.msra.mxu0 0
        %2218 = vmatprep.subr.bf16.mxu0 0
        %2219 = vmatpush1.bf16.msra.mxu0 0
        %2220 = vmatprep.subr.bf16.mxu0 0
        %2221 = vmatpush1.bf16.msra.mxu0 0
        %2222 = vmatprep.subr.bf16.mxu0 0
        %2223 = vmatpush1.bf16.msra.mxu0 0
        %2224 = vmatprep.subr.bf16.mxu0 0
        %2225 = vmatpush1.bf16.msra.mxu0 0
        %2226 = vmatprep.subr.bf16.mxu0 0
        %2227 = vmatpush1.bf16.msra.mxu0 0
        %2228 = vmatprep.subr.bf16.mxu0 0
        %2229 = vmatpush1.bf16.msra.mxu0 0
        %2230 = vmatprep.subr.bf16.mxu0 0
        %2231 = vmatpush1.bf16.msra.mxu0 0
        %2232 = vmatprep.subr.bf16.mxu0 0
        %2233 = vmatpush1.bf16.msra.mxu0 0
        %2234 = vmatprep.subr.bf16.mxu0 0
        %2235 = vmatpush1.bf16.msra.mxu0 0
        %2236 = vmatprep.mubr.bf16.mxu0 0
        %2237 = vmatmul.mubr.bf16.gmra.mrb[0].mxu0 %v2202
        %v2238 = vpop.f32.mrb[0].mxu0
        %v2239 = vadd.f32 0.0, %v2238
        %v2240 = vpop.f32.mrb[0].mxu0
        %v2241 = vpop.f32.mrb[0].mxu0
        %v2242 = vpop.f32.mrb[0].mxu0
        %2243 = vdwg.mxu0
        %2245 = vrot.lane.b32.xlu0 %v2239, 256
        %v2246 = vpop.permute.xlu0 %2245
        %2248 = vrot.lane.b32.xlu0 %v2246, 121
        %v2249 = vpop.permute.xlu0 %2248
        %v2252 = vsel %vm1483, %v2187, 0
        %2254 = vmatprep.subr.bf16.mxu0 0
        %2255 = vmatpush1.bf16.msra.mxu0 %v2190
        %2256 = vmatprep.subr.bf16.mxu0 0
        %2257 = vmatpush1.bf16.msra.mxu0 0
        %2258 = vmatprep.subr.bf16.mxu0 0
        %2259 = vmatpush1.bf16.msra.mxu0 0
        %2260 = vmatprep.subr.bf16.mxu0 0
        %2261 = vmatpush1.bf16.msra.mxu0 0
        %2262 = vmatprep.subr.bf16.mxu0 0
        %2263 = vmatpush1.bf16.msra.mxu0 0
        %2264 = vmatprep.subr.bf16.mxu0 0
        %2265 = vmatpush1.bf16.msra.mxu0 0
        %2266 = vmatprep.subr.bf16.mxu0 0
        %2267 = vmatpush1.bf16.msra.mxu0 0
        %2268 = vmatprep.subr.bf16.mxu0 0
        %2269 = vmatpush1.bf16.msra.mxu0 0
        %2270 = vmatprep.subr.bf16.mxu0 0
        %2271 = vmatpush1.bf16.msra.mxu0 0
        %2272 = vmatprep.subr.bf16.mxu0 0
        %2273 = vmatpush1.bf16.msra.mxu0 0
        %2274 = vmatprep.subr.bf16.mxu0 0
        %2275 = vmatpush1.bf16.msra.mxu0 0
        %2276 = vmatprep.subr.bf16.mxu0 0
        %2277 = vmatpush1.bf16.msra.mxu0 0
        %2278 = vmatprep.subr.bf16.mxu0 0
        %2279 = vmatpush1.bf16.msra.mxu0 0
        %2280 = vmatprep.subr.bf16.mxu0 0
        %2281 = vmatpush1.bf16.msra.mxu0 0
        %2282 = vmatprep.subr.bf16.mxu0 0
        %2283 = vmatpush1.bf16.msra.mxu0 0
        %2284 = vmatprep.subr.bf16.mxu0 0
        %2285 = vmatpush1.bf16.msra.mxu0 0
        %2286 = vmatprep.mubr.bf16.mxu0 0
        %2287 = vmatmul.mubr.bf16.gmra.mrb[0].mxu0 %v2252
        %v2288 = vpop.f32.mrb[0].mxu0
        %v2289 = vadd.f32 %v2249, %v2288
        %v2290 = vpop.f32.mrb[0].mxu0
        %v2291 = vpop.f32.mrb[0].mxu0
        %v2292 = vpop.f32.mrb[0].mxu0
        %2293 = vdwg.mxu0
        %v2294 = vmul.f32 %v2289, 0.25
        %v2295 = vadd.f32 %v2294, %v1229
        %vm2296 = vcmask 97280
        %v2297 = vsel %vm2296, %v2295, -inf
        %2298 = vmax.xlane.f32.xlu0 %v2297
        %v2299 = vpop.xlane.xlu0 %2298
        %v2300 = vsub.f32 %v2295, %v2299
        %v2301 = vmul.f32 %v2300, 1.442695
        %v2302 = vpow.pop %v2301
        %v2303 = vsel %vm2296, %v2302, 0.0
        %2304 = vadd.xlane.f32.xlu0 %v2303
        %v2305 = vpop.xlane.xlu0 %2304
        %v2306 = vrcp.pop %v2305
        %v2307 = vmul.f32 %v2302, %v2306
        %v2308 = vpack.c.bf16 %v2307, %v2307
        %v2310 = vsel %vm2296, %v2308, 0
        %vm2312 = vcmask 1045504
        %v2314 = vsel %vm2312, %v2192, 0
        %2316 = vmatprep.subr.bf16.mxu0 0
        %2317 = vmatpush1.bf16.msra.mxu0 %v2314
        %2318 = vmatprep.subr.bf16.mxu0 0
        %2319 = vmatpush1.bf16.msra.mxu0 0
        %2320 = vmatprep.subr.bf16.mxu0 0
        %2321 = vmatpush1.bf16.msra.mxu0 0
        %2322 = vmatprep.subr.bf16.mxu0 0
        %2323 = vmatpush1.bf16.msra.mxu0 0
        %2324 = vmatprep.subr.bf16.mxu0 0
        %2325 = vmatpush1.bf16.msra.mxu0 0
        %2326 = vmatprep.subr.bf16.mxu0 0
        %2327 = vmatpush1.bf16.msra.mxu0 0
        %2328 = vmatprep.subr.bf16.mxu0 0
        %2329 = vmatpush1.bf16.msra.mxu0 0
        %2330 = vmatprep.subr.bf16.mxu0 0
        %2331 = vmatpush1.bf16.msra.mxu0 0
        %2332 = vmatprep.subr.bf16.mxu0 0
        %2333 = vmatpush1.bf16.msra.mxu0 0
        %2334 = vmatprep.subr.bf16.mxu0 0
        %2335 = vmatpush1.bf16.msra.mxu0 0
        %2336 = vmatprep.subr.bf16.mxu0 0
        %2337 = vmatpush1.bf16.msra.mxu0 0
        %2338 = vmatprep.subr.bf16.mxu0 0
        %2339 = vmatpush1.bf16.msra.mxu0 0
        %2340 = vmatprep.subr.bf16.mxu0 0
        %2341 = vmatpush1.bf16.msra.mxu0 0
        %2342 = vmatprep.subr.bf16.mxu0 0
        %2343 = vmatpush1.bf16.msra.mxu0 0
        %2344 = vmatprep.subr.bf16.mxu0 0
        %2345 = vmatpush1.bf16.msra.mxu0 0
        %2346 = vmatprep.subr.bf16.mxu0 0
        %2347 = vmatpush1.bf16.msra.mxu0 0
        %2348 = vmatprep.mubr.bf16.mxu0 0
        %2349 = vmatmul.mubr.bf16.gmra.mrb[0].mxu0 %v2310
        %v2350 = vpop.f32.mrb[0].mxu0
        %v2351 = vadd.f32 0.0, %v2350
        %v2352 = vpop.f32.mrb[0].mxu0
        %v2353 = vpop.f32.mrb[0].mxu0
        %v2354 = vpop.f32.mrb[0].mxu0
        %2355 = vdwg.mxu0
        %v2356 = vpack.c.bf16 %v2351, %v2351
        %v2357 = vld [vmem:[%s47] sm:$0xf]
        %v2358 = vld [vmem:[%s47 + $0x4] sm:$0xf]
        %s2359 = scalar_lea.vmem %s45, 8
        %v2360 = vld [vmem:[%s2359] sm:$0xf]
        %v2361 = vld [vmem:[%s2359 + $0x4] sm:$0xf]
        %2363 = vrot.lane.b32.xlu0 %v2189, 112
        %v2364 = vpop.permute.xlu0 %2363
        %v2367 = vunpack.c.l.b16 %v2360
        %v2368 = vunpack.c.l.b16 %v2361
        %v2369 = vpack.c.b16 %v2368, %v2367
        %v2372 = vsel %vm1483, %v2364, 0
        %2374 = vmatprep.subr.bf16.mxu0 0
        %2375 = vmatpush1.bf16.msra.mxu0 %v2369
        %2376 = vmatprep.subr.bf16.mxu0 0
        %2377 = vmatpush1.bf16.msra.mxu0 0
        %2378 = vmatprep.subr.bf16.mxu0 0
        %2379 = vmatpush1.bf16.msra.mxu0 0
        %2380 = vmatprep.subr.bf16.mxu0 0
        %2381 = vmatpush1.bf16.msra.mxu0 0
        %2382 = vmatprep.subr.bf16.mxu0 0
        %2383 = vmatpush1.bf16.msra.mxu0 0
        %2384 = vmatprep.subr.bf16.mxu0 0
        %2385 = vmatpush1.bf16.msra.mxu0 0
        %2386 = vmatprep.subr.bf16.mxu0 0
        %2387 = vmatpush1.bf16.msra.mxu0 0
        %2388 = vmatprep.subr.bf16.mxu0 0
        %2389 = vmatpush1.bf16.msra.mxu0 0
        %2390 = vmatprep.subr.bf16.mxu0 0
        %2391 = vmatpush1.bf16.msra.mxu0 0
        %2392 = vmatprep.subr.bf16.mxu0 0
        %2393 = vmatpush1.bf16.msra.mxu0 0
        %2394 = vmatprep.subr.bf16.mxu0 0
        %2395 = vmatpush1.bf16.msra.mxu0 0
        %2396 = vmatprep.subr.bf16.mxu0 0
        %2397 = vmatpush1.bf16.msra.mxu0 0
        %2398 = vmatprep.subr.bf16.mxu0 0
        %2399 = vmatpush1.bf16.msra.mxu0 0
        %2400 = vmatprep.subr.bf16.mxu0 0
        %2401 = vmatpush1.bf16.msra.mxu0 0
        %2402 = vmatprep.subr.bf16.mxu0 0
        %2403 = vmatpush1.bf16.msra.mxu0 0
        %2404 = vmatprep.subr.bf16.mxu0 0
        %2405 = vmatpush1.bf16.msra.mxu0 0
        %2406 = vmatprep.mubr.bf16.mxu0 0
        %2407 = vmatmul.mubr.bf16.gmra.mrb[0].mxu0 %v2372
        %v2408 = vpop.f32.mrb[0].mxu0
        %v2409 = vadd.f32 0.0, %v2408
        %v2410 = vpop.f32.mrb[0].mxu0
        %v2411 = vpop.f32.mrb[0].mxu0
        %v2412 = vpop.f32.mrb[0].mxu0
        %2413 = vdwg.mxu0
        %2415 = vrot.lane.b32.xlu0 %v2409, 256
        %v2416 = vpop.permute.xlu0 %2415
        %2418 = vrot.lane.b32.xlu0 %v2187, 112
        %v2419 = vpop.permute.xlu0 %2418
        %2421 = vrot.lane.b32.xlu0 %v2416, 121
        %v2422 = vpop.permute.xlu0 %2421
        %v2425 = vsel %vm1483, %v2419, 0
        %2427 = vmatprep.subr.bf16.mxu0 0
        %2428 = vmatpush1.bf16.msra.mxu0 %v2191
        %2429 = vmatprep.subr.bf16.mxu0 0
        %2430 = vmatpush1.bf16.msra.mxu0 0
        %2431 = vmatprep.subr.bf16.mxu0 0
        %2432 = vmatpush1.bf16.msra.mxu0 0
        %2433 = vmatprep.subr.bf16.mxu0 0
        %2434 = vmatpush1.bf16.msra.mxu0 0
        %2435 = vmatprep.subr.bf16.mxu0 0
        %2436 = vmatpush1.bf16.msra.mxu0 0
        %2437 = vmatprep.subr.bf16.mxu0 0
        %2438 = vmatpush1.bf16.msra.mxu0 0
        %2439 = vmatprep.subr.bf16.mxu0 0
        %2440 = vmatpush1.bf16.msra.mxu0 0
        %2441 = vmatprep.subr.bf16.mxu0 0
        %2442 = vmatpush1.bf16.msra.mxu0 0
        %2443 = vmatprep.subr.bf16.mxu0 0
        %2444 = vmatpush1.bf16.msra.mxu0 0
        %2445 = vmatprep.subr.bf16.mxu0 0
        %2446 = vmatpush1.bf16.msra.mxu0 0
        %2447 = vmatprep.subr.bf16.mxu0 0
        %2448 = vmatpush1.bf16.msra.mxu0 0
        %2449 = vmatprep.subr.bf16.mxu0 0
        %2450 = vmatpush1.bf16.msra.mxu0 0
        %2451 = vmatprep.subr.bf16.mxu0 0
        %2452 = vmatpush1.bf16.msra.mxu0 0
        %2453 = vmatprep.subr.bf16.mxu0 0
        %2454 = vmatpush1.bf16.msra.mxu0 0
        %2455 = vmatprep.subr.bf16.mxu0 0
        %2456 = vmatpush1.bf16.msra.mxu0 0
        %2457 = vmatprep.subr.bf16.mxu0 0
        %2458 = vmatpush1.bf16.msra.mxu0 0
        %2459 = vmatprep.mubr.bf16.mxu0 0
        %2460 = vmatmul.mubr.bf16.gmra.mrb[0].mxu0 %v2425
        %v2461 = vpop.f32.mrb[0].mxu0
        %v2462 = vadd.f32 %v2422, %v2461
        %v2463 = vpop.f32.mrb[0].mxu0
        %v2464 = vpop.f32.mrb[0].mxu0
        %v2465 = vpop.f32.mrb[0].mxu0
        %2466 = vdwg.mxu0
        %v2467 = vmul.f32 %v2462, 0.25
        %v2468 = vadd.f32 %v2467, %v1229
        %v2469 = vsel %vm2296, %v2468, -inf
        %2470 = vmax.xlane.f32.xlu0 %v2469
        %v2471 = vpop.xlane.xlu0 %2470
        %v2472 = vsub.f32 %v2468, %v2471
        %v2473 = vmul.f32 %v2472, 1.442695
        %v2474 = vpow.pop %v2473
        %v2475 = vsel %vm2296, %v2474, 0.0
        %2476 = vadd.xlane.f32.xlu0 %v2475
        %v2477 = vpop.xlane.xlu0 %2476
        %v2478 = vrcp.pop %v2477
        %v2479 = vmul.f32 %v2474, %v2478
        %v2480 = vpack.c.bf16 %v2479, %v2479
        %2482 = vrot.lane.b32.xlu0 %v2192, 112
        %v2483 = vpop.permute.xlu0 %2482
        %v2485 = vsel %vm2296, %v2480, 0
        %v2488 = vsel %vm2312, %v2483, 0
        %2490 = vmatprep.subr.bf16.mxu0 0
        %2491 = vmatpush1.bf16.msra.mxu0 %v2488
        %2492 = vmatprep.subr.bf16.mxu0 0
        %2493 = vmatpush1.bf16.msra.mxu0 0
        %2494 = vmatprep.subr.bf16.mxu0 0
        %2495 = vmatpush1.bf16.msra.mxu0 0
        %2496 = vmatprep.subr.bf16.mxu0 0
        %2497 = vmatpush1.bf16.msra.mxu0 0
        %2498 = vmatprep.subr.bf16.mxu0 0
        %2499 = vmatpush1.bf16.msra.mxu0 0
        %2500 = vmatprep.subr.bf16.mxu0 0
        %2501 = vmatpush1.bf16.msra.mxu0 0
        %2502 = vmatprep.subr.bf16.mxu0 0
        %2503 = vmatpush1.bf16.msra.mxu0 0
        %2504 = vmatprep.subr.bf16.mxu0 0
        %2505 = vmatpush1.bf16.msra.mxu0 0
        %2506 = vmatprep.subr.bf16.mxu0 0
        %2507 = vmatpush1.bf16.msra.mxu0 0
        %2508 = vmatprep.subr.bf16.mxu0 0
        %2509 = vmatpush1.bf16.msra.mxu0 0
        %2510 = vmatprep.subr.bf16.mxu0 0
        %2511 = vmatpush1.bf16.msra.mxu0 0
        %2512 = vmatprep.subr.bf16.mxu0 0
        %2513 = vmatpush1.bf16.msra.mxu0 0
        %2514 = vmatprep.subr.bf16.mxu0 0
        %2515 = vmatpush1.bf16.msra.mxu0 0
        %2516 = vmatprep.subr.bf16.mxu0 0
        %2517 = vmatpush1.bf16.msra.mxu0 0
        %2518 = vmatprep.subr.bf16.mxu0 0
        %2519 = vmatpush1.bf16.msra.mxu0 0
        %2520 = vmatprep.subr.bf16.mxu0 0
        %2521 = vmatpush1.bf16.msra.mxu0 0
        %2522 = vmatprep.mubr.bf16.mxu0 0
        %2523 = vmatmul.mubr.bf16.gmra.mrb[0].mxu0 %v2485
        %v2524 = vpop.f32.mrb[0].mxu0
        %v2525 = vadd.f32 0.0, %v2524
        %v2526 = vpop.f32.mrb[0].mxu0
        %v2527 = vpop.f32.mrb[0].mxu0
        %v2528 = vpop.f32.mrb[0].mxu0
        %2529 = vdwg.mxu0
        %v2530 = vpack.c.bf16 %v2525, %v2525
        %v2531 = vld [vmem:[%s47 + $0x8] sm:$0xf]
        %v2532 = vld [vmem:[%s47 + $0xc] sm:$0xf]
        %v2535 = vunpack.c.l.b16 %v2531
        %v2536 = vunpack.c.l.b16 %v2532
        %v2537 = vpack.c.b16 %v2536, %v2535
        %v2540 = vsel %vm1483, %v2530, 0
        %2542 = vmatprep.subr.bf16.mxu0 0
        %2543 = vmatpush1.bf16.msra.mxu0 %v2537
        %2544 = vmatprep.subr.bf16.mxu0 0
        %2545 = vmatpush1.bf16.msra.mxu0 0
        %2546 = vmatprep.subr.bf16.mxu0 0
        %2547 = vmatpush1.bf16.msra.mxu0 0
        %2548 = vmatprep.subr.bf16.mxu0 0
        %2549 = vmatpush1.bf16.msra.mxu0 0
        %2550 = vmatprep.subr.bf16.mxu0 0
        %2551 = vmatpush1.bf16.msra.mxu0 0
        %2552 = vmatprep.subr.bf16.mxu0 0
        %2553 = vmatpush1.bf16.msra.mxu0 0
        %2554 = vmatprep.subr.bf16.mxu0 0
        %2555 = vmatpush1.bf16.msra.mxu0 0
        %2556 = vmatprep.subr.bf16.mxu0 0
        %2557 = vmatpush1.bf16.msra.mxu0 0
        %2558 = vmatprep.subr.bf16.mxu0 0
        %2559 = vmatpush1.bf16.msra.mxu0 0
        %2560 = vmatprep.subr.bf16.mxu0 0
        %2561 = vmatpush1.bf16.msra.mxu0 0
        %2562 = vmatprep.subr.bf16.mxu0 0
        %2563 = vmatpush1.bf16.msra.mxu0 0
        %2564 = vmatprep.subr.bf16.mxu0 0
        %2565 = vmatpush1.bf16.msra.mxu0 0
        %2566 = vmatprep.subr.bf16.mxu0 0
        %2567 = vmatpush1.bf16.msra.mxu0 0
        %2568 = vmatprep.subr.bf16.mxu0 0
        %2569 = vmatpush1.bf16.msra.mxu0 0
        %2570 = vmatprep.subr.bf16.mxu0 0
        %2571 = vmatpush1.bf16.msra.mxu0 0
        %2572 = vmatprep.subr.bf16.mxu0 0
        %2573 = vmatpush1.bf16.msra.mxu0 0
        %2574 = vmatprep.mubr.bf16.mxu0 0
        %2575 = vmatmul.mubr.bf16.gmra.mrb[0].mxu0 %v2540
        %v2576 = vpop.f32.mrb[0].mxu0
        %v2577 = vadd.f32 0.0, %v2576
        %v2578 = vpop.f32.mrb[0].mxu0
        %v2579 = vpop.f32.mrb[0].mxu0
        %v2580 = vpop.f32.mrb[0].mxu0
        %2581 = vdwg.mxu0
        %v2584 = vunpack.c.l.b16 %v2357
        %v2585 = vunpack.c.l.b16 %v2358
        %v2586 = vpack.c.b16 %v2585, %v2584
        %v2589 = vsel %vm1483, %v2356, 0
        %2591 = vmatprep.subr.bf16.mxu0 0
        %2592 = vmatpush1.bf16.msra.mxu0 %v2586
        %2593 = vmatprep.subr.bf16.mxu0 0
        %2594 = vmatpush1.bf16.msra.mxu0 0
        %2595 = vmatprep.subr.bf16.mxu0 0
        %2596 = vmatpush1.bf16.msra.mxu0 0
        %2597 = vmatprep.subr.bf16.mxu0 0
        %2598 = vmatpush1.bf16.msra.mxu0 0
        %2599 = vmatprep.subr.bf16.mxu0 0
        %2600 = vmatpush1.bf16.msra.mxu0 0
        %2601 = vmatprep.subr.bf16.mxu0 0
        %2602 = vmatpush1.bf16.msra.mxu0 0
        %2603 = vmatprep.subr.bf16.mxu0 0
        %2604 = vmatpush1.bf16.msra.mxu0 0
        %2605 = vmatprep.subr.bf16.mxu0 0
        %2606 = vmatpush1.bf16.msra.mxu0 0
        %2607 = vmatprep.subr.bf16.mxu0 0
        %2608 = vmatpush1.bf16.msra.mxu0 0
        %2609 = vmatprep.subr.bf16.mxu0 0
        %2610 = vmatpush1.bf16.msra.mxu0 0
        %2611 = vmatprep.subr.bf16.mxu0 0
        %2612 = vmatpush1.bf16.msra.mxu0 0
        %2613 = vmatprep.subr.bf16.mxu0 0
        %2614 = vmatpush1.bf16.msra.mxu0 0
        %2615 = vmatprep.subr.bf16.mxu0 0
        %2616 = vmatpush1.bf16.msra.mxu0 0
        %2617 = vmatprep.subr.bf16.mxu0 0
        %2618 = vmatpush1.bf16.msra.mxu0 0
        %2619 = vmatprep.subr.bf16.mxu0 0
        %2620 = vmatpush1.bf16.msra.mxu0 0
        %2621 = vmatprep.subr.bf16.mxu0 0
        %2622 = vmatpush1.bf16.msra.mxu0 0
        %2623 = vmatprep.mubr.bf16.mxu0 0
        %2624 = vmatmul.mubr.bf16.gmra.mrb[0].mxu0 %v2589
        %v2625 = vpop.f32.mrb[0].mxu0
        %v2626 = vadd.f32 %v2577, %v2625
        %v2627 = vpop.f32.mrb[0].mxu0
        %v2628 = vpop.f32.mrb[0].mxu0
        %v2629 = vpop.f32.mrb[0].mxu0
        %2630 = vdwg.mxu0
        %v2631 = vld [vmem:[%s49] sm:$0x1]
        %v2633 = vlaneseq
        %v2634 = vshrl.u32 %v2633, 7
        %v2635 = vsub.s32 0, %v2634
        %v2636 = vrot.slane %v2631, %v2635
        %v2638 = vadd.f32 %v2626, %v2636
        %v2639 = vadd.f32 %v2638, %v1953
        %v2640 = vsel %vm1254, %v2639, 0.0
        %2641 = vadd.xlane.f32.xlu0 %v2640
        %v2642 = vpop.xlane.xlu0 %2641
        %v2643 = vmul.f32 %v2642, %v1926
        %v2644 = vsub.f32 %v2639, %v2643
        %v2645 = vmul.f32 %v2644, %v2644
        %v2646 = vsel %vm1254, %v2645, 0.0
        %2647 = vadd.xlane.f32.xlu0 %v2646
        %v2648 = vpop.xlane.xlu0 %2647
        %v2649 = vmul.f32 %v2648, %v1926
        %v2650 = vadd.f32 %v2649, 1e-05
        %v2651 = vrsqrt.pop %v2650
        %v2652 = vmul.f32 %v2644, %v2651
        %v2653 = vld [vmem:[%s51] sm:$0x1]
        %v2655 = vlaneseq
        %v2656 = vshrl.u32 %v2655, 7
        %v2657 = vsub.s32 0, %v2656
        %v2658 = vrot.slane %v2653, %v2657
        %v2660 = vmul.f32 %v2652, %v2658
        %v2661 = vld [vmem:[%s53] sm:$0x1]
        %v2663 = vlaneseq
        %v2664 = vshrl.u32 %v2663, 7
        %v2665 = vsub.s32 0, %v2664
        %v2666 = vrot.slane %v2661, %v2665
        %v2668 = vadd.f32 %v2660, %v2666
        %v2669 = vmul.f32 %v2668, %v1204
        %v2670 = vpack.c.bf16 %v2669, %v2669
        %v2671 = vld [vmem:[%s59] sm:$0xf]
        %v2672 = vld [vmem:[%s59 + $0x4] sm:$0xf]
        %v2673 = vld [vmem:[%s59 + $0x8] sm:$0xf]
        %v2674 = vld [vmem:[%s59 + $0xc] sm:$0xf]
        %v2675 = vld [vmem:[%s61] sm:$0x1]
        %v2677 = vlaneseq
        %v2678 = vshrl.u32 %v2677, 7
        %v2679 = vsub.s32 0, %v2678
        %v2680 = vrot.slane %v2675, %v2679
        %v2686 = vunpack.c.l.b16 %v2671
        %v2687 = vunpack.c.l.b16 %v2672
        %v2688 = vunpack.c.l.b16 %v2673
        %v2689 = vunpack.c.l.b16 %v2674
        %v2690 = vpack.c.b16 %v2687, %v2686
        %v2691 = vpack.c.b16 %v2689, %v2688
        %v2695 = vsel %vm1254, %v2670, 0
        %2697 = vmatprep.subr.bf16.mxu0 0
        %2698 = vmatpush1.bf16.msra.mxu0 %v2690
        %2699 = vmatprep.subr.bf16.mxu0 0
        %2700 = vmatpush1.bf16.msra.mxu0 %v2691
        %2701 = vmatprep.subr.bf16.mxu0 0
        %2702 = vmatpush1.bf16.msra.mxu0 0
        %2703 = vmatprep.subr.bf16.mxu0 0
        %2704 = vmatpush1.bf16.msra.mxu0 0
        %2705 = vmatprep.subr.bf16.mxu0 0
        %2706 = vmatpush1.bf16.msra.mxu0 0
        %2707 = vmatprep.subr.bf16.mxu0 0
        %2708 = vmatpush1.bf16.msra.mxu0 0
        %2709 = vmatprep.subr.bf16.mxu0 0
        %2710 = vmatpush1.bf16.msra.mxu0 0
        %2711 = vmatprep.subr.bf16.mxu0 0
        %2712 = vmatpush1.bf16.msra.mxu0 0
        %2713 = vmatprep.subr.bf16.mxu0 0
        %2714 = vmatpush1.bf16.msra.mxu0 0
        %2715 = vmatprep.subr.bf16.mxu0 0
        %2716 = vmatpush1.bf16.msra.mxu0 0
        %2717 = vmatprep.subr.bf16.mxu0 0
        %2718 = vmatpush1.bf16.msra.mxu0 0
        %2719 = vmatprep.subr.bf16.mxu0 0
        %2720 = vmatpush1.bf16.msra.mxu0 0
        %2721 = vmatprep.subr.bf16.mxu0 0
        %2722 = vmatpush1.bf16.msra.mxu0 0
        %2723 = vmatprep.subr.bf16.mxu0 0
        %2724 = vmatpush1.bf16.msra.mxu0 0
        %2725 = vmatprep.subr.bf16.mxu0 0
        %2726 = vmatpush1.bf16.msra.mxu0 0
        %2727 = vmatprep.subr.bf16.mxu0 0
        %2728 = vmatpush1.bf16.msra.mxu0 0
        %2729 = vmatprep.mubr.bf16.mxu0 0
        %2730 = vmatmul.mubr.bf16.gmra.mrb[0].mxu0 %v2695
        %v2731 = vpop.f32.mrb[0].mxu0
        %v2732 = vadd.f32 %v2680, %v2731
        %v2733 = vpop.f32.mrb[0].mxu0
        %v2734 = vpop.f32.mrb[0].mxu0
        %v2735 = vpop.f32.mrb[0].mxu0
        %2736 = vdwg.mxu0
        %v2737 = vmax.f32 %v2732, 0.0
        %v2738 = vpack.c.bf16 %v2737, %v2737
        %v2739 = vld [vmem:[%s63] sm:$0xf]
        %v2740 = vld [vmem:[%s63 + $0x4] sm:$0xf]
        %v2741 = vld [vmem:[%s63 + $0x8] sm:$0xf]
        %v2742 = vld [vmem:[%s63 + $0xc] sm:$0xf]
        %v2743 = vld [vmem:[%s63 + $0x10] sm:$0xf]
        %v2744 = vld [vmem:[%s63 + $0x14] sm:$0xf]
        %v2745 = vld [vmem:[%s63 + $0x18] sm:$0xf]
        %v2746 = vld [vmem:[%s63 + $0x1c] sm:$0xf]
        %v2747 = vld [vmem:[%s65] sm:$0x1]
        %v2749 = vlaneseq
        %v2750 = vshrl.u32 %v2749, 7
        %v2751 = vsub.s32 0, %v2750
        %v2752 = vrot.slane %v2747, %v2751
        %v2762 = vunpack.c.l.b16 %v2739
        %v2763 = vunpack.c.l.b16 %v2740
        %v2764 = vunpack.c.l.b16 %v2741
        %v2765 = vunpack.c.l.b16 %v2742
        %v2766 = vunpack.c.l.b16 %v2743
        %v2767 = vunpack.c.l.b16 %v2744
        %v2768 = vunpack.c.l.b16 %v2745
        %v2769 = vunpack.c.l.b16 %v2746
        %v2770 = vpack.c.b16 %v2763, %v2762
        %v2771 = vpack.c.b16 %v2765, %v2764
        %v2772 = vpack.c.b16 %v2767, %v2766
        %v2773 = vpack.c.b16 %v2769, %v2768
        %vm2778 = vcmask 523264
        %v2780 = vsel %vm2778, %v2738, 0
        %2782 = vmatprep.subr.bf16.mxu0 0
        %2783 = vmatpush1.bf16.msra.mxu0 %v2770
        %2784 = vmatprep.subr.bf16.mxu0 0
        %2785 = vmatpush1.bf16.msra.mxu0 %v2771
        %2786 = vmatprep.subr.bf16.mxu0 0
        %2787 = vmatpush1.bf16.msra.mxu0 %v2772
        %2788 = vmatprep.subr.bf16.mxu0 0
        %2789 = vmatpush1.bf16.msra.mxu0 %v2773
        %2790 = vmatprep.subr.bf16.mxu0 0
        %2791 = vmatpush1.bf16.msra.mxu0 0
        %2792 = vmatprep.subr.bf16.mxu0 0
        %2793 = vmatpush1.bf16.msra.mxu0 0
        %2794 = vmatprep.subr.bf16.mxu0 0
        %2795 = vmatpush1.bf16.msra.mxu0 0
        %2796 = vmatprep.subr.bf16.mxu0 0
        %2797 = vmatpush1.bf16.msra.mxu0 0
        %2798 = vmatprep.subr.bf16.mxu0 0
        %2799 = vmatpush1.bf16.msra.mxu0 0
        %2800 = vmatprep.subr.bf16.mxu0 0
        %2801 = vmatpush1.bf16.msra.mxu0 0
        %2802 = vmatprep.subr.bf16.mxu0 0
        %2803 = vmatpush1.bf16.msra.mxu0 0
        %2804 = vmatprep.subr.bf16.mxu0 0
        %2805 = vmatpush1.bf16.msra.mxu0 0
        %2806 = vmatprep.subr.bf16.mxu0 0
        %2807 = vmatpush1.bf16.msra.mxu0 0
        %2808 = vmatprep.subr.bf16.mxu0 0
        %2809 = vmatpush1.bf16.msra.mxu0 0
        %2810 = vmatprep.subr.bf16.mxu0 0
        %2811 = vmatpush1.bf16.msra.mxu0 0
        %2812 = vmatprep.subr.bf16.mxu0 0
        %2813 = vmatpush1.bf16.msra.mxu0 0
        %2814 = vmatprep.mubr.bf16.mxu0 0
        %2815 = vmatmul.mubr.bf16.gmra.mrb[0].mxu0 %v2780
        %v2816 = vpop.f32.mrb[0].mxu0
        %v2817 = vadd.f32 %v2752, %v2816
        %v2818 = vpop.f32.mrb[0].mxu0
        %v2819 = vpop.f32.mrb[0].mxu0
        %v2820 = vpop.f32.mrb[0].mxu0
        %2821 = vdwg.mxu0
        %v2822 = vadd.f32 %v2817, %v2669
        %v2823 = vsel %vm1254, %v2822, 0.0
        %2824 = vadd.xlane.f32.xlu0 %v2823
        %v2825 = vpop.xlane.xlu0 %2824
        %v2826 = vmul.f32 %v2825, %v1926
        %v2827 = vsub.f32 %v2822, %v2826
        %v2828 = vmul.f32 %v2827, %v2827
        %v2829 = vsel %vm1254, %v2828, 0.0
        %2830 = vadd.xlane.f32.xlu0 %v2829
        %v2831 = vpop.xlane.xlu0 %2830
        %v2832 = vmul.f32 %v2831, %v1926
        %v2833 = vadd.f32 %v2832, 1e-05
        %v2834 = vrsqrt.pop %v2833
        %v2835 = vmul.f32 %v2827, %v2834
        %v2836 = vld [vmem:[%s67] sm:$0x1]
        %v2838 = vlaneseq
        %v2839 = vshrl.u32 %v2838, 7
        %v2840 = vsub.s32 0, %v2839
        %v2841 = vrot.slane %v2836, %v2840
        %v2843 = vmul.f32 %v2835, %v2841
        %v2844 = vld [vmem:[%s69] sm:$0x1]
        %v2846 = vlaneseq
        %v2847 = vshrl.u32 %v2846, 7
        %v2848 = vsub.s32 0, %v2847
        %v2849 = vrot.slane %v2844, %v2848
        %v2851 = vadd.f32 %v2843, %v2849
        %v2852 = vmul.f32 %v2851, %v1204
        %2853 = vst.msk [vmem:[%s1182] sm:$0xff] %vm1254, %v2852
        %s2854 = sand.u32 %s860, 1
        %s2855 = scalar_lea.sflag [#allocation4], %s2854
        %s2856 = sand.u32 %s860, 1
        %s2857 = smul.addr %s2856, 8
        %s2858 = scalar_lea.vmem [#allocation10], %s2857
        // Predicated region
        $region177: #{tpu_custom_call.1} parent=159 // pred_check
          %p2859 = pneg %p870
        $region178: #{tpu_custom_call.1} parent=159 // pred_check_branch
          %2861 = sbr.rel (%p2859) target = $region180
        $region179: #{tpu_custom_call.1} parent=159 // pred_region
          %s2863 = ssub.s32 128, 128
          %2864 = vsyncadd %s2855, %s2863
          %s2865 = smul.addr %s92, 128
          %s2866 = scalar_lea.hbm %s71, %s2865
          %s2868 = sshll.u32 %s2858, 4
          %s2869 = int_to_ptr.vmem [resolvable:$true] %s2868
          %2871 = dma.vmem_to_hbm [thread:$0]  %s2869, 128, %s2866, %s2855
        $region180: #{tpu_custom_call.1} parent=159 // pred_fallthru
          _
      $region160: #{tpu_custom_call.1} parent=5 // pred_fallthru
        _
      %p2872 = scmp.le.s32.totalorder 2, %s87
      // Predicated region
      $region181: #{tpu_custom_call.1} parent=5 // pred_check
        %p2873 = pneg %p2872
      $region182: #{tpu_custom_call.1} parent=5 // pred_check_branch
        %2875 = sbr.rel (%p2873) target = $region184
      $region183: #{tpu_custom_call.1} parent=5 // pred_region
        %s2876 = ssub.s32 %s87, 2
        // Predicated region
        $region185: #{tpu_custom_call.1} parent=183 // pred_check
          %p2877 = pneg %p876
        $region186: #{tpu_custom_call.1} parent=183 // pred_check_branch
          %2879 = sbr.rel (%p2877) target = $region188
        $region187: #{tpu_custom_call.1} parent=183 // pred_region
          %s2880 = sand.u32 %s861, 1
          %s2881 = scalar_lea.sflag [#allocation4], %s2880
          %s2882 = sand.u32 %s861, 1
          %s2883 = smul.addr %s2882, 8
          %s2884 = scalar_lea.vmem [#allocation10], %s2883
          %2885 = dma.done %s2881, 128
        $region188: #{tpu_custom_call.1} parent=183 // pred_fallthru
          _
      $region184: #{tpu_custom_call.1} parent=5 // pred_fallthru
        _
    $region6: #{tpu_custom_call.1} parent=1 // loop_footer
      %s91 = sadd.s32 1, %s87
    $region7: #{tpu_custom_call.1} parent=1 // loop_footer_branch
      %86 = sbr.rel target = $region3
    $region8: #{tpu_custom_call.1} parent=1 // loop_exit
      _
    %2886 = vsyncpa [#allocation3], 1
    %s2887 = scalar_lea.sflag [#allocation3], 1
    %2888 = vsyncpa %s2887, 1
    %2889 = vsyncpa [#allocation6], 1
    %s2890 = scalar_lea.sflag [#allocation6], 1
    %2891 = vsyncpa %s2890, 1
    %2892 = vsyncpa [#allocation9], 1
    %2893 = vsyncpa [#allocation4], 1
    %s2894 = scalar_lea.sflag [#allocation4], 1
    %2895 = vsyncpa %s2894, 1

</llo_original>
